<compile_context>
chip_gen: v5e
topology: v5e:2x2
jax: 0.10.0
libtpu: 0.0.40
codegen_flags: <defaults>
</compile_context>

<pallas_src>
import jax
import jax.numpy as jnp
from jax import lax
from jax.experimental import pallas as pl
from jax.experimental.pallas import tpu as pltpu


def _round_up(x, m):
    return ((x + m - 1) // m) * m


def rnn_classifier_kernel(
    x_ref,      # (T, Bt, E)   bf16 time-major input block
    len_ref,    # (Bt, 1)      i32 valid lengths (>= 1)
    w0_ref,     # (E, 8H)      bf16  emb folded into layer-0 in-proj, [fwd|bwd], gates (i,f,o,g)
    b0_ref,     # (1, 8H)      f32
    whh0_ref,   # (2H, 8H)     bf16  block-diagonal recurrent weights, layer 0
    w1in_ref,   # (2H, 8H)     bf16  layer-1 in-proj (input = [h_fwd | h_bwd] of layer 0)
    b1_ref,     # (1, 8H)      f32
    whh1_ref,   # (2H, 8H)     bf16  block-diagonal recurrent weights, layer 1
    wl1_ref,    # (4H, H)      bf16  linear1 (input order mean_f|mean_b|max_f|max_b)
    bl1_ref,    # (1, H)       f32
    whead_ref,  # (H, 1+A)     bf16  [linear_out ; linear_aux_out]
    bhead_ref,  # (1, 1+A)     f32
    out_ref,    # (Bt, 1+A)    f32
    # scratch
    proj_ref,   # (T, Bt, 8H)  bf16  hoisted input projections (reused layer0 -> layer1)
    seq_ref,    # (T, Bt, 2H)  f32   layer-0 outputs, fwd in lanes 0:H, bwd in H:2H
):
    T, Bt, E = x_ref.shape
    H2 = whh0_ref.shape[0]
    H = H2 // 2
    H3, H4, H8 = 3 * H, 4 * H, 8 * H
    lens = len_ref[...]                                       # (Bt, 1) i32

    # Fully unroll short recurrences so the LLO scheduler can interleave the two
    # independent direction chains across iterations (hides MXU/EUP latency).
    unroll = True if T <= 16 else (4 if T % 4 == 0 else (2 if T % 2 == 0 else 1))

    # ---- layer-0 input projection: ONE (T*Bt, E) @ (E, 8H) bf16 MXU matmul ----
    # (the embedding Linear is already folded into w0/b0 on the host)
    x_flat = x_ref[...].reshape(T * Bt, E)
    p0 = jnp.dot(x_flat, w0_ref[...], preferred_element_type=jnp.float32) + b0_ref[...]
    proj_ref[...] = p0.astype(proj_ref.dtype).reshape(T, Bt, H8)

    # (1, 2H) selector: lanes 0:H belong to the forward direction.
    half_is_fwd = lax.broadcasted_iota(jnp.int32, (1, H2), 1) < H
    zeros2 = jnp.zeros((Bt, H2), jnp.float32)

    def _half_step(g4, c):
        # per-direction gate order is (i, f, o, g): one contiguous sigmoid block
        s = jax.nn.sigmoid(g4[:, 0:H3])
        g = jnp.tanh(g4[:, H3:H4])
        c_new = s[:, H:2 * H] * c + s[:, 0:H] * g
        h_new = s[:, 2 * H:H3] * jnp.tanh(c_new)
        return h_new, c_new

    def _bistep(tf, tb, hcat, ccat, whh):
        # fwd processes timestep tf, bwd processes timestep tb (interleaved chains)
        pre = jnp.concatenate(
            [proj_ref[tf][:, 0:H4], proj_ref[tb][:, H4:H8]], axis=-1
        ).astype(jnp.float32)
        # single fused recurrent dot per step: [h_f | h_b] @ block-diag(Whh_f, Whh_b)
        gates = pre + jnp.dot(hcat.astype(jnp.bfloat16), whh,
                              preferred_element_type=jnp.float32)
        h_f, c_f = _half_step(gates[:, 0:H4], ccat[:, 0:H])
        h_b, c_b = _half_step(gates[:, H4:H8], ccat[:, H:H2])
        h_new = jnp.concatenate([h_f, h_b], axis=-1)          # (Bt, 2H)
        c_new = jnp.concatenate([c_f, c_b], axis=-1)          # (Bt, 2H)
        valid = lens > jnp.where(half_is_fwd, tf, tb)         # (Bt, 2H) per-direction mask
        # Padded steps: output is exactly zero.  Zero is also the correct carried
        # state for the bwd chain before its first valid step, and the fwd chain
        # never becomes valid again after its last one, so h_out doubles as state.
        h_out = jnp.where(valid, h_new, 0.0)
        c_keep = jnp.where(valid, c_new, ccat)
        return h_out, c_keep

    # ---- LSTM layer 0 (fwd/bwd interleaved, outputs to seq scratch) ----
    whh0 = whh0_ref[...]

    def body0(s, carry):
        hcat, ccat = carry
        tf = s
        tb = T - 1 - s
        h_out, ccat = _bistep(tf, tb, hcat, ccat, whh0)
        seq_ref[tf, :, 0:H] = h_out[:, 0:H]
        seq_ref[tb, :, H:H2] = h_out[:, H:H2]
        return h_out, ccat

    lax.fori_loop(0, T, body0, (zeros2, zeros2), unroll=unroll)

    # ---- layer-1 input projection: ONE (T*Bt, 2H) @ (2H, 8H) bf16 matmul ----
    seq_flat = seq_ref[...].astype(jnp.bfloat16).reshape(T * Bt, H2)
    p1 = jnp.dot(seq_flat, w1in_ref[...], preferred_element_type=jnp.float32) + b1_ref[...]
    proj_ref[...] = p1.astype(proj_ref.dtype).reshape(T, Bt, H8)

    # ---- LSTM layer 1 with mean/max pooling folded into the loop ----
    whh1 = whh1_ref[...]
    neg_inf = jnp.full((Bt, H2), -jnp.inf, jnp.float32)

    def body1(s, carry):
        hcat, ccat, acc_sum, acc_max = carry
        tf = s
        tb = T - 1 - s
        h_out, ccat = _bistep(tf, tb, hcat, ccat, whh1)
        return h_out, ccat, acc_sum + h_out, jnp.maximum(acc_max, h_out)

    _, _, sum_cat, max_cat = lax.fori_loop(
        0, T, body1, (zeros2, zeros2, zeros2, neg_inf), unroll=unroll)

    # ---- pooling (mean over padded length T; max sees the exact-zero pads,
    #      matching torch.mean/max over pad_packed_sequence output) + MLP head ----
    feat = jnp.concatenate([sum_cat * (1.0 / T), max_cat], axis=-1)       # (Bt, 4H)
    z = jnp.dot(feat.astype(jnp.bfloat16), wl1_ref[...],
                preferred_element_type=jnp.float32) + bl1_ref[...]
    h1 = jnp.maximum(z, 0.0).astype(jnp.bfloat16)                          # ReLU
    out_ref[...] = (jnp.dot(h1, whead_ref[...], preferred_element_type=jnp.float32)
                    + bhead_ref[...])


def _tpu_vmem_budget():
    """(vmem cap, max batch tile) gated on TPU generation."""
    try:
        kind = jax.devices()[0].device_kind.lower()
    except Exception:
        kind = ""
    if ("v5" in kind) or ("v6" in kind):
        return 100 << 20, 256      # 128 MiB physical VMEM: bigger tiles, bigger cap
    return 48 << 20, 128           # v7x (64 MiB physical) / unknown: conservative


def rnn_classifier_forward(x, lengths, packed):
    """x: (B, T, E) float, lengths: (B,) int -> (B, 1 + num_aux) float32."""
    B, T, E = x.shape
    H = packed["wl1"].shape[1]
    n_out = packed["whead"].shape[1]

    vmem_cap, max_tile = _tpu_vmem_budget()

    # Batch tile: multiple of 16 sublanes (bf16 packing).  Aim for >= 2 grid
    # programs once the batch allows it so dimension_semantics=('parallel',)
    # shards across both TensorCores on v7x.
    b_min = _round_up(B, 16)
    if b_min <= 16:
        b_tile = 16
    else:
        b_tile = min(_round_up(pl.cdiv(b_min, 2), 16), max_tile)

    weights = (packed["w0"], packed["b0"], packed["whh0"],
               packed["w1in"], packed["b1"], packed["whh1"],
               packed["wl1"], packed["bl1"], packed["whead"], packed["bhead"])

    def pad_lanes(n):
        return _round_up(max(int(n), 1), 128)

    def vmem_bytes(bt):
        xb = 2 * T * bt * pad_lanes(E) * 2                 # double-buffered bf16 input (lane-padded)
        ob = 2 * bt * pad_lanes(n_out) * 4                 # double-buffered f32 output
        proj = T * bt * pad_lanes(8 * H) * 2               # bf16 projection scratch
        seq = T * bt * pad_lanes(2 * H) * 4                # f32 layer-0 output scratch
        wts = 2 * sum(_round_up(int(w.shape[0]), 8) * pad_lanes(w.shape[-1])
                      * w.dtype.itemsize for w in weights)
        return xb + ob + proj + seq + wts

    # Derive the batch tile from the VMEM budget.
    while vmem_bytes(b_tile) > vmem_cap and b_tile > 16:
        b_tile = max(16, _round_up(b_tile // 2, 16))

    b_pad = _round_up(b_min, b_tile)
    grid = (b_pad // b_tile,)
    vmem_limit = int(min(vmem_cap, max(vmem_bytes(b_tile) + (4 << 20), 24 << 20)))

    # Time-major, zero-padded batch, bf16 operands for the MXU.
    x_tm = jnp.transpose(x, (1, 0, 2)).astype(jnp.bfloat16)        # (T, B, E)
    if b_pad != B:
        x_tm = jnp.pad(x_tm, ((0, 0), (0, b_pad - B), (0, 0)))
    # Lengths clipped to >= 1 so the -inf max-pool init can never survive
    # (PyTorch's pack_padded_sequence rejects length-0 rows anyway).
    lens = jnp.clip(lengths.astype(jnp.int32), 1, T).reshape(B, 1)
    if b_pad != B:
        lens = jnp.concatenate([lens, jnp.ones((b_pad - B, 1), jnp.int32)], axis=0)

    in_specs = [
        pl.BlockSpec((T, b_tile, E), lambda b: (0, b, 0)),
        pl.BlockSpec((b_tile, 1), lambda b: (b, 0)),
    ] + [pl.BlockSpec(tuple(w.shape), lambda b: (0, 0)) for w in weights]

    out = pl.pallas_call(
        rnn_classifier_kernel,
        out_shape=jax.ShapeDtypeStruct((b_pad, n_out), jnp.float32),
        grid=grid,
        in_specs=in_specs,
        out_specs=pl.BlockSpec((b_tile, n_out), lambda b: (b, 0)),
        scratch_shapes=[
            pltpu.VMEM((T, b_tile, 8 * H), jnp.bfloat16),   # hoisted projections (reused)
            pltpu.VMEM((T, b_tile, 2 * H), jnp.float32),    # layer-0 outputs [fwd|bwd]
        ],
        compiler_params=pltpu.CompilerParams(
            dimension_semantics=("parallel",),
            vmem_limit_bytes=vmem_limit,
        ),
    )(x_tm, lens, *weights)
    return out[:B]


def init_params(key, emb_size, hidden_size, num_aux):
    """Synthetic parameters in a PyTorch-equivalent layout: weights transposed to
    (in, out), LSTM gates stacked (i|f|g|o) on the output axis, b = b_ih + b_hh.
    A real PyTorch port must repack torch's (4H, in) weight_ih/weight_hh this way."""
    E, H, A = emb_size, hidden_size, num_aux
    ks = jax.random.split(key, 12)

    def w(k, shape, scale=0.1):
        return (scale * jax.random.normal(k, shape)).astype(jnp.float32)

    return {
        "wemb": w(ks[0], (E, H)), "bemb": w(ks[1], (1, H)),
        "wih0": w(ks[2], (2, H, 4 * H)), "whh0": w(ks[3], (2, H, 4 * H)),
        "b0": w(ks[4], (2, 1, 4 * H)),
        "wih1": w(ks[5], (2, 2 * H, 4 * H)), "whh1": w(ks[6], (2, H, 4 * H)),
        "b1": w(ks[7], (2, 1, 4 * H)),
        "w1": w(ks[8], (4 * H, H)), "bl1": w(ks[9], (1, H)),
        "whead": w(ks[10], (H, 1 + A)), "bhead": w(ks[11], (1, 1 + A)),
    }


def pack_params(p):
    """Host-side weight algebra: fold the emb Linear into the layer-0 input
    projection, fuse fwd/bwd into single (in, 8H) matrices, build block-diagonal
    recurrent weights for the one-dot-per-step recurrence, reorder gates
    (i,f,g,o) -> (i,f,o,g), and cast matmul weights to bf16 (biases stay f32)."""
    H = p["whh0"].shape[1]

    def reorder(m):                      # last axis (i|f|g|o) -> (i|f|o|g)
        i, f, g, o = jnp.split(m, 4, axis=-1)
        return jnp.concatenate([i, f, o, g], axis=-1)

    def fuse_dirs(per_dir):              # two (in, 4H) -> (in, 8H) [fwd|bwd]
        return jnp.concatenate([reorder(m) for m in per_dir], axis=-1)

    # layer 0: (x @ wemb + bemb) @ wih0 + b0  ==  x @ (wemb @ wih0) + (bemb @ wih0 + b0)
    w0 = fuse_dirs([p["wemb"] @ p["wih0"][d] for d in (0, 1)])
    b0 = fuse_dirs([p["bemb"] @ p["wih0"][d] + p["b0"][d] for d in (0, 1)])
    w1in = fuse_dirs([p["wih1"][d] for d in (0, 1)])
    b1 = fuse_dirs([p["b1"][d] for d in (0, 1)])

    def blockdiag(whh):                  # (2, H, 4H) -> (2H, 8H)
        z = jnp.zeros((H, 4 * H), whh.dtype)
        top = jnp.concatenate([reorder(whh[0]), z], axis=-1)
        bot = jnp.concatenate([z, reorder(whh[1])], axis=-1)
        return jnp.concatenate([top, bot], axis=0)

    bf = lambda a: a.astype(jnp.bfloat16)
    f32 = lambda a: a.astype(jnp.float32)
    return {
        "w0": bf(w0), "b0": f32(b0), "whh0": bf(blockdiag(p["whh0"])),
        "w1in": bf(w1in), "b1": f32(b1), "whh1": bf(blockdiag(p["whh1"])),
        "wl1": bf(p["w1"]), "bl1": f32(p["bl1"]),
        "whead": bf(p["whead"]), "bhead": f32(p["bhead"]),
    }


if __name__ == "__main__":
    emb_size, hidden_size, num_aux = 16, 32, 6
    batch, seq = 4, 8

    key = jax.random.PRNGKey(0)
    kx, kp = jax.random.split(key)
    x = jax.random.normal(kx, (batch, seq, emb_size), dtype=jnp.float32)
    lengths = jnp.array([8, 5, 3, 7], dtype=jnp.int32)   # valid lengths <= seq

    params = pack_params(init_params(kp, emb_size, hidden_size, num_aux))

    out = rnn_classifier_forward(x, lengths, params)
    out = jax.block_until_ready(out)

    assert out.shape == (batch, 1 + num_aux), out.shape
    assert bool(jnp.all(jnp.isfinite(out)))
    print("KERNEL_OK")
</pallas_src>

<mosaic_0001>
module attributes {stable_mosaic.version = 11 : i64} {
  func.func @rnn_classifier_kernel(%arg0: i32, %arg1: memref<8x16x16xbf16, #tpu.memory_space<vmem>>, %arg2: memref<16x1xi32, #tpu.memory_space<vmem>>, %arg3: memref<16x256xbf16, #tpu.memory_space<vmem>>, %arg4: memref<1x256xf32, #tpu.memory_space<vmem>>, %arg5: memref<64x256xbf16, #tpu.memory_space<vmem>>, %arg6: memref<64x256xbf16, #tpu.memory_space<vmem>>, %arg7: memref<1x256xf32, #tpu.memory_space<vmem>>, %arg8: memref<64x256xbf16, #tpu.memory_space<vmem>>, %arg9: memref<128x32xbf16, #tpu.memory_space<vmem>>, %arg10: memref<1x32xf32, #tpu.memory_space<vmem>>, %arg11: memref<32x7xbf16, #tpu.memory_space<vmem>>, %arg12: memref<1x7xf32, #tpu.memory_space<vmem>>, %arg13: memref<16x7xf32, #tpu.memory_space<vmem>>, %arg14: memref<8x16x256xbf16, #tpu.memory_space<vmem>>, %arg15: memref<8x16x64xf32, #tpu.memory_space<vmem>>) attributes {dimension_semantics = [#tpu.dimension_semantics<parallel>], iteration_bounds = array<i64: 1>, scalar_prefetch = 0 : i64, scratch_operands = 2 : i64, tpu.core_type = #tpu.core_type<tc>, window_params = [{transform_indices = @transform_0, window_bounds = array<i64: 8, 16, 16>}, {transform_indices = @transform_1, window_bounds = array<i64: 16, 1>}, {pipeline_mode = #tpu.pipeline_mode<synchronous>, transform_indices = @transform_2, window_bounds = array<i64: 16, 256>}, {pipeline_mode = #tpu.pipeline_mode<synchronous>, transform_indices = @transform_3, window_bounds = array<i64: 1, 256>}, {pipeline_mode = #tpu.pipeline_mode<synchronous>, transform_indices = @transform_4, window_bounds = array<i64: 64, 256>}, {pipeline_mode = #tpu.pipeline_mode<synchronous>, transform_indices = @transform_5, window_bounds = array<i64: 64, 256>}, {pipeline_mode = #tpu.pipeline_mode<synchronous>, transform_indices = @transform_6, window_bounds = array<i64: 1, 256>}, {pipeline_mode = #tpu.pipeline_mode<synchronous>, transform_indices = @transform_7, window_bounds = array<i64: 64, 256>}, {pipeline_mode = #tpu.pipeline_mode<synchronous>, transform_indices = @transform_8, window_bounds = array<i64: 128, 32>}, {pipeline_mode = #tpu.pipeline_mode<synchronous>, transform_indices = @transform_9, window_bounds = array<i64: 1, 32>}, {pipeline_mode = #tpu.pipeline_mode<synchronous>, transform_indices = @transform_10, window_bounds = array<i64: 32, 7>}, {pipeline_mode = #tpu.pipeline_mode<synchronous>, transform_indices = @transform_11, window_bounds = array<i64: 1, 7>}, {transform_indices = @transform_12, window_bounds = array<i64: 16, 7>}]} {
    %c0 = arith.constant 0 : index
    %c0_0 = arith.constant 0 : index
    %0 = vector.load %arg2[%c0, %c0_0] : memref<16x1xi32, #tpu.memory_space<vmem>>, vector<16x1xi32>
    %c0_1 = arith.constant 0 : index
    %c0_2 = arith.constant 0 : index
    %c0_3 = arith.constant 0 : index
    %1 = vector.load %arg1[%c0_1, %c0_2, %c0_3] : memref<8x16x16xbf16, #tpu.memory_space<vmem>>, vector<8x16x16xbf16>
    %2 = vector.shape_cast %1 : vector<8x16x16xbf16> to vector<128x16xbf16>
    %c0_4 = arith.constant 0 : index
    %c0_5 = arith.constant 0 : index
    %3 = vector.load %arg3[%c0_4, %c0_5] : memref<16x256xbf16, #tpu.memory_space<vmem>>, vector<16x256xbf16>
    %cst = arith.constant dense<0.000000e+00> : vector<128x256xf32>
    %4 = tpu.matmul %2, %3, %cst {dimension_numbers = #tpu.dot_dimension_numbers<[1], [0], [0], [1], [0, 0, 1, 1], [], []>} : vector<128x16xbf16>, vector<16x256xbf16>, vector<128x256xf32> -> vector<128x256xf32>
    %c0_6 = arith.constant 0 : index
    %c0_7 = arith.constant 0 : index
    %5 = vector.load %arg4[%c0_6, %c0_7] : memref<1x256xf32, #tpu.memory_space<vmem>>, vector<1x256xf32>
    %6 = vector.broadcast %5 : vector<1x256xf32> to vector<128x256xf32>
    %7 = arith.addf %4, %6 : vector<128x256xf32>
    %8 = arith.truncf %7 : vector<128x256xf32> to vector<128x256xbf16>
    %9 = vector.shape_cast %8 : vector<128x256xbf16> to vector<8x16x256xbf16>
    %c0_8 = arith.constant 0 : index
    %c0_9 = arith.constant 0 : index
    %c0_10 = arith.constant 0 : index
    %10 = vector.load %arg14[%c0_8, %c0_9, %c0_10] : memref<8x16x256xbf16, #tpu.memory_space<vmem>>, vector<8x16x256xbf16>
    tpu.vector_store %arg14[%c0_8, %c0_9, %c0_10], %9 {strides = array<i32>} : memref<8x16x256xbf16, #tpu.memory_space<vmem>>, vector<8x16x256xbf16>,
    %11 = tpu.iota {dimensions = array<i32: 1>} : vector<1x64xi32>
    %c32_i32 = arith.constant 32 : i32
    %12 = vector.broadcast %c32_i32 : i32 to vector<1x64xi32>
    %13 = arith.cmpi slt, %11, %12 : vector<1x64xi32>
    %cst_11 = arith.constant 0.000000e+00 : f32
    %14 = vector.broadcast %cst_11 : f32 to vector<16x64xf32>
    %c0_12 = arith.constant 0 : index
    %c0_13 = arith.constant 0 : index
    %15 = vector.load %arg5[%c0_12, %c0_13] : memref<64x256xbf16, #tpu.memory_space<vmem>>, vector<64x256xbf16>
    %c0_i32 = arith.constant 0 : i32
    %c7_i32 = arith.constant 7 : i32
    %16 = arith.subi %c7_i32, %c0_i32 : i32
    %17 = arith.index_cast %c0_i32 : i32 to index
    %c0_14 = arith.constant 0 : index
    %c0_15 = arith.constant 0 : index
    %18 = vector.load %arg14[%17, %c0_14, %c0_15] : memref<8x16x256xbf16, #tpu.memory_space<vmem>>, vector<1x16x256xbf16>
    %19 = vector.shape_cast %18 : vector<1x16x256xbf16> to vector<16x256xbf16>
    %20 = vector.extract_strided_slice %19 {offsets = [0, 0], sizes = [16, 128], strides = [1, 1]} : vector<16x256xbf16> to vector<16x128xbf16>
    %21 = arith.index_cast %16 : i32 to index
    %c0_16 = arith.constant 0 : index
    %c0_17 = arith.constant 0 : index
    %22 = vector.load %arg14[%21, %c0_16, %c0_17] : memref<8x16x256xbf16, #tpu.memory_space<vmem>>, vector<1x16x256xbf16>
    %23 = vector.shape_cast %22 : vector<1x16x256xbf16> to vector<16x256xbf16>
    %24 = vector.extract_strided_slice %23 {offsets = [0, 128], sizes = [16, 128], strides = [1, 1]} : vector<16x256xbf16> to vector<16x128xbf16>
    %25 = tpu.concatenate %20, %24 in 1 : vector<16x128xbf16>, vector<16x128xbf16> -> vector<16x256xbf16>
    %26 = arith.extf %25 : vector<16x256xbf16> to vector<16x256xf32>
    %27 = arith.truncf %14 : vector<16x64xf32> to vector<16x64xbf16>
    %cst_18 = arith.constant dense<0.000000e+00> : vector<16x256xf32>
    %28 = tpu.matmul %27, %15, %cst_18 {dimension_numbers = #tpu.dot_dimension_numbers<[1], [0], [0], [1], [0, 0, 1, 1], [], []>} : vector<16x64xbf16>, vector<64x256xbf16>, vector<16x256xf32> -> vector<16x256xf32>
    %29 = arith.addf %26, %28 : vector<16x256xf32>
    %30 = vector.extract_strided_slice %29 {offsets = [0, 0], sizes = [16, 128], strides = [1, 1]} : vector<16x256xf32> to vector<16x128xf32>
    %31 = vector.extract_strided_slice %14 {offsets = [0, 0], sizes = [16, 32], strides = [1, 1]} : vector<16x64xf32> to vector<16x32xf32>
    %32 = vector.extract_strided_slice %30 {offsets = [0, 0], sizes = [16, 96], strides = [1, 1]} : vector<16x128xf32> to vector<16x96xf32>
    %33 = arith.negf %32 : vector<16x96xf32>
    %34 = math.exp %33 : vector<16x96xf32>
    %cst_19 = arith.constant 1.000000e+00 : f32
    %35 = vector.broadcast %cst_19 : f32 to vector<16x96xf32>
    %36 = arith.addf %35, %34 : vector<16x96xf32>
    %37 = arith.divf %35, %36 : vector<16x96xf32>
    %38 = vector.extract_strided_slice %30 {offsets = [0, 96], sizes = [16, 32], strides = [1, 1]} : vector<16x128xf32> to vector<16x32xf32>
    %39 = math.tanh %38 : vector<16x32xf32>
    %40 = vector.extract_strided_slice %37 {offsets = [0, 32], sizes = [16, 32], strides = [1, 1]} : vector<16x96xf32> to vector<16x32xf32>
    %41 = arith.mulf %40, %31 : vector<16x32xf32>
    %42 = vector.extract_strided_slice %37 {offsets = [0, 0], sizes = [16, 32], strides = [1, 1]} : vector<16x96xf32> to vector<16x32xf32>
    %43 = arith.mulf %42, %39 : vector<16x32xf32>
    %44 = arith.addf %41, %43 : vector<16x32xf32>
    %45 = vector.extract_strided_slice %37 {offsets = [0, 64], sizes = [16, 32], strides = [1, 1]} : vector<16x96xf32> to vector<16x32xf32>
    %46 = math.tanh %44 : vector<16x32xf32>
    %47 = arith.mulf %45, %46 : vector<16x32xf32>
    %48 = vector.extract_strided_slice %29 {offsets = [0, 128], sizes = [16, 128], strides = [1, 1]} : vector<16x256xf32> to vector<16x128xf32>
    %49 = vector.extract_strided_slice %14 {offsets = [0, 32], sizes = [16, 32], strides = [1, 1]} : vector<16x64xf32> to vector<16x32xf32>
    %50 = vector.extract_strided_slice %48 {offsets = [0, 0], sizes = [16, 96], strides = [1, 1]} : vector<16x128xf32> to vector<16x96xf32>
    %51 = arith.negf %50 : vector<16x96xf32>
    %52 = math.exp %51 : vector<16x96xf32>
    %cst_20 = arith.constant 1.000000e+00 : f32
    %53 = vector.broadcast %cst_20 : f32 to vector<16x96xf32>
    %54 = arith.addf %53, %52 : vector<16x96xf32>
    %55 = arith.divf %53, %54 : vector<16x96xf32>
    %56 = vector.extract_strided_slice %48 {offsets = [0, 96], sizes = [16, 32], strides = [1, 1]} : vector<16x128xf32> to vector<16x32xf32>
    %57 = math.tanh %56 : vector<16x32xf32>
    %58 = vector.extract_strided_slice %55 {offsets = [0, 32], sizes = [16, 32], strides = [1, 1]} : vector<16x96xf32> to vector<16x32xf32>
    %59 = arith.mulf %58, %49 : vector<16x32xf32>
    %60 = vector.extract_strided_slice %55 {offsets = [0, 0], sizes = [16, 32], strides = [1, 1]} : vector<16x96xf32> to vector<16x32xf32>
    %61 = arith.mulf %60, %57 : vector<16x32xf32>
    %62 = arith.addf %59, %61 : vector<16x32xf32>
    %63 = vector.extract_strided_slice %55 {offsets = [0, 64], sizes = [16, 32], strides = [1, 1]} : vector<16x96xf32> to vector<16x32xf32>
    %64 = math.tanh %62 : vector<16x32xf32>
    %65 = arith.mulf %63, %64 : vector<16x32xf32>
    %66 = tpu.concatenate %47, %65 in 1 : vector<16x32xf32>, vector<16x32xf32> -> vector<16x64xf32>
    %67 = tpu.concatenate %44, %62 in 1 : vector<16x32xf32>, vector<16x32xf32> -> vector<16x64xf32>
    %68 = vector.broadcast %c0_i32 : i32 to vector<1x64xi32>
    %69 = vector.broadcast %16 : i32 to vector<1x64xi32>
    %70 = arith.select %13, %68, %69 : vector<1x64xi1>, vector<1x64xi32>
    %71 = vector.broadcast %0 : vector<16x1xi32> to vector<16x64xi32>
    %72 = vector.broadcast %70 : vector<1x64xi32> to vector<16x64xi32>
    %73 = arith.cmpi sgt, %71, %72 : vector<16x64xi32>
    %cst_21 = arith.constant 0.000000e+00 : f32
    %74 = vector.broadcast %cst_21 : f32 to vector<16x64xf32>
    %75 = arith.select %73, %66, %74 : vector<16x64xi1>, vector<16x64xf32>
    %76 = arith.select %73, %67, %14 : vector<16x64xi1>, vector<16x64xf32>
    %77 = vector.extract_strided_slice %75 {offsets = [0, 0], sizes = [16, 32], strides = [1, 1]} : vector<16x64xf32> to vector<16x32xf32>
    %78 = arith.index_cast %c0_i32 : i32 to index
    %c0_22 = arith.constant 0 : index
    %c0_23 = arith.constant 0 : index
    %79 = vector.load %arg15[%78, %c0_22, %c0_23] : memref<8x16x64xf32, #tpu.memory_space<vmem>>, vector<1x16x32xf32>
    %80 = vector.shape_cast %79 : vector<1x16x32xf32> to vector<16x32xf32>
    %81 = vector.shape_cast %77 : vector<16x32xf32> to vector<1x16x32xf32>
    tpu.vector_store %arg15[%78, %c0_22, %c0_23], %81 {strides = array<i32>} : memref<8x16x64xf32, #tpu.memory_space<vmem>>, vector<1x16x32xf32>,
    %82 = vector.extract_strided_slice %75 {offsets = [0, 32], sizes = [16, 32], strides = [1, 1]} : vector<16x64xf32> to vector<16x32xf32>
    %83 = arith.index_cast %16 : i32 to index
    %c0_24 = arith.constant 0 : index
    %c32 = arith.constant 32 : index
    %84 = vector.load %arg15[%83, %c0_24, %c32] : memref<8x16x64xf32, #tpu.memory_space<vmem>>, vector<1x16x32xf32>
    %85 = vector.shape_cast %84 : vector<1x16x32xf32> to vector<16x32xf32>
    %86 = vector.shape_cast %82 : vector<16x32xf32> to vector<1x16x32xf32>
    tpu.vector_store %arg15[%83, %c0_24, %c32], %86 {strides = array<i32>} : memref<8x16x64xf32, #tpu.memory_space<vmem>>, vector<1x16x32xf32>,
    %c1_i32 = arith.constant 1 : i32
    %c7_i32_25 = arith.constant 7 : i32
    %87 = arith.subi %c7_i32_25, %c1_i32 : i32
    %88 = arith.index_cast %c1_i32 : i32 to index
    %c0_26 = arith.constant 0 : index
    %c0_27 = arith.constant 0 : index
    %89 = vector.load %arg14[%88, %c0_26, %c0_27] : memref<8x16x256xbf16, #tpu.memory_space<vmem>>, vector<1x16x256xbf16>
    %90 = vector.shape_cast %89 : vector<1x16x256xbf16> to vector<16x256xbf16>
    %91 = vector.extract_strided_slice %90 {offsets = [0, 0], sizes = [16, 128], strides = [1, 1]} : vector<16x256xbf16> to vector<16x128xbf16>
    %92 = arith.index_cast %87 : i32 to index
    %c0_28 = arith.constant 0 : index
    %c0_29 = arith.constant 0 : index
    %93 = vector.load %arg14[%92, %c0_28, %c0_29] : memref<8x16x256xbf16, #tpu.memory_space<vmem>>, vector<1x16x256xbf16>
    %94 = vector.shape_cast %93 : vector<1x16x256xbf16> to vector<16x256xbf16>
    %95 = vector.extract_strided_slice %94 {offsets = [0, 128], sizes = [16, 128], strides = [1, 1]} : vector<16x256xbf16> to vector<16x128xbf16>
    %96 = tpu.concatenate %91, %95 in 1 : vector<16x128xbf16>, vector<16x128xbf16> -> vector<16x256xbf16>
    %97 = arith.extf %96 : vector<16x256xbf16> to vector<16x256xf32>
    %98 = arith.truncf %75 : vector<16x64xf32> to vector<16x64xbf16>
    %cst_30 = arith.constant dense<0.000000e+00> : vector<16x256xf32>
    %99 = tpu.matmul %98, %15, %cst_30 {dimension_numbers = #tpu.dot_dimension_numbers<[1], [0], [0], [1], [0, 0, 1, 1], [], []>} : vector<16x64xbf16>, vector<64x256xbf16>, vector<16x256xf32> -> vector<16x256xf32>
    %100 = arith.addf %97, %99 : vector<16x256xf32>
    %101 = vector.extract_strided_slice %100 {offsets = [0, 0], sizes = [16, 128], strides = [1, 1]} : vector<16x256xf32> to vector<16x128xf32>
    %102 = vector.extract_strided_slice %76 {offsets = [0, 0], sizes = [16, 32], strides = [1, 1]} : vector<16x64xf32> to vector<16x32xf32>
    %103 = vector.extract_strided_slice %101 {offsets = [0, 0], sizes = [16, 96], strides = [1, 1]} : vector<16x128xf32> to vector<16x96xf32>
    %104 = arith.negf %103 : vector<16x96xf32>
    %105 = math.exp %104 : vector<16x96xf32>
    %cst_31 = arith.constant 1.000000e+00 : f32
    %106 = vector.broadcast %cst_31 : f32 to vector<16x96xf32>
    %107 = arith.addf %106, %105 : vector<16x96xf32>
    %108 = arith.divf %106, %107 : vector<16x96xf32>
    %109 = vector.extract_strided_slice %101 {offsets = [0, 96], sizes = [16, 32], strides = [1, 1]} : vector<16x128xf32> to vector<16x32xf32>
    %110 = math.tanh %109 : vector<16x32xf32>
    %111 = vector.extract_strided_slice %108 {offsets = [0, 32], sizes = [16, 32], strides = [1, 1]} : vector<16x96xf32> to vector<16x32xf32>
    %112 = arith.mulf %111, %102 : vector<16x32xf32>
    %113 = vector.extract_strided_slice %108 {offsets = [0, 0], sizes = [16, 32], strides = [1, 1]} : vector<16x96xf32> to vector<16x32xf32>
    %114 = arith.mulf %113, %110 : vector<16x32xf32>
    %115 = arith.addf %112, %114 : vector<16x32xf32>
    %116 = vector.extract_strided_slice %108 {offsets = [0, 64], sizes = [16, 32], strides = [1, 1]} : vector<16x96xf32> to vector<16x32xf32>
    %117 = math.tanh %115 : vector<16x32xf32>
    %118 = arith.mulf %116, %117 : vector<16x32xf32>
    %119 = vector.extract_strided_slice %100 {offsets = [0, 128], sizes = [16, 128], strides = [1, 1]} : vector<16x256xf32> to vector<16x128xf32>
    %120 = vector.extract_strided_slice %76 {offsets = [0, 32], sizes = [16, 32], strides = [1, 1]} : vector<16x64xf32> to vector<16x32xf32>
    %121 = vector.extract_strided_slice %119 {offsets = [0, 0], sizes = [16, 96], strides = [1, 1]} : vector<16x128xf32> to vector<16x96xf32>
    %122 = arith.negf %121 : vector<16x96xf32>
    %123 = math.exp %122 : vector<16x96xf32>
    %cst_32 = arith.constant 1.000000e+00 : f32
    %124 = vector.broadcast %cst_32 : f32 to vector<16x96xf32>
    %125 = arith.addf %124, %123 : vector<16x96xf32>
    %126 = arith.divf %124, %125 : vector<16x96xf32>
    %127 = vector.extract_strided_slice %119 {offsets = [0, 96], sizes = [16, 32], strides = [1, 1]} : vector<16x128xf32> to vector<16x32xf32>
    %128 = math.tanh %127 : vector<16x32xf32>
    %129 = vector.extract_strided_slice %126 {offsets = [0, 32], sizes = [16, 32], strides = [1, 1]} : vector<16x96xf32> to vector<16x32xf32>
    %130 = arith.mulf %129, %120 : vector<16x32xf32>
    %131 = vector.extract_strided_slice %126 {offsets = [0, 0], sizes = [16, 32], strides = [1, 1]} : vector<16x96xf32> to vector<16x32xf32>
    %132 = arith.mulf %131, %128 : vector<16x32xf32>
    %133 = arith.addf %130, %132 : vector<16x32xf32>
    %134 = vector.extract_strided_slice %126 {offsets = [0, 64], sizes = [16, 32], strides = [1, 1]} : vector<16x96xf32> to vector<16x32xf32>
    %135 = math.tanh %133 : vector<16x32xf32>
    %136 = arith.mulf %134, %135 : vector<16x32xf32>
    %137 = tpu.concatenate %118, %136 in 1 : vector<16x32xf32>, vector<16x32xf32> -> vector<16x64xf32>
    %138 = tpu.concatenate %115, %133 in 1 : vector<16x32xf32>, vector<16x32xf32> -> vector<16x64xf32>
    %139 = vector.broadcast %c1_i32 : i32 to vector<1x64xi32>
    %140 = vector.broadcast %87 : i32 to vector<1x64xi32>
    %141 = arith.select %13, %139, %140 : vector<1x64xi1>, vector<1x64xi32>
    %142 = vector.broadcast %0 : vector<16x1xi32> to vector<16x64xi32>
    %143 = vector.broadcast %141 : vector<1x64xi32> to vector<16x64xi32>
    %144 = arith.cmpi sgt, %142, %143 : vector<16x64xi32>
    %cst_33 = arith.constant 0.000000e+00 : f32
    %145 = vector.broadcast %cst_33 : f32 to vector<16x64xf32>
    %146 = arith.select %144, %137, %145 : vector<16x64xi1>, vector<16x64xf32>
    %147 = arith.select %144, %138, %76 : vector<16x64xi1>, vector<16x64xf32>
    %148 = vector.extract_strided_slice %146 {offsets = [0, 0], sizes = [16, 32], strides = [1, 1]} : vector<16x64xf32> to vector<16x32xf32>
    %149 = arith.index_cast %c1_i32 : i32 to index
    %c0_34 = arith.constant 0 : index
    %c0_35 = arith.constant 0 : index
    %150 = vector.load %arg15[%149, %c0_34, %c0_35] : memref<8x16x64xf32, #tpu.memory_space<vmem>>, vector<1x16x32xf32>
    %151 = vector.shape_cast %150 : vector<1x16x32xf32> to vector<16x32xf32>
    %152 = vector.shape_cast %148 : vector<16x32xf32> to vector<1x16x32xf32>
    tpu.vector_store %arg15[%149, %c0_34, %c0_35], %152 {strides = array<i32>} : memref<8x16x64xf32, #tpu.memory_space<vmem>>, vector<1x16x32xf32>,
    %153 = vector.extract_strided_slice %146 {offsets = [0, 32], sizes = [16, 32], strides = [1, 1]} : vector<16x64xf32> to vector<16x32xf32>
    %154 = arith.index_cast %87 : i32 to index
    %c0_36 = arith.constant 0 : index
    %c32_37 = arith.constant 32 : index
    %155 = vector.load %arg15[%154, %c0_36, %c32_37] : memref<8x16x64xf32, #tpu.memory_space<vmem>>, vector<1x16x32xf32>
    %156 = vector.shape_cast %155 : vector<1x16x32xf32> to vector<16x32xf32>
    %157 = vector.shape_cast %153 : vector<16x32xf32> to vector<1x16x32xf32>
    tpu.vector_store %arg15[%154, %c0_36, %c32_37], %157 {strides = array<i32>} : memref<8x16x64xf32, #tpu.memory_space<vmem>>, vector<1x16x32xf32>,
    %c2_i32 = arith.constant 2 : i32
    %c7_i32_38 = arith.constant 7 : i32
    %158 = arith.subi %c7_i32_38, %c2_i32 : i32
    %159 = arith.index_cast %c2_i32 : i32 to index
    %c0_39 = arith.constant 0 : index
    %c0_40 = arith.constant 0 : index
    %160 = vector.load %arg14[%159, %c0_39, %c0_40] : memref<8x16x256xbf16, #tpu.memory_space<vmem>>, vector<1x16x256xbf16>
    %161 = vector.shape_cast %160 : vector<1x16x256xbf16> to vector<16x256xbf16>
    %162 = vector.extract_strided_slice %161 {offsets = [0, 0], sizes = [16, 128], strides = [1, 1]} : vector<16x256xbf16> to vector<16x128xbf16>
    %163 = arith.index_cast %158 : i32 to index
    %c0_41 = arith.constant 0 : index
    %c0_42 = arith.constant 0 : index
    %164 = vector.load %arg14[%163, %c0_41, %c0_42] : memref<8x16x256xbf16, #tpu.memory_space<vmem>>, vector<1x16x256xbf16>
    %165 = vector.shape_cast %164 : vector<1x16x256xbf16> to vector<16x256xbf16>
    %166 = vector.extract_strided_slice %165 {offsets = [0, 128], sizes = [16, 128], strides = [1, 1]} : vector<16x256xbf16> to vector<16x128xbf16>
    %167 = tpu.concatenate %162, %166 in 1 : vector<16x128xbf16>, vector<16x128xbf16> -> vector<16x256xbf16>
    %168 = arith.extf %167 : vector<16x256xbf16> to vector<16x256xf32>
    %169 = arith.truncf %146 : vector<16x64xf32> to vector<16x64xbf16>
    %cst_43 = arith.constant dense<0.000000e+00> : vector<16x256xf32>
    %170 = tpu.matmul %169, %15, %cst_43 {dimension_numbers = #tpu.dot_dimension_numbers<[1], [0], [0], [1], [0, 0, 1, 1], [], []>} : vector<16x64xbf16>, vector<64x256xbf16>, vector<16x256xf32> -> vector<16x256xf32>
    %171 = arith.addf %168, %170 : vector<16x256xf32>
    %172 = vector.extract_strided_slice %171 {offsets = [0, 0], sizes = [16, 128], strides = [1, 1]} : vector<16x256xf32> to vector<16x128xf32>
    %173 = vector.extract_strided_slice %147 {offsets = [0, 0], sizes = [16, 32], strides = [1, 1]} : vector<16x64xf32> to vector<16x32xf32>
    %174 = vector.extract_strided_slice %172 {offsets = [0, 0], sizes = [16, 96], strides = [1, 1]} : vector<16x128xf32> to vector<16x96xf32>
    %175 = arith.negf %174 : vector<16x96xf32>
    %176 = math.exp %175 : vector<16x96xf32>
    %cst_44 = arith.constant 1.000000e+00 : f32
    %177 = vector.broadcast %cst_44 : f32 to vector<16x96xf32>
    %178 = arith.addf %177, %176 : vector<16x96xf32>
    %179 = arith.divf %177, %178 : vector<16x96xf32>
    %180 = vector.extract_strided_slice %172 {offsets = [0, 96], sizes = [16, 32], strides = [1, 1]} : vector<16x128xf32> to vector<16x32xf32>
    %181 = math.tanh %180 : vector<16x32xf32>
    %182 = vector.extract_strided_slice %179 {offsets = [0, 32], sizes = [16, 32], strides = [1, 1]} : vector<16x96xf32> to vector<16x32xf32>
    %183 = arith.mulf %182, %173 : vector<16x32xf32>
    %184 = vector.extract_strided_slice %179 {offsets = [0, 0], sizes = [16, 32], strides = [1, 1]} : vector<16x96xf32> to vector<16x32xf32>
    %185 = arith.mulf %184, %181 : vector<16x32xf32>
    %186 = arith.addf %183, %185 : vector<16x32xf32>
    %187 = vector.extract_strided_slice %179 {offsets = [0, 64], sizes = [16, 32], strides = [1, 1]} : vector<16x96xf32> to vector<16x32xf32>
    %188 = math.tanh %186 : vector<16x32xf32>
    %189 = arith.mulf %187, %188 : vector<16x32xf32>
    %190 = vector.extract_strided_slice %171 {offsets = [0, 128], sizes = [16, 128], strides = [1, 1]} : vector<16x256xf32> to vector<16x128xf32>
    %191 = vector.extract_strided_slice %147 {offsets = [0, 32], sizes = [16, 32], strides = [1, 1]} : vector<16x64xf32> to vector<16x32xf32>
    %192 = vector.extract_strided_slice %190 {offsets = [0, 0], sizes = [16, 96], strides = [1, 1]} : vector<16x128xf32> to vector<16x96xf32>
    %193 = arith.negf %192 : vector<16x96xf32>
    %194 = math.exp %193 : vector<16x96xf32>
    %cst_45 = arith.constant 1.000000e+00 : f32
    %195 = vector.broadcast %cst_45 : f32 to vector<16x96xf32>
    %196 = arith.addf %195, %194 : vector<16x96xf32>
    %197 = arith.divf %195, %196 : vector<16x96xf32>
    %198 = vector.extract_strided_slice %190 {offsets = [0, 96], sizes = [16, 32], strides = [1, 1]} : vector<16x128xf32> to vector<16x32xf32>
    %199 = math.tanh %198 : vector<16x32xf32>
    %200 = vector.extract_strided_slice %197 {offsets = [0, 32], sizes = [16, 32], strides = [1, 1]} : vector<16x96xf32> to vector<16x32xf32>
    %201 = arith.mulf %200, %191 : vector<16x32xf32>
    %202 = vector.extract_strided_slice %197 {offsets = [0, 0], sizes = [16, 32], strides = [1, 1]} : vector<16x96xf32> to vector<16x32xf32>
    %203 = arith.mulf %202, %199 : vector<16x32xf32>
    %204 = arith.addf %201, %203 : vector<16x32xf32>
    %205 = vector.extract_strided_slice %197 {offsets = [0, 64], sizes = [16, 32], strides = [1, 1]} : vector<16x96xf32> to vector<16x32xf32>
    %206 = math.tanh %204 : vector<16x32xf32>
    %207 = arith.mulf %205, %206 : vector<16x32xf32>
    %208 = tpu.concatenate %189, %207 in 1 : vector<16x32xf32>, vector<16x32xf32> -> vector<16x64xf32>
    %209 = tpu.concatenate %186, %204 in 1 : vector<16x32xf32>, vector<16x32xf32> -> vector<16x64xf32>
    %210 = vector.broadcast %c2_i32 : i32 to vector<1x64xi32>
    %211 = vector.broadcast %158 : i32 to vector<1x64xi32>
    %212 = arith.select %13, %210, %211 : vector<1x64xi1>, vector<1x64xi32>
    %213 = vector.broadcast %0 : vector<16x1xi32> to vector<16x64xi32>
    %214 = vector.broadcast %212 : vector<1x64xi32> to vector<16x64xi32>
    %215 = arith.cmpi sgt, %213, %214 : vector<16x64xi32>
    %cst_46 = arith.constant 0.000000e+00 : f32
    %216 = vector.broadcast %cst_46 : f32 to vector<16x64xf32>
    %217 = arith.select %215, %208, %216 : vector<16x64xi1>, vector<16x64xf32>
    %218 = arith.select %215, %209, %147 : vector<16x64xi1>, vector<16x64xf32>
    %219 = vector.extract_strided_slice %217 {offsets = [0, 0], sizes = [16, 32], strides = [1, 1]} : vector<16x64xf32> to vector<16x32xf32>
    %220 = arith.index_cast %c2_i32 : i32 to index
    %c0_47 = arith.constant 0 : index
    %c0_48 = arith.constant 0 : index
    %221 = vector.load %arg15[%220, %c0_47, %c0_48] : memref<8x16x64xf32, #tpu.memory_space<vmem>>, vector<1x16x32xf32>
    %222 = vector.shape_cast %221 : vector<1x16x32xf32> to vector<16x32xf32>
    %223 = vector.shape_cast %219 : vector<16x32xf32> to vector<1x16x32xf32>
    tpu.vector_store %arg15[%220, %c0_47, %c0_48], %223 {strides = array<i32>} : memref<8x16x64xf32, #tpu.memory_space<vmem>>, vector<1x16x32xf32>,
    %224 = vector.extract_strided_slice %217 {offsets = [0, 32], sizes = [16, 32], strides = [1, 1]} : vector<16x64xf32> to vector<16x32xf32>
    %225 = arith.index_cast %158 : i32 to index
    %c0_49 = arith.constant 0 : index
    %c32_50 = arith.constant 32 : index
    %226 = vector.load %arg15[%225, %c0_49, %c32_50] : memref<8x16x64xf32, #tpu.memory_space<vmem>>, vector<1x16x32xf32>
    %227 = vector.shape_cast %226 : vector<1x16x32xf32> to vector<16x32xf32>
    %228 = vector.shape_cast %224 : vector<16x32xf32> to vector<1x16x32xf32>
    tpu.vector_store %arg15[%225, %c0_49, %c32_50], %228 {strides = array<i32>} : memref<8x16x64xf32, #tpu.memory_space<vmem>>, vector<1x16x32xf32>,
    %c3_i32 = arith.constant 3 : i32
    %c7_i32_51 = arith.constant 7 : i32
    %229 = arith.subi %c7_i32_51, %c3_i32 : i32
    %230 = arith.index_cast %c3_i32 : i32 to index
    %c0_52 = arith.constant 0 : index
    %c0_53 = arith.constant 0 : index
    %231 = vector.load %arg14[%230, %c0_52, %c0_53] : memref<8x16x256xbf16, #tpu.memory_space<vmem>>, vector<1x16x256xbf16>
    %232 = vector.shape_cast %231 : vector<1x16x256xbf16> to vector<16x256xbf16>
    %233 = vector.extract_strided_slice %232 {offsets = [0, 0], sizes = [16, 128], strides = [1, 1]} : vector<16x256xbf16> to vector<16x128xbf16>
    %234 = arith.index_cast %229 : i32 to index
    %c0_54 = arith.constant 0 : index
    %c0_55 = arith.constant 0 : index
    %235 = vector.load %arg14[%234, %c0_54, %c0_55] : memref<8x16x256xbf16, #tpu.memory_space<vmem>>, vector<1x16x256xbf16>
    %236 = vector.shape_cast %235 : vector<1x16x256xbf16> to vector<16x256xbf16>
    %237 = vector.extract_strided_slice %236 {offsets = [0, 128], sizes = [16, 128], strides = [1, 1]} : vector<16x256xbf16> to vector<16x128xbf16>
    %238 = tpu.concatenate %233, %237 in 1 : vector<16x128xbf16>, vector<16x128xbf16> -> vector<16x256xbf16>
    %239 = arith.extf %238 : vector<16x256xbf16> to vector<16x256xf32>
    %240 = arith.truncf %217 : vector<16x64xf32> to vector<16x64xbf16>
    %cst_56 = arith.constant dense<0.000000e+00> : vector<16x256xf32>
    %241 = tpu.matmul %240, %15, %cst_56 {dimension_numbers = #tpu.dot_dimension_numbers<[1], [0], [0], [1], [0, 0, 1, 1], [], []>} : vector<16x64xbf16>, vector<64x256xbf16>, vector<16x256xf32> -> vector<16x256xf32>
    %242 = arith.addf %239, %241 : vector<16x256xf32>
    %243 = vector.extract_strided_slice %242 {offsets = [0, 0], sizes = [16, 128], strides = [1, 1]} : vector<16x256xf32> to vector<16x128xf32>
    %244 = vector.extract_strided_slice %218 {offsets = [0, 0], sizes = [16, 32], strides = [1, 1]} : vector<16x64xf32> to vector<16x32xf32>
    %245 = vector.extract_strided_slice %243 {offsets = [0, 0], sizes = [16, 96], strides = [1, 1]} : vector<16x128xf32> to vector<16x96xf32>
    %246 = arith.negf %245 : vector<16x96xf32>
    %247 = math.exp %246 : vector<16x96xf32>
    %cst_57 = arith.constant 1.000000e+00 : f32
    %248 = vector.broadcast %cst_57 : f32 to vector<16x96xf32>
    %249 = arith.addf %248, %247 : vector<16x96xf32>
    %250 = arith.divf %248, %249 : vector<16x96xf32>
    %251 = vector.extract_strided_slice %243 {offsets = [0, 96], sizes = [16, 32], strides = [1, 1]} : vector<16x128xf32> to vector<16x32xf32>
    %252 = math.tanh %251 : vector<16x32xf32>
    %253 = vector.extract_strided_slice %250 {offsets = [0, 32], sizes = [16, 32], strides = [1, 1]} : vector<16x96xf32> to vector<16x32xf32>
    %254 = arith.mulf %253, %244 : vector<16x32xf32>
    %255 = vector.extract_strided_slice %250 {offsets = [0, 0], sizes = [16, 32], strides = [1, 1]} : vector<16x96xf32> to vector<16x32xf32>
    %256 = arith.mulf %255, %252 : vector<16x32xf32>
    %257 = arith.addf %254, %256 : vector<16x32xf32>
    %258 = vector.extract_strided_slice %250 {offsets = [0, 64], sizes = [16, 32], strides = [1, 1]} : vector<16x96xf32> to vector<16x32xf32>
    %259 = math.tanh %257 : vector<16x32xf32>
    %260 = arith.mulf %258, %259 : vector<16x32xf32>
    %261 = vector.extract_strided_slice %242 {offsets = [0, 128], sizes = [16, 128], strides = [1, 1]} : vector<16x256xf32> to vector<16x128xf32>
    %262 = vector.extract_strided_slice %218 {offsets = [0, 32], sizes = [16, 32], strides = [1, 1]} : vector<16x64xf32> to vector<16x32xf32>
    %263 = vector.extract_strided_slice %261 {offsets = [0, 0], sizes = [16, 96], strides = [1, 1]} : vector<16x128xf32> to vector<16x96xf32>
    %264 = arith.negf %263 : vector<16x96xf32>
    %265 = math.exp %264 : vector<16x96xf32>
    %cst_58 = arith.constant 1.000000e+00 : f32
    %266 = vector.broadcast %cst_58 : f32 to vector<16x96xf32>
    %267 = arith.addf %266, %265 : vector<16x96xf32>
    %268 = arith.divf %266, %267 : vector<16x96xf32>
    %269 = vector.extract_strided_slice %261 {offsets = [0, 96], sizes = [16, 32], strides = [1, 1]} : vector<16x128xf32> to vector<16x32xf32>
    %270 = math.tanh %269 : vector<16x32xf32>
    %271 = vector.extract_strided_slice %268 {offsets = [0, 32], sizes = [16, 32], strides = [1, 1]} : vector<16x96xf32> to vector<16x32xf32>
    %272 = arith.mulf %271, %262 : vector<16x32xf32>
    %273 = vector.extract_strided_slice %268 {offsets = [0, 0], sizes = [16, 32], strides = [1, 1]} : vector<16x96xf32> to vector<16x32xf32>
    %274 = arith.mulf %273, %270 : vector<16x32xf32>
    %275 = arith.addf %272, %274 : vector<16x32xf32>
    %276 = vector.extract_strided_slice %268 {offsets = [0, 64], sizes = [16, 32], strides = [1, 1]} : vector<16x96xf32> to vector<16x32xf32>
    %277 = math.tanh %275 : vector<16x32xf32>
    %278 = arith.mulf %276, %277 : vector<16x32xf32>
    %279 = tpu.concatenate %260, %278 in 1 : vector<16x32xf32>, vector<16x32xf32> -> vector<16x64xf32>
    %280 = tpu.concatenate %257, %275 in 1 : vector<16x32xf32>, vector<16x32xf32> -> vector<16x64xf32>
    %281 = vector.broadcast %c3_i32 : i32 to vector<1x64xi32>
    %282 = vector.broadcast %229 : i32 to vector<1x64xi32>
    %283 = arith.select %13, %281, %282 : vector<1x64xi1>, vector<1x64xi32>
    %284 = vector.broadcast %0 : vector<16x1xi32> to vector<16x64xi32>
    %285 = vector.broadcast %283 : vector<1x64xi32> to vector<16x64xi32>
    %286 = arith.cmpi sgt, %284, %285 : vector<16x64xi32>
    %cst_59 = arith.constant 0.000000e+00 : f32
    %287 = vector.broadcast %cst_59 : f32 to vector<16x64xf32>
    %288 = arith.select %286, %279, %287 : vector<16x64xi1>, vector<16x64xf32>
    %289 = arith.select %286, %280, %218 : vector<16x64xi1>, vector<16x64xf32>
    %290 = vector.extract_strided_slice %288 {offsets = [0, 0], sizes = [16, 32], strides = [1, 1]} : vector<16x64xf32> to vector<16x32xf32>
    %291 = arith.index_cast %c3_i32 : i32 to index
    %c0_60 = arith.constant 0 : index
    %c0_61 = arith.constant 0 : index
    %292 = vector.load %arg15[%291, %c0_60, %c0_61] : memref<8x16x64xf32, #tpu.memory_space<vmem>>, vector<1x16x32xf32>
    %293 = vector.shape_cast %292 : vector<1x16x32xf32> to vector<16x32xf32>
    %294 = vector.shape_cast %290 : vector<16x32xf32> to vector<1x16x32xf32>
    tpu.vector_store %arg15[%291, %c0_60, %c0_61], %294 {strides = array<i32>} : memref<8x16x64xf32, #tpu.memory_space<vmem>>, vector<1x16x32xf32>,
    %295 = vector.extract_strided_slice %288 {offsets = [0, 32], sizes = [16, 32], strides = [1, 1]} : vector<16x64xf32> to vector<16x32xf32>
    %296 = arith.index_cast %229 : i32 to index
    %c0_62 = arith.constant 0 : index
    %c32_63 = arith.constant 32 : index
    %297 = vector.load %arg15[%296, %c0_62, %c32_63] : memref<8x16x64xf32, #tpu.memory_space<vmem>>, vector<1x16x32xf32>
    %298 = vector.shape_cast %297 : vector<1x16x32xf32> to vector<16x32xf32>
    %299 = vector.shape_cast %295 : vector<16x32xf32> to vector<1x16x32xf32>
    tpu.vector_store %arg15[%296, %c0_62, %c32_63], %299 {strides = array<i32>} : memref<8x16x64xf32, #tpu.memory_space<vmem>>, vector<1x16x32xf32>,
    %c4_i32 = arith.constant 4 : i32
    %c7_i32_64 = arith.constant 7 : i32
    %300 = arith.subi %c7_i32_64, %c4_i32 : i32
    %301 = arith.index_cast %c4_i32 : i32 to index
    %c0_65 = arith.constant 0 : index
    %c0_66 = arith.constant 0 : index
    %302 = vector.load %arg14[%301, %c0_65, %c0_66] : memref<8x16x256xbf16, #tpu.memory_space<vmem>>, vector<1x16x256xbf16>
    %303 = vector.shape_cast %302 : vector<1x16x256xbf16> to vector<16x256xbf16>
    %304 = vector.extract_strided_slice %303 {offsets = [0, 0], sizes = [16, 128], strides = [1, 1]} : vector<16x256xbf16> to vector<16x128xbf16>
    %305 = arith.index_cast %300 : i32 to index
    %c0_67 = arith.constant 0 : index
    %c0_68 = arith.constant 0 : index
    %306 = vector.load %arg14[%305, %c0_67, %c0_68] : memref<8x16x256xbf16, #tpu.memory_space<vmem>>, vector<1x16x256xbf16>
    %307 = vector.shape_cast %306 : vector<1x16x256xbf16> to vector<16x256xbf16>
    %308 = vector.extract_strided_slice %307 {offsets = [0, 128], sizes = [16, 128], strides = [1, 1]} : vector<16x256xbf16> to vector<16x128xbf16>
    %309 = tpu.concatenate %304, %308 in 1 : vector<16x128xbf16>, vector<16x128xbf16> -> vector<16x256xbf16>
    %310 = arith.extf %309 : vector<16x256xbf16> to vector<16x256xf32>
    %311 = arith.truncf %288 : vector<16x64xf32> to vector<16x64xbf16>
    %cst_69 = arith.constant dense<0.000000e+00> : vector<16x256xf32>
    %312 = tpu.matmul %311, %15, %cst_69 {dimension_numbers = #tpu.dot_dimension_numbers<[1], [0], [0], [1], [0, 0, 1, 1], [], []>} : vector<16x64xbf16>, vector<64x256xbf16>, vector<16x256xf32> -> vector<16x256xf32>
    %313 = arith.addf %310, %312 : vector<16x256xf32>
    %314 = vector.extract_strided_slice %313 {offsets = [0, 0], sizes = [16, 128], strides = [1, 1]} : vector<16x256xf32> to vector<16x128xf32>
    %315 = vector.extract_strided_slice %289 {offsets = [0, 0], sizes = [16, 32], strides = [1, 1]} : vector<16x64xf32> to vector<16x32xf32>
    %316 = vector.extract_strided_slice %314 {offsets = [0, 0], sizes = [16, 96], strides = [1, 1]} : vector<16x128xf32> to vector<16x96xf32>
    %317 = arith.negf %316 : vector<16x96xf32>
    %318 = math.exp %317 : vector<16x96xf32>
    %cst_70 = arith.constant 1.000000e+00 : f32
    %319 = vector.broadcast %cst_70 : f32 to vector<16x96xf32>
    %320 = arith.addf %319, %318 : vector<16x96xf32>
    %321 = arith.divf %319, %320 : vector<16x96xf32>
    %322 = vector.extract_strided_slice %314 {offsets = [0, 96], sizes = [16, 32], strides = [1, 1]} : vector<16x128xf32> to vector<16x32xf32>
    %323 = math.tanh %322 : vector<16x32xf32>
    %324 = vector.extract_strided_slice %321 {offsets = [0, 32], sizes = [16, 32], strides = [1, 1]} : vector<16x96xf32> to vector<16x32xf32>
    %325 = arith.mulf %324, %315 : vector<16x32xf32>
    %326 = vector.extract_strided_slice %321 {offsets = [0, 0], sizes = [16, 32], strides = [1, 1]} : vector<16x96xf32> to vector<16x32xf32>
    %327 = arith.mulf %326, %323 : vector<16x32xf32>
    %328 = arith.addf %325, %327 : vector<16x32xf32>
    %329 = vector.extract_strided_slice %321 {offsets = [0, 64], sizes = [16, 32], strides = [1, 1]} : vector<16x96xf32> to vector<16x32xf32>
    %330 = math.tanh %328 : vector<16x32xf32>
    %331 = arith.mulf %329, %330 : vector<16x32xf32>
    %332 = vector.extract_strided_slice %313 {offsets = [0, 128], sizes = [16, 128], strides = [1, 1]} : vector<16x256xf32> to vector<16x128xf32>
    %333 = vector.extract_strided_slice %289 {offsets = [0, 32], sizes = [16, 32], strides = [1, 1]} : vector<16x64xf32> to vector<16x32xf32>
    %334 = vector.extract_strided_slice %332 {offsets = [0, 0], sizes = [16, 96], strides = [1, 1]} : vector<16x128xf32> to vector<16x96xf32>
    %335 = arith.negf %334 : vector<16x96xf32>
    %336 = math.exp %335 : vector<16x96xf32>
    %cst_71 = arith.constant 1.000000e+00 : f32
    %337 = vector.broadcast %cst_71 : f32 to vector<16x96xf32>
    %338 = arith.addf %337, %336 : vector<16x96xf32>
    %339 = arith.divf %337, %338 : vector<16x96xf32>
    %340 = vector.extract_strided_slice %332 {offsets = [0, 96], sizes = [16, 32], strides = [1, 1]} : vector<16x128xf32> to vector<16x32xf32>
    %341 = math.tanh %340 : vector<16x32xf32>
    %342 = vector.extract_strided_slice %339 {offsets = [0, 32], sizes = [16, 32], strides = [1, 1]} : vector<16x96xf32> to vector<16x32xf32>
    %343 = arith.mulf %342, %333 : vector<16x32xf32>
    %344 = vector.extract_strided_slice %339 {offsets = [0, 0], sizes = [16, 32], strides = [1, 1]} : vector<16x96xf32> to vector<16x32xf32>
    %345 = arith.mulf %344, %341 : vector<16x32xf32>
    %346 = arith.addf %343, %345 : vector<16x32xf32>
    %347 = vector.extract_strided_slice %339 {offsets = [0, 64], sizes = [16, 32], strides = [1, 1]} : vector<16x96xf32> to vector<16x32xf32>
    %348 = math.tanh %346 : vector<16x32xf32>
    %349 = arith.mulf %347, %348 : vector<16x32xf32>
    %350 = tpu.concatenate %331, %349 in 1 : vector<16x32xf32>, vector<16x32xf32> -> vector<16x64xf32>
    %351 = tpu.concatenate %328, %346 in 1 : vector<16x32xf32>, vector<16x32xf32> -> vector<16x64xf32>
    %352 = vector.broadcast %c4_i32 : i32 to vector<1x64xi32>
    %353 = vector.broadcast %300 : i32 to vector<1x64xi32>
    %354 = arith.select %13, %352, %353 : vector<1x64xi1>, vector<1x64xi32>
    %355 = vector.broadcast %0 : vector<16x1xi32> to vector<16x64xi32>
    %356 = vector.broadcast %354 : vector<1x64xi32> to vector<16x64xi32>
    %357 = arith.cmpi sgt, %355, %356 : vector<16x64xi32>
    %cst_72 = arith.constant 0.000000e+00 : f32
    %358 = vector.broadcast %cst_72 : f32 to vector<16x64xf32>
    %359 = arith.select %357, %350, %358 : vector<16x64xi1>, vector<16x64xf32>
    %360 = arith.select %357, %351, %289 : vector<16x64xi1>, vector<16x64xf32>
    %361 = vector.extract_strided_slice %359 {offsets = [0, 0], sizes = [16, 32], strides = [1, 1]} : vector<16x64xf32> to vector<16x32xf32>
    %362 = arith.index_cast %c4_i32 : i32 to index
    %c0_73 = arith.constant 0 : index
    %c0_74 = arith.constant 0 : index
    %363 = vector.load %arg15[%362, %c0_73, %c0_74] : memref<8x16x64xf32, #tpu.memory_space<vmem>>, vector<1x16x32xf32>
    %364 = vector.shape_cast %363 : vector<1x16x32xf32> to vector<16x32xf32>
    %365 = vector.shape_cast %361 : vector<16x32xf32> to vector<1x16x32xf32>
    tpu.vector_store %arg15[%362, %c0_73, %c0_74], %365 {strides = array<i32>} : memref<8x16x64xf32, #tpu.memory_space<vmem>>, vector<1x16x32xf32>,
    %366 = vector.extract_strided_slice %359 {offsets = [0, 32], sizes = [16, 32], strides = [1, 1]} : vector<16x64xf32> to vector<16x32xf32>
    %367 = arith.index_cast %300 : i32 to index
    %c0_75 = arith.constant 0 : index
    %c32_76 = arith.constant 32 : index
    %368 = vector.load %arg15[%367, %c0_75, %c32_76] : memref<8x16x64xf32, #tpu.memory_space<vmem>>, vector<1x16x32xf32>
    %369 = vector.shape_cast %368 : vector<1x16x32xf32> to vector<16x32xf32>
    %370 = vector.shape_cast %366 : vector<16x32xf32> to vector<1x16x32xf32>
    tpu.vector_store %arg15[%367, %c0_75, %c32_76], %370 {strides = array<i32>} : memref<8x16x64xf32, #tpu.memory_space<vmem>>, vector<1x16x32xf32>,
    %c5_i32 = arith.constant 5 : i32
    %c7_i32_77 = arith.constant 7 : i32
    %371 = arith.subi %c7_i32_77, %c5_i32 : i32
    %372 = arith.index_cast %c5_i32 : i32 to index
    %c0_78 = arith.constant 0 : index
    %c0_79 = arith.constant 0 : index
    %373 = vector.load %arg14[%372, %c0_78, %c0_79] : memref<8x16x256xbf16, #tpu.memory_space<vmem>>, vector<1x16x256xbf16>
    %374 = vector.shape_cast %373 : vector<1x16x256xbf16> to vector<16x256xbf16>
    %375 = vector.extract_strided_slice %374 {offsets = [0, 0], sizes = [16, 128], strides = [1, 1]} : vector<16x256xbf16> to vector<16x128xbf16>
    %376 = arith.index_cast %371 : i32 to index
    %c0_80 = arith.constant 0 : index
    %c0_81 = arith.constant 0 : index
    %377 = vector.load %arg14[%376, %c0_80, %c0_81] : memref<8x16x256xbf16, #tpu.memory_space<vmem>>, vector<1x16x256xbf16>
    %378 = vector.shape_cast %377 : vector<1x16x256xbf16> to vector<16x256xbf16>
    %379 = vector.extract_strided_slice %378 {offsets = [0, 128], sizes = [16, 128], strides = [1, 1]} : vector<16x256xbf16> to vector<16x128xbf16>
    %380 = tpu.concatenate %375, %379 in 1 : vector<16x128xbf16>, vector<16x128xbf16> -> vector<16x256xbf16>
    %381 = arith.extf %380 : vector<16x256xbf16> to vector<16x256xf32>
    %382 = arith.truncf %359 : vector<16x64xf32> to vector<16x64xbf16>
    %cst_82 = arith.constant dense<0.000000e+00> : vector<16x256xf32>
    %383 = tpu.matmul %382, %15, %cst_82 {dimension_numbers = #tpu.dot_dimension_numbers<[1], [0], [0], [1], [0, 0, 1, 1], [], []>} : vector<16x64xbf16>, vector<64x256xbf16>, vector<16x256xf32> -> vector<16x256xf32>
    %384 = arith.addf %381, %383 : vector<16x256xf32>
    %385 = vector.extract_strided_slice %384 {offsets = [0, 0], sizes = [16, 128], strides = [1, 1]} : vector<16x256xf32> to vector<16x128xf32>
    %386 = vector.extract_strided_slice %360 {offsets = [0, 0], sizes = [16, 32], strides = [1, 1]} : vector<16x64xf32> to vector<16x32xf32>
    %387 = vector.extract_strided_slice %385 {offsets = [0, 0], sizes = [16, 96], strides = [1, 1]} : vector<16x128xf32> to vector<16x96xf32>
    %388 = arith.negf %387 : vector<16x96xf32>
    %389 = math.exp %388 : vector<16x96xf32>
    %cst_83 = arith.constant 1.000000e+00 : f32
    %390 = vector.broadcast %cst_83 : f32 to vector<16x96xf32>
    %391 = arith.addf %390, %389 : vector<16x96xf32>
    %392 = arith.divf %390, %391 : vector<16x96xf32>
    %393 = vector.extract_strided_slice %385 {offsets = [0, 96], sizes = [16, 32], strides = [1, 1]} : vector<16x128xf32> to vector<16x32xf32>
    %394 = math.tanh %393 : vector<16x32xf32>
    %395 = vector.extract_strided_slice %392 {offsets = [0, 32], sizes = [16, 32], strides = [1, 1]} : vector<16x96xf32> to vector<16x32xf32>
    %396 = arith.mulf %395, %386 : vector<16x32xf32>
    %397 = vector.extract_strided_slice %392 {offsets = [0, 0], sizes = [16, 32], strides = [1, 1]} : vector<16x96xf32> to vector<16x32xf32>
    %398 = arith.mulf %397, %394 : vector<16x32xf32>
    %399 = arith.addf %396, %398 : vector<16x32xf32>
    %400 = vector.extract_strided_slice %392 {offsets = [0, 64], sizes = [16, 32], strides = [1, 1]} : vector<16x96xf32> to vector<16x32xf32>
    %401 = math.tanh %399 : vector<16x32xf32>
    %402 = arith.mulf %400, %401 : vector<16x32xf32>
    %403 = vector.extract_strided_slice %384 {offsets = [0, 128], sizes = [16, 128], strides = [1, 1]} : vector<16x256xf32> to vector<16x128xf32>
    %404 = vector.extract_strided_slice %360 {offsets = [0, 32], sizes = [16, 32], strides = [1, 1]} : vector<16x64xf32> to vector<16x32xf32>
    %405 = vector.extract_strided_slice %403 {offsets = [0, 0], sizes = [16, 96], strides = [1, 1]} : vector<16x128xf32> to vector<16x96xf32>
    %406 = arith.negf %405 : vector<16x96xf32>
    %407 = math.exp %406 : vector<16x96xf32>
    %cst_84 = arith.constant 1.000000e+00 : f32
    %408 = vector.broadcast %cst_84 : f32 to vector<16x96xf32>
    %409 = arith.addf %408, %407 : vector<16x96xf32>
    %410 = arith.divf %408, %409 : vector<16x96xf32>
    %411 = vector.extract_strided_slice %403 {offsets = [0, 96], sizes = [16, 32], strides = [1, 1]} : vector<16x128xf32> to vector<16x32xf32>
    %412 = math.tanh %411 : vector<16x32xf32>
    %413 = vector.extract_strided_slice %410 {offsets = [0, 32], sizes = [16, 32], strides = [1, 1]} : vector<16x96xf32> to vector<16x32xf32>
    %414 = arith.mulf %413, %404 : vector<16x32xf32>
    %415 = vector.extract_strided_slice %410 {offsets = [0, 0], sizes = [16, 32], strides = [1, 1]} : vector<16x96xf32> to vector<16x32xf32>
    %416 = arith.mulf %415, %412 : vector<16x32xf32>
    %417 = arith.addf %414, %416 : vector<16x32xf32>
    %418 = vector.extract_strided_slice %410 {offsets = [0, 64], sizes = [16, 32], strides = [1, 1]} : vector<16x96xf32> to vector<16x32xf32>
    %419 = math.tanh %417 : vector<16x32xf32>
    %420 = arith.mulf %418, %419 : vector<16x32xf32>
    %421 = tpu.concatenate %402, %420 in 1 : vector<16x32xf32>, vector<16x32xf32> -> vector<16x64xf32>
    %422 = tpu.concatenate %399, %417 in 1 : vector<16x32xf32>, vector<16x32xf32> -> vector<16x64xf32>
    %423 = vector.broadcast %c5_i32 : i32 to vector<1x64xi32>
    %424 = vector.broadcast %371 : i32 to vector<1x64xi32>
    %425 = arith.select %13, %423, %424 : vector<1x64xi1>, vector<1x64xi32>
    %426 = vector.broadcast %0 : vector<16x1xi32> to vector<16x64xi32>
    %427 = vector.broadcast %425 : vector<1x64xi32> to vector<16x64xi32>
    %428 = arith.cmpi sgt, %426, %427 : vector<16x64xi32>
    %cst_85 = arith.constant 0.000000e+00 : f32
    %429 = vector.broadcast %cst_85 : f32 to vector<16x64xf32>
    %430 = arith.select %428, %421, %429 : vector<16x64xi1>, vector<16x64xf32>
    %431 = arith.select %428, %422, %360 : vector<16x64xi1>, vector<16x64xf32>
    %432 = vector.extract_strided_slice %430 {offsets = [0, 0], sizes = [16, 32], strides = [1, 1]} : vector<16x64xf32> to vector<16x32xf32>
    %433 = arith.index_cast %c5_i32 : i32 to index
    %c0_86 = arith.constant 0 : index
    %c0_87 = arith.constant 0 : index
    %434 = vector.load %arg15[%433, %c0_86, %c0_87] : memref<8x16x64xf32, #tpu.memory_space<vmem>>, vector<1x16x32xf32>
    %435 = vector.shape_cast %434 : vector<1x16x32xf32> to vector<16x32xf32>
    %436 = vector.shape_cast %432 : vector<16x32xf32> to vector<1x16x32xf32>
    tpu.vector_store %arg15[%433, %c0_86, %c0_87], %436 {strides = array<i32>} : memref<8x16x64xf32, #tpu.memory_space<vmem>>, vector<1x16x32xf32>,
    %437 = vector.extract_strided_slice %430 {offsets = [0, 32], sizes = [16, 32], strides = [1, 1]} : vector<16x64xf32> to vector<16x32xf32>
    %438 = arith.index_cast %371 : i32 to index
    %c0_88 = arith.constant 0 : index
    %c32_89 = arith.constant 32 : index
    %439 = vector.load %arg15[%438, %c0_88, %c32_89] : memref<8x16x64xf32, #tpu.memory_space<vmem>>, vector<1x16x32xf32>
    %440 = vector.shape_cast %439 : vector<1x16x32xf32> to vector<16x32xf32>
    %441 = vector.shape_cast %437 : vector<16x32xf32> to vector<1x16x32xf32>
    tpu.vector_store %arg15[%438, %c0_88, %c32_89], %441 {strides = array<i32>} : memref<8x16x64xf32, #tpu.memory_space<vmem>>, vector<1x16x32xf32>,
    %c6_i32 = arith.constant 6 : i32
    %c7_i32_90 = arith.constant 7 : i32
    %442 = arith.subi %c7_i32_90, %c6_i32 : i32
    %443 = arith.index_cast %c6_i32 : i32 to index
    %c0_91 = arith.constant 0 : index
    %c0_92 = arith.constant 0 : index
    %444 = vector.load %arg14[%443, %c0_91, %c0_92] : memref<8x16x256xbf16, #tpu.memory_space<vmem>>, vector<1x16x256xbf16>
    %445 = vector.shape_cast %444 : vector<1x16x256xbf16> to vector<16x256xbf16>
    %446 = vector.extract_strided_slice %445 {offsets = [0, 0], sizes = [16, 128], strides = [1, 1]} : vector<16x256xbf16> to vector<16x128xbf16>
    %447 = arith.index_cast %442 : i32 to index
    %c0_93 = arith.constant 0 : index
    %c0_94 = arith.constant 0 : index
    %448 = vector.load %arg14[%447, %c0_93, %c0_94] : memref<8x16x256xbf16, #tpu.memory_space<vmem>>, vector<1x16x256xbf16>
    %449 = vector.shape_cast %448 : vector<1x16x256xbf16> to vector<16x256xbf16>
    %450 = vector.extract_strided_slice %449 {offsets = [0, 128], sizes = [16, 128], strides = [1, 1]} : vector<16x256xbf16> to vector<16x128xbf16>
    %451 = tpu.concatenate %446, %450 in 1 : vector<16x128xbf16>, vector<16x128xbf16> -> vector<16x256xbf16>
    %452 = arith.extf %451 : vector<16x256xbf16> to vector<16x256xf32>
    %453 = arith.truncf %430 : vector<16x64xf32> to vector<16x64xbf16>
    %cst_95 = arith.constant dense<0.000000e+00> : vector<16x256xf32>
    %454 = tpu.matmul %453, %15, %cst_95 {dimension_numbers = #tpu.dot_dimension_numbers<[1], [0], [0], [1], [0, 0, 1, 1], [], []>} : vector<16x64xbf16>, vector<64x256xbf16>, vector<16x256xf32> -> vector<16x256xf32>
    %455 = arith.addf %452, %454 : vector<16x256xf32>
    %456 = vector.extract_strided_slice %455 {offsets = [0, 0], sizes = [16, 128], strides = [1, 1]} : vector<16x256xf32> to vector<16x128xf32>
    %457 = vector.extract_strided_slice %431 {offsets = [0, 0], sizes = [16, 32], strides = [1, 1]} : vector<16x64xf32> to vector<16x32xf32>
    %458 = vector.extract_strided_slice %456 {offsets = [0, 0], sizes = [16, 96], strides = [1, 1]} : vector<16x128xf32> to vector<16x96xf32>
    %459 = arith.negf %458 : vector<16x96xf32>
    %460 = math.exp %459 : vector<16x96xf32>
    %cst_96 = arith.constant 1.000000e+00 : f32
    %461 = vector.broadcast %cst_96 : f32 to vector<16x96xf32>
    %462 = arith.addf %461, %460 : vector<16x96xf32>
    %463 = arith.divf %461, %462 : vector<16x96xf32>
    %464 = vector.extract_strided_slice %456 {offsets = [0, 96], sizes = [16, 32], strides = [1, 1]} : vector<16x128xf32> to vector<16x32xf32>
    %465 = math.tanh %464 : vector<16x32xf32>
    %466 = vector.extract_strided_slice %463 {offsets = [0, 32], sizes = [16, 32], strides = [1, 1]} : vector<16x96xf32> to vector<16x32xf32>
    %467 = arith.mulf %466, %457 : vector<16x32xf32>
    %468 = vector.extract_strided_slice %463 {offsets = [0, 0], sizes = [16, 32], strides = [1, 1]} : vector<16x96xf32> to vector<16x32xf32>
    %469 = arith.mulf %468, %465 : vector<16x32xf32>
    %470 = arith.addf %467, %469 : vector<16x32xf32>
    %471 = vector.extract_strided_slice %463 {offsets = [0, 64], sizes = [16, 32], strides = [1, 1]} : vector<16x96xf32> to vector<16x32xf32>
    %472 = math.tanh %470 : vector<16x32xf32>
    %473 = arith.mulf %471, %472 : vector<16x32xf32>
    %474 = vector.extract_strided_slice %455 {offsets = [0, 128], sizes = [16, 128], strides = [1, 1]} : vector<16x256xf32> to vector<16x128xf32>
    %475 = vector.extract_strided_slice %431 {offsets = [0, 32], sizes = [16, 32], strides = [1, 1]} : vector<16x64xf32> to vector<16x32xf32>
    %476 = vector.extract_strided_slice %474 {offsets = [0, 0], sizes = [16, 96], strides = [1, 1]} : vector<16x128xf32> to vector<16x96xf32>
    %477 = arith.negf %476 : vector<16x96xf32>
    %478 = math.exp %477 : vector<16x96xf32>
    %cst_97 = arith.constant 1.000000e+00 : f32
    %479 = vector.broadcast %cst_97 : f32 to vector<16x96xf32>
    %480 = arith.addf %479, %478 : vector<16x96xf32>
    %481 = arith.divf %479, %480 : vector<16x96xf32>
    %482 = vector.extract_strided_slice %474 {offsets = [0, 96], sizes = [16, 32], strides = [1, 1]} : vector<16x128xf32> to vector<16x32xf32>
    %483 = math.tanh %482 : vector<16x32xf32>
    %484 = vector.extract_strided_slice %481 {offsets = [0, 32], sizes = [16, 32], strides = [1, 1]} : vector<16x96xf32> to vector<16x32xf32>
    %485 = arith.mulf %484, %475 : vector<16x32xf32>
    %486 = vector.extract_strided_slice %481 {offsets = [0, 0], sizes = [16, 32], strides = [1, 1]} : vector<16x96xf32> to vector<16x32xf32>
    %487 = arith.mulf %486, %483 : vector<16x32xf32>
    %488 = arith.addf %485, %487 : vector<16x32xf32>
    %489 = vector.extract_strided_slice %481 {offsets = [0, 64], sizes = [16, 32], strides = [1, 1]} : vector<16x96xf32> to vector<16x32xf32>
    %490 = math.tanh %488 : vector<16x32xf32>
    %491 = arith.mulf %489, %490 : vector<16x32xf32>
    %492 = tpu.concatenate %473, %491 in 1 : vector<16x32xf32>, vector<16x32xf32> -> vector<16x64xf32>
    %493 = tpu.concatenate %470, %488 in 1 : vector<16x32xf32>, vector<16x32xf32> -> vector<16x64xf32>
    %494 = vector.broadcast %c6_i32 : i32 to vector<1x64xi32>
    %495 = vector.broadcast %442 : i32 to vector<1x64xi32>
    %496 = arith.select %13, %494, %495 : vector<1x64xi1>, vector<1x64xi32>
    %497 = vector.broadcast %0 : vector<16x1xi32> to vector<16x64xi32>
    %498 = vector.broadcast %496 : vector<1x64xi32> to vector<16x64xi32>
    %499 = arith.cmpi sgt, %497, %498 : vector<16x64xi32>
    %cst_98 = arith.constant 0.000000e+00 : f32
    %500 = vector.broadcast %cst_98 : f32 to vector<16x64xf32>
    %501 = arith.select %499, %492, %500 : vector<16x64xi1>, vector<16x64xf32>
    %502 = arith.select %499, %493, %431 : vector<16x64xi1>, vector<16x64xf32>
    %503 = vector.extract_strided_slice %501 {offsets = [0, 0], sizes = [16, 32], strides = [1, 1]} : vector<16x64xf32> to vector<16x32xf32>
    %504 = arith.index_cast %c6_i32 : i32 to index
    %c0_99 = arith.constant 0 : index
    %c0_100 = arith.constant 0 : index
    %505 = vector.load %arg15[%504, %c0_99, %c0_100] : memref<8x16x64xf32, #tpu.memory_space<vmem>>, vector<1x16x32xf32>
    %506 = vector.shape_cast %505 : vector<1x16x32xf32> to vector<16x32xf32>
    %507 = vector.shape_cast %503 : vector<16x32xf32> to vector<1x16x32xf32>
    tpu.vector_store %arg15[%504, %c0_99, %c0_100], %507 {strides = array<i32>} : memref<8x16x64xf32, #tpu.memory_space<vmem>>, vector<1x16x32xf32>,
    %508 = vector.extract_strided_slice %501 {offsets = [0, 32], sizes = [16, 32], strides = [1, 1]} : vector<16x64xf32> to vector<16x32xf32>
    %509 = arith.index_cast %442 : i32 to index
    %c0_101 = arith.constant 0 : index
    %c32_102 = arith.constant 32 : index
    %510 = vector.load %arg15[%509, %c0_101, %c32_102] : memref<8x16x64xf32, #tpu.memory_space<vmem>>, vector<1x16x32xf32>
    %511 = vector.shape_cast %510 : vector<1x16x32xf32> to vector<16x32xf32>
    %512 = vector.shape_cast %508 : vector<16x32xf32> to vector<1x16x32xf32>
    tpu.vector_store %arg15[%509, %c0_101, %c32_102], %512 {strides = array<i32>} : memref<8x16x64xf32, #tpu.memory_space<vmem>>, vector<1x16x32xf32>,
    %c7_i32_103 = arith.constant 7 : i32
    %c7_i32_104 = arith.constant 7 : i32
    %513 = arith.subi %c7_i32_104, %c7_i32_103 : i32
    %514 = arith.index_cast %c7_i32_103 : i32 to index
    %c0_105 = arith.constant 0 : index
    %c0_106 = arith.constant 0 : index
    %515 = vector.load %arg14[%514, %c0_105, %c0_106] : memref<8x16x256xbf16, #tpu.memory_space<vmem>>, vector<1x16x256xbf16>
    %516 = vector.shape_cast %515 : vector<1x16x256xbf16> to vector<16x256xbf16>
    %517 = vector.extract_strided_slice %516 {offsets = [0, 0], sizes = [16, 128], strides = [1, 1]} : vector<16x256xbf16> to vector<16x128xbf16>
    %518 = arith.index_cast %513 : i32 to index
    %c0_107 = arith.constant 0 : index
    %c0_108 = arith.constant 0 : index
    %519 = vector.load %arg14[%518, %c0_107, %c0_108] : memref<8x16x256xbf16, #tpu.memory_space<vmem>>, vector<1x16x256xbf16>
    %520 = vector.shape_cast %519 : vector<1x16x256xbf16> to vector<16x256xbf16>
    %521 = vector.extract_strided_slice %520 {offsets = [0, 128], sizes = [16, 128], strides = [1, 1]} : vector<16x256xbf16> to vector<16x128xbf16>
    %522 = tpu.concatenate %517, %521 in 1 : vector<16x128xbf16>, vector<16x128xbf16> -> vector<16x256xbf16>
    %523 = arith.extf %522 : vector<16x256xbf16> to vector<16x256xf32>
    %524 = arith.truncf %501 : vector<16x64xf32> to vector<16x64xbf16>
    %cst_109 = arith.constant dense<0.000000e+00> : vector<16x256xf32>
    %525 = tpu.matmul %524, %15, %cst_109 {dimension_numbers = #tpu.dot_dimension_numbers<[1], [0], [0], [1], [0, 0, 1, 1], [], []>} : vector<16x64xbf16>, vector<64x256xbf16>, vector<16x256xf32> -> vector<16x256xf32>
    %526 = arith.addf %523, %525 : vector<16x256xf32>
    %527 = vector.extract_strided_slice %526 {offsets = [0, 0], sizes = [16, 128], strides = [1, 1]} : vector<16x256xf32> to vector<16x128xf32>
    %528 = vector.extract_strided_slice %502 {offsets = [0, 0], sizes = [16, 32], strides = [1, 1]} : vector<16x64xf32> to vector<16x32xf32>
    %529 = vector.extract_strided_slice %527 {offsets = [0, 0], sizes = [16, 96], strides = [1, 1]} : vector<16x128xf32> to vector<16x96xf32>
    %530 = arith.negf %529 : vector<16x96xf32>
    %531 = math.exp %530 : vector<16x96xf32>
    %cst_110 = arith.constant 1.000000e+00 : f32
    %532 = vector.broadcast %cst_110 : f32 to vector<16x96xf32>
    %533 = arith.addf %532, %531 : vector<16x96xf32>
    %534 = arith.divf %532, %533 : vector<16x96xf32>
    %535 = vector.extract_strided_slice %527 {offsets = [0, 96], sizes = [16, 32], strides = [1, 1]} : vector<16x128xf32> to vector<16x32xf32>
    %536 = math.tanh %535 : vector<16x32xf32>
    %537 = vector.extract_strided_slice %534 {offsets = [0, 32], sizes = [16, 32], strides = [1, 1]} : vector<16x96xf32> to vector<16x32xf32>
    %538 = arith.mulf %537, %528 : vector<16x32xf32>
    %539 = vector.extract_strided_slice %534 {offsets = [0, 0], sizes = [16, 32], strides = [1, 1]} : vector<16x96xf32> to vector<16x32xf32>
    %540 = arith.mulf %539, %536 : vector<16x32xf32>
    %541 = arith.addf %538, %540 : vector<16x32xf32>
    %542 = vector.extract_strided_slice %534 {offsets = [0, 64], sizes = [16, 32], strides = [1, 1]} : vector<16x96xf32> to vector<16x32xf32>
    %543 = math.tanh %541 : vector<16x32xf32>
    %544 = arith.mulf %542, %543 : vector<16x32xf32>
    %545 = vector.extract_strided_slice %526 {offsets = [0, 128], sizes = [16, 128], strides = [1, 1]} : vector<16x256xf32> to vector<16x128xf32>
    %546 = vector.extract_strided_slice %502 {offsets = [0, 32], sizes = [16, 32], strides = [1, 1]} : vector<16x64xf32> to vector<16x32xf32>
    %547 = vector.extract_strided_slice %545 {offsets = [0, 0], sizes = [16, 96], strides = [1, 1]} : vector<16x128xf32> to vector<16x96xf32>
    %548 = arith.negf %547 : vector<16x96xf32>
    %549 = math.exp %548 : vector<16x96xf32>
    %cst_111 = arith.constant 1.000000e+00 : f32
    %550 = vector.broadcast %cst_111 : f32 to vector<16x96xf32>
    %551 = arith.addf %550, %549 : vector<16x96xf32>
    %552 = arith.divf %550, %551 : vector<16x96xf32>
    %553 = vector.extract_strided_slice %545 {offsets = [0, 96], sizes = [16, 32], strides = [1, 1]} : vector<16x128xf32> to vector<16x32xf32>
    %554 = math.tanh %553 : vector<16x32xf32>
    %555 = vector.extract_strided_slice %552 {offsets = [0, 32], sizes = [16, 32], strides = [1, 1]} : vector<16x96xf32> to vector<16x32xf32>
    %556 = arith.mulf %555, %546 : vector<16x32xf32>
    %557 = vector.extract_strided_slice %552 {offsets = [0, 0], sizes = [16, 32], strides = [1, 1]} : vector<16x96xf32> to vector<16x32xf32>
    %558 = arith.mulf %557, %554 : vector<16x32xf32>
    %559 = arith.addf %556, %558 : vector<16x32xf32>
    %560 = vector.extract_strided_slice %552 {offsets = [0, 64], sizes = [16, 32], strides = [1, 1]} : vector<16x96xf32> to vector<16x32xf32>
    %561 = math.tanh %559 : vector<16x32xf32>
    %562 = arith.mulf %560, %561 : vector<16x32xf32>
    %563 = tpu.concatenate %544, %562 in 1 : vector<16x32xf32>, vector<16x32xf32> -> vector<16x64xf32>
    %564 = tpu.concatenate %541, %559 in 1 : vector<16x32xf32>, vector<16x32xf32> -> vector<16x64xf32>
    %565 = vector.broadcast %c7_i32_103 : i32 to vector<1x64xi32>
    %566 = vector.broadcast %513 : i32 to vector<1x64xi32>
    %567 = arith.select %13, %565, %566 : vector<1x64xi1>, vector<1x64xi32>
    %568 = vector.broadcast %0 : vector<16x1xi32> to vector<16x64xi32>
    %569 = vector.broadcast %567 : vector<1x64xi32> to vector<16x64xi32>
    %570 = arith.cmpi sgt, %568, %569 : vector<16x64xi32>
    %cst_112 = arith.constant 0.000000e+00 : f32
    %571 = vector.broadcast %cst_112 : f32 to vector<16x64xf32>
    %572 = arith.select %570, %563, %571 : vector<16x64xi1>, vector<16x64xf32>
    %573 = arith.select %570, %564, %502 : vector<16x64xi1>, vector<16x64xf32>
    %574 = vector.extract_strided_slice %572 {offsets = [0, 0], sizes = [16, 32], strides = [1, 1]} : vector<16x64xf32> to vector<16x32xf32>
    %575 = arith.index_cast %c7_i32_103 : i32 to index
    %c0_113 = arith.constant 0 : index
    %c0_114 = arith.constant 0 : index
    %576 = vector.load %arg15[%575, %c0_113, %c0_114] : memref<8x16x64xf32, #tpu.memory_space<vmem>>, vector<1x16x32xf32>
    %577 = vector.shape_cast %576 : vector<1x16x32xf32> to vector<16x32xf32>
    %578 = vector.shape_cast %574 : vector<16x32xf32> to vector<1x16x32xf32>
    tpu.vector_store %arg15[%575, %c0_113, %c0_114], %578 {strides = array<i32>} : memref<8x16x64xf32, #tpu.memory_space<vmem>>, vector<1x16x32xf32>,
    %579 = vector.extract_strided_slice %572 {offsets = [0, 32], sizes = [16, 32], strides = [1, 1]} : vector<16x64xf32> to vector<16x32xf32>
    %580 = arith.index_cast %513 : i32 to index
    %c0_115 = arith.constant 0 : index
    %c32_116 = arith.constant 32 : index
    %581 = vector.load %arg15[%580, %c0_115, %c32_116] : memref<8x16x64xf32, #tpu.memory_space<vmem>>, vector<1x16x32xf32>
    %582 = vector.shape_cast %581 : vector<1x16x32xf32> to vector<16x32xf32>
    %583 = vector.shape_cast %579 : vector<16x32xf32> to vector<1x16x32xf32>
    tpu.vector_store %arg15[%580, %c0_115, %c32_116], %583 {strides = array<i32>} : memref<8x16x64xf32, #tpu.memory_space<vmem>>, vector<1x16x32xf32>,
    %c8_i32 = arith.constant 8 : i32
    %c0_117 = arith.constant 0 : index
    %c0_118 = arith.constant 0 : index
    %c0_119 = arith.constant 0 : index
    %584 = vector.load %arg15[%c0_117, %c0_118, %c0_119] : memref<8x16x64xf32, #tpu.memory_space<vmem>>, vector<8x16x64xf32>
    %585 = arith.truncf %584 : vector<8x16x64xf32> to vector<8x16x64xbf16>
    %586 = vector.shape_cast %585 : vector<8x16x64xbf16> to vector<128x64xbf16>
    %c0_120 = arith.constant 0 : index
    %c0_121 = arith.constant 0 : index
    %587 = vector.load %arg6[%c0_120, %c0_121] : memref<64x256xbf16, #tpu.memory_space<vmem>>, vector<64x256xbf16>
    %cst_122 = arith.constant dense<0.000000e+00> : vector<128x256xf32>
    %588 = tpu.matmul %586, %587, %cst_122 {dimension_numbers = #tpu.dot_dimension_numbers<[1], [0], [0], [1], [0, 0, 1, 1], [], []>} : vector<128x64xbf16>, vector<64x256xbf16>, vector<128x256xf32> -> vector<128x256xf32>
    %c0_123 = arith.constant 0 : index
    %c0_124 = arith.constant 0 : index
    %589 = vector.load %arg7[%c0_123, %c0_124] : memref<1x256xf32, #tpu.memory_space<vmem>>, vector<1x256xf32>
    %590 = vector.broadcast %589 : vector<1x256xf32> to vector<128x256xf32>
    %591 = arith.addf %588, %590 : vector<128x256xf32>
    %592 = arith.truncf %591 : vector<128x256xf32> to vector<128x256xbf16>
    %593 = vector.shape_cast %592 : vector<128x256xbf16> to vector<8x16x256xbf16>
    %c0_125 = arith.constant 0 : index
    %c0_126 = arith.constant 0 : index
    %c0_127 = arith.constant 0 : index
    %594 = vector.load %arg14[%c0_125, %c0_126, %c0_127] : memref<8x16x256xbf16, #tpu.memory_space<vmem>>, vector<8x16x256xbf16>
    tpu.vector_store %arg14[%c0_125, %c0_126, %c0_127], %593 {strides = array<i32>} : memref<8x16x256xbf16, #tpu.memory_space<vmem>>, vector<8x16x256xbf16>,
    %c0_128 = arith.constant 0 : index
    %c0_129 = arith.constant 0 : index
    %595 = vector.load %arg8[%c0_128, %c0_129] : memref<64x256xbf16, #tpu.memory_space<vmem>>, vector<64x256xbf16>
    %cst_130 = arith.constant 0xFF800000 : f32
    %596 = vector.broadcast %cst_130 : f32 to vector<16x64xf32>
    %c0_i32_131 = arith.constant 0 : i32
    %c7_i32_132 = arith.constant 7 : i32
    %597 = arith.subi %c7_i32_132, %c0_i32_131 : i32
    %598 = arith.index_cast %c0_i32_131 : i32 to index
    %c0_133 = arith.constant 0 : index
    %c0_134 = arith.constant 0 : index
    %599 = vector.load %arg14[%598, %c0_133, %c0_134] : memref<8x16x256xbf16, #tpu.memory_space<vmem>>, vector<1x16x256xbf16>
    %600 = vector.shape_cast %599 : vector<1x16x256xbf16> to vector<16x256xbf16>
    %601 = vector.extract_strided_slice %600 {offsets = [0, 0], sizes = [16, 128], strides = [1, 1]} : vector<16x256xbf16> to vector<16x128xbf16>
    %602 = arith.index_cast %597 : i32 to index
    %c0_135 = arith.constant 0 : index
    %c0_136 = arith.constant 0 : index
    %603 = vector.load %arg14[%602, %c0_135, %c0_136] : memref<8x16x256xbf16, #tpu.memory_space<vmem>>, vector<1x16x256xbf16>
    %604 = vector.shape_cast %603 : vector<1x16x256xbf16> to vector<16x256xbf16>
    %605 = vector.extract_strided_slice %604 {offsets = [0, 128], sizes = [16, 128], strides = [1, 1]} : vector<16x256xbf16> to vector<16x128xbf16>
    %606 = tpu.concatenate %601, %605 in 1 : vector<16x128xbf16>, vector<16x128xbf16> -> vector<16x256xbf16>
    %607 = arith.extf %606 : vector<16x256xbf16> to vector<16x256xf32>
    %608 = arith.truncf %14 : vector<16x64xf32> to vector<16x64xbf16>
    %cst_137 = arith.constant dense<0.000000e+00> : vector<16x256xf32>
    %609 = tpu.matmul %608, %595, %cst_137 {dimension_numbers = #tpu.dot_dimension_numbers<[1], [0], [0], [1], [0, 0, 1, 1], [], []>} : vector<16x64xbf16>, vector<64x256xbf16>, vector<16x256xf32> -> vector<16x256xf32>
    %610 = arith.addf %607, %609 : vector<16x256xf32>
    %611 = vector.extract_strided_slice %610 {offsets = [0, 0], sizes = [16, 128], strides = [1, 1]} : vector<16x256xf32> to vector<16x128xf32>
    %612 = vector.extract_strided_slice %14 {offsets = [0, 0], sizes = [16, 32], strides = [1, 1]} : vector<16x64xf32> to vector<16x32xf32>
    %613 = vector.extract_strided_slice %611 {offsets = [0, 0], sizes = [16, 96], strides = [1, 1]} : vector<16x128xf32> to vector<16x96xf32>
    %614 = arith.negf %613 : vector<16x96xf32>
    %615 = math.exp %614 : vector<16x96xf32>
    %cst_138 = arith.constant 1.000000e+00 : f32
    %616 = vector.broadcast %cst_138 : f32 to vector<16x96xf32>
    %617 = arith.addf %616, %615 : vector<16x96xf32>
    %618 = arith.divf %616, %617 : vector<16x96xf32>
    %619 = vector.extract_strided_slice %611 {offsets = [0, 96], sizes = [16, 32], strides = [1, 1]} : vector<16x128xf32> to vector<16x32xf32>
    %620 = math.tanh %619 : vector<16x32xf32>
    %621 = vector.extract_strided_slice %618 {offsets = [0, 32], sizes = [16, 32], strides = [1, 1]} : vector<16x96xf32> to vector<16x32xf32>
    %622 = arith.mulf %621, %612 : vector<16x32xf32>
    %623 = vector.extract_strided_slice %618 {offsets = [0, 0], sizes = [16, 32], strides = [1, 1]} : vector<16x96xf32> to vector<16x32xf32>
    %624 = arith.mulf %623, %620 : vector<16x32xf32>
    %625 = arith.addf %622, %624 : vector<16x32xf32>
    %626 = vector.extract_strided_slice %618 {offsets = [0, 64], sizes = [16, 32], strides = [1, 1]} : vector<16x96xf32> to vector<16x32xf32>
    %627 = math.tanh %625 : vector<16x32xf32>
    %628 = arith.mulf %626, %627 : vector<16x32xf32>
    %629 = vector.extract_strided_slice %610 {offsets = [0, 128], sizes = [16, 128], strides = [1, 1]} : vector<16x256xf32> to vector<16x128xf32>
    %630 = vector.extract_strided_slice %14 {offsets = [0, 32], sizes = [16, 32], strides = [1, 1]} : vector<16x64xf32> to vector<16x32xf32>
    %631 = vector.extract_strided_slice %629 {offsets = [0, 0], sizes = [16, 96], strides = [1, 1]} : vector<16x128xf32> to vector<16x96xf32>
    %632 = arith.negf %631 : vector<16x96xf32>
    %633 = math.exp %632 : vector<16x96xf32>
    %cst_139 = arith.constant 1.000000e+00 : f32
    %634 = vector.broadcast %cst_139 : f32 to vector<16x96xf32>
    %635 = arith.addf %634, %633 : vector<16x96xf32>
    %636 = arith.divf %634, %635 : vector<16x96xf32>
    %637 = vector.extract_strided_slice %629 {offsets = [0, 96], sizes = [16, 32], strides = [1, 1]} : vector<16x128xf32> to vector<16x32xf32>
    %638 = math.tanh %637 : vector<16x32xf32>
    %639 = vector.extract_strided_slice %636 {offsets = [0, 32], sizes = [16, 32], strides = [1, 1]} : vector<16x96xf32> to vector<16x32xf32>
    %640 = arith.mulf %639, %630 : vector<16x32xf32>
    %641 = vector.extract_strided_slice %636 {offsets = [0, 0], sizes = [16, 32], strides = [1, 1]} : vector<16x96xf32> to vector<16x32xf32>
    %642 = arith.mulf %641, %638 : vector<16x32xf32>
    %643 = arith.addf %640, %642 : vector<16x32xf32>
    %644 = vector.extract_strided_slice %636 {offsets = [0, 64], sizes = [16, 32], strides = [1, 1]} : vector<16x96xf32> to vector<16x32xf32>
    %645 = math.tanh %643 : vector<16x32xf32>
    %646 = arith.mulf %644, %645 : vector<16x32xf32>
    %647 = tpu.concatenate %628, %646 in 1 : vector<16x32xf32>, vector<16x32xf32> -> vector<16x64xf32>
    %648 = tpu.concatenate %625, %643 in 1 : vector<16x32xf32>, vector<16x32xf32> -> vector<16x64xf32>
    %649 = vector.broadcast %c0_i32_131 : i32 to vector<1x64xi32>
    %650 = vector.broadcast %597 : i32 to vector<1x64xi32>
    %651 = arith.select %13, %649, %650 : vector<1x64xi1>, vector<1x64xi32>
    %652 = vector.broadcast %0 : vector<16x1xi32> to vector<16x64xi32>
    %653 = vector.broadcast %651 : vector<1x64xi32> to vector<16x64xi32>
    %654 = arith.cmpi sgt, %652, %653 : vector<16x64xi32>
    %cst_140 = arith.constant 0.000000e+00 : f32
    %655 = vector.broadcast %cst_140 : f32 to vector<16x64xf32>
    %656 = arith.select %654, %647, %655 : vector<16x64xi1>, vector<16x64xf32>
    %657 = arith.select %654, %648, %14 : vector<16x64xi1>, vector<16x64xf32>
    %658 = arith.addf %14, %656 : vector<16x64xf32>
    %659 = arith.maximumf %596, %656 : vector<16x64xf32>
    %c1_i32_141 = arith.constant 1 : i32
    %c7_i32_142 = arith.constant 7 : i32
    %660 = arith.subi %c7_i32_142, %c1_i32_141 : i32
    %661 = arith.index_cast %c1_i32_141 : i32 to index
    %c0_143 = arith.constant 0 : index
    %c0_144 = arith.constant 0 : index
    %662 = vector.load %arg14[%661, %c0_143, %c0_144] : memref<8x16x256xbf16, #tpu.memory_space<vmem>>, vector<1x16x256xbf16>
    %663 = vector.shape_cast %662 : vector<1x16x256xbf16> to vector<16x256xbf16>
    %664 = vector.extract_strided_slice %663 {offsets = [0, 0], sizes = [16, 128], strides = [1, 1]} : vector<16x256xbf16> to vector<16x128xbf16>
    %665 = arith.index_cast %660 : i32 to index
    %c0_145 = arith.constant 0 : index
    %c0_146 = arith.constant 0 : index
    %666 = vector.load %arg14[%665, %c0_145, %c0_146] : memref<8x16x256xbf16, #tpu.memory_space<vmem>>, vector<1x16x256xbf16>
    %667 = vector.shape_cast %666 : vector<1x16x256xbf16> to vector<16x256xbf16>
    %668 = vector.extract_strided_slice %667 {offsets = [0, 128], sizes = [16, 128], strides = [1, 1]} : vector<16x256xbf16> to vector<16x128xbf16>
    %669 = tpu.concatenate %664, %668 in 1 : vector<16x128xbf16>, vector<16x128xbf16> -> vector<16x256xbf16>
    %670 = arith.extf %669 : vector<16x256xbf16> to vector<16x256xf32>
    %671 = arith.truncf %656 : vector<16x64xf32> to vector<16x64xbf16>
    %cst_147 = arith.constant dense<0.000000e+00> : vector<16x256xf32>
    %672 = tpu.matmul %671, %595, %cst_147 {dimension_numbers = #tpu.dot_dimension_numbers<[1], [0], [0], [1], [0, 0, 1, 1], [], []>} : vector<16x64xbf16>, vector<64x256xbf16>, vector<16x256xf32> -> vector<16x256xf32>
    %673 = arith.addf %670, %672 : vector<16x256xf32>
    %674 = vector.extract_strided_slice %673 {offsets = [0, 0], sizes = [16, 128], strides = [1, 1]} : vector<16x256xf32> to vector<16x128xf32>
    %675 = vector.extract_strided_slice %657 {offsets = [0, 0], sizes = [16, 32], strides = [1, 1]} : vector<16x64xf32> to vector<16x32xf32>
    %676 = vector.extract_strided_slice %674 {offsets = [0, 0], sizes = [16, 96], strides = [1, 1]} : vector<16x128xf32> to vector<16x96xf32>
    %677 = arith.negf %676 : vector<16x96xf32>
    %678 = math.exp %677 : vector<16x96xf32>
    %cst_148 = arith.constant 1.000000e+00 : f32
    %679 = vector.broadcast %cst_148 : f32 to vector<16x96xf32>
    %680 = arith.addf %679, %678 : vector<16x96xf32>
    %681 = arith.divf %679, %680 : vector<16x96xf32>
    %682 = vector.extract_strided_slice %674 {offsets = [0, 96], sizes = [16, 32], strides = [1, 1]} : vector<16x128xf32> to vector<16x32xf32>
    %683 = math.tanh %682 : vector<16x32xf32>
    %684 = vector.extract_strided_slice %681 {offsets = [0, 32], sizes = [16, 32], strides = [1, 1]} : vector<16x96xf32> to vector<16x32xf32>
    %685 = arith.mulf %684, %675 : vector<16x32xf32>
    %686 = vector.extract_strided_slice %681 {offsets = [0, 0], sizes = [16, 32], strides = [1, 1]} : vector<16x96xf32> to vector<16x32xf32>
    %687 = arith.mulf %686, %683 : vector<16x32xf32>
    %688 = arith.addf %685, %687 : vector<16x32xf32>
    %689 = vector.extract_strided_slice %681 {offsets = [0, 64], sizes = [16, 32], strides = [1, 1]} : vector<16x96xf32> to vector<16x32xf32>
    %690 = math.tanh %688 : vector<16x32xf32>
    %691 = arith.mulf %689, %690 : vector<16x32xf32>
    %692 = vector.extract_strided_slice %673 {offsets = [0, 128], sizes = [16, 128], strides = [1, 1]} : vector<16x256xf32> to vector<16x128xf32>
    %693 = vector.extract_strided_slice %657 {offsets = [0, 32], sizes = [16, 32], strides = [1, 1]} : vector<16x64xf32> to vector<16x32xf32>
    %694 = vector.extract_strided_slice %692 {offsets = [0, 0], sizes = [16, 96], strides = [1, 1]} : vector<16x128xf32> to vector<16x96xf32>
    %695 = arith.negf %694 : vector<16x96xf32>
    %696 = math.exp %695 : vector<16x96xf32>
    %cst_149 = arith.constant 1.000000e+00 : f32
    %697 = vector.broadcast %cst_149 : f32 to vector<16x96xf32>
    %698 = arith.addf %697, %696 : vector<16x96xf32>
    %699 = arith.divf %697, %698 : vector<16x96xf32>
    %700 = vector.extract_strided_slice %692 {offsets = [0, 96], sizes = [16, 32], strides = [1, 1]} : vector<16x128xf32> to vector<16x32xf32>
    %701 = math.tanh %700 : vector<16x32xf32>
    %702 = vector.extract_strided_slice %699 {offsets = [0, 32], sizes = [16, 32], strides = [1, 1]} : vector<16x96xf32> to vector<16x32xf32>
    %703 = arith.mulf %702, %693 : vector<16x32xf32>
    %704 = vector.extract_strided_slice %699 {offsets = [0, 0], sizes = [16, 32], strides = [1, 1]} : vector<16x96xf32> to vector<16x32xf32>
    %705 = arith.mulf %704, %701 : vector<16x32xf32>
    %706 = arith.addf %703, %705 : vector<16x32xf32>
    %707 = vector.extract_strided_slice %699 {offsets = [0, 64], sizes = [16, 32], strides = [1, 1]} : vector<16x96xf32> to vector<16x32xf32>
    %708 = math.tanh %706 : vector<16x32xf32>
    %709 = arith.mulf %707, %708 : vector<16x32xf32>
    %710 = tpu.concatenate %691, %709 in 1 : vector<16x32xf32>, vector<16x32xf32> -> vector<16x64xf32>
    %711 = tpu.concatenate %688, %706 in 1 : vector<16x32xf32>, vector<16x32xf32> -> vector<16x64xf32>
    %712 = vector.broadcast %c1_i32_141 : i32 to vector<1x64xi32>
    %713 = vector.broadcast %660 : i32 to vector<1x64xi32>
    %714 = arith.select %13, %712, %713 : vector<1x64xi1>, vector<1x64xi32>
    %715 = vector.broadcast %0 : vector<16x1xi32> to vector<16x64xi32>
    %716 = vector.broadcast %714 : vector<1x64xi32> to vector<16x64xi32>
    %717 = arith.cmpi sgt, %715, %716 : vector<16x64xi32>
    %cst_150 = arith.constant 0.000000e+00 : f32
    %718 = vector.broadcast %cst_150 : f32 to vector<16x64xf32>
    %719 = arith.select %717, %710, %718 : vector<16x64xi1>, vector<16x64xf32>
    %720 = arith.select %717, %711, %657 : vector<16x64xi1>, vector<16x64xf32>
    %721 = arith.addf %658, %719 : vector<16x64xf32>
    %722 = arith.maximumf %659, %719 : vector<16x64xf32>
    %c2_i32_151 = arith.constant 2 : i32
    %c7_i32_152 = arith.constant 7 : i32
    %723 = arith.subi %c7_i32_152, %c2_i32_151 : i32
    %724 = arith.index_cast %c2_i32_151 : i32 to index
    %c0_153 = arith.constant 0 : index
    %c0_154 = arith.constant 0 : index
    %725 = vector.load %arg14[%724, %c0_153, %c0_154] : memref<8x16x256xbf16, #tpu.memory_space<vmem>>, vector<1x16x256xbf16>
    %726 = vector.shape_cast %725 : vector<1x16x256xbf16> to vector<16x256xbf16>
    %727 = vector.extract_strided_slice %726 {offsets = [0, 0], sizes = [16, 128], strides = [1, 1]} : vector<16x256xbf16> to vector<16x128xbf16>
    %728 = arith.index_cast %723 : i32 to index
    %c0_155 = arith.constant 0 : index
    %c0_156 = arith.constant 0 : index
    %729 = vector.load %arg14[%728, %c0_155, %c0_156] : memref<8x16x256xbf16, #tpu.memory_space<vmem>>, vector<1x16x256xbf16>
    %730 = vector.shape_cast %729 : vector<1x16x256xbf16> to vector<16x256xbf16>
    %731 = vector.extract_strided_slice %730 {offsets = [0, 128], sizes = [16, 128], strides = [1, 1]} : vector<16x256xbf16> to vector<16x128xbf16>
    %732 = tpu.concatenate %727, %731 in 1 : vector<16x128xbf16>, vector<16x128xbf16> -> vector<16x256xbf16>
    %733 = arith.extf %732 : vector<16x256xbf16> to vector<16x256xf32>
    %734 = arith.truncf %719 : vector<16x64xf32> to vector<16x64xbf16>
    %cst_157 = arith.constant dense<0.000000e+00> : vector<16x256xf32>
    %735 = tpu.matmul %734, %595, %cst_157 {dimension_numbers = #tpu.dot_dimension_numbers<[1], [0], [0], [1], [0, 0, 1, 1], [], []>} : vector<16x64xbf16>, vector<64x256xbf16>, vector<16x256xf32> -> vector<16x256xf32>
    %736 = arith.addf %733, %735 : vector<16x256xf32>
    %737 = vector.extract_strided_slice %736 {offsets = [0, 0], sizes = [16, 128], strides = [1, 1]} : vector<16x256xf32> to vector<16x128xf32>
    %738 = vector.extract_strided_slice %720 {offsets = [0, 0], sizes = [16, 32], strides = [1, 1]} : vector<16x64xf32> to vector<16x32xf32>
    %739 = vector.extract_strided_slice %737 {offsets = [0, 0], sizes = [16, 96], strides = [1, 1]} : vector<16x128xf32> to vector<16x96xf32>
    %740 = arith.negf %739 : vector<16x96xf32>
    %741 = math.exp %740 : vector<16x96xf32>
    %cst_158 = arith.constant 1.000000e+00 : f32
    %742 = vector.broadcast %cst_158 : f32 to vector<16x96xf32>
    %743 = arith.addf %742, %741 : vector<16x96xf32>
    %744 = arith.divf %742, %743 : vector<16x96xf32>
    %745 = vector.extract_strided_slice %737 {offsets = [0, 96], sizes = [16, 32], strides = [1, 1]} : vector<16x128xf32> to vector<16x32xf32>
    %746 = math.tanh %745 : vector<16x32xf32>
    %747 = vector.extract_strided_slice %744 {offsets = [0, 32], sizes = [16, 32], strides = [1, 1]} : vector<16x96xf32> to vector<16x32xf32>
    %748 = arith.mulf %747, %738 : vector<16x32xf32>
    %749 = vector.extract_strided_slice %744 {offsets = [0, 0], sizes = [16, 32], strides = [1, 1]} : vector<16x96xf32> to vector<16x32xf32>
    %750 = arith.mulf %749, %746 : vector<16x32xf32>
    %751 = arith.addf %748, %750 : vector<16x32xf32>
    %752 = vector.extract_strided_slice %744 {offsets = [0, 64], sizes = [16, 32], strides = [1, 1]} : vector<16x96xf32> to vector<16x32xf32>
    %753 = math.tanh %751 : vector<16x32xf32>
    %754 = arith.mulf %752, %753 : vector<16x32xf32>
    %755 = vector.extract_strided_slice %736 {offsets = [0, 128], sizes = [16, 128], strides = [1, 1]} : vector<16x256xf32> to vector<16x128xf32>
    %756 = vector.extract_strided_slice %720 {offsets = [0, 32], sizes = [16, 32], strides = [1, 1]} : vector<16x64xf32> to vector<16x32xf32>
    %757 = vector.extract_strided_slice %755 {offsets = [0, 0], sizes = [16, 96], strides = [1, 1]} : vector<16x128xf32> to vector<16x96xf32>
    %758 = arith.negf %757 : vector<16x96xf32>
    %759 = math.exp %758 : vector<16x96xf32>
    %cst_159 = arith.constant 1.000000e+00 : f32
    %760 = vector.broadcast %cst_159 : f32 to vector<16x96xf32>
    %761 = arith.addf %760, %759 : vector<16x96xf32>
    %762 = arith.divf %760, %761 : vector<16x96xf32>
    %763 = vector.extract_strided_slice %755 {offsets = [0, 96], sizes = [16, 32], strides = [1, 1]} : vector<16x128xf32> to vector<16x32xf32>
    %764 = math.tanh %763 : vector<16x32xf32>
    %765 = vector.extract_strided_slice %762 {offsets = [0, 32], sizes = [16, 32], strides = [1, 1]} : vector<16x96xf32> to vector<16x32xf32>
    %766 = arith.mulf %765, %756 : vector<16x32xf32>
    %767 = vector.extract_strided_slice %762 {offsets = [0, 0], sizes = [16, 32], strides = [1, 1]} : vector<16x96xf32> to vector<16x32xf32>
    %768 = arith.mulf %767, %764 : vector<16x32xf32>
    %769 = arith.addf %766, %768 : vector<16x32xf32>
    %770 = vector.extract_strided_slice %762 {offsets = [0, 64], sizes = [16, 32], strides = [1, 1]} : vector<16x96xf32> to vector<16x32xf32>
    %771 = math.tanh %769 : vector<16x32xf32>
    %772 = arith.mulf %770, %771 : vector<16x32xf32>
    %773 = tpu.concatenate %754, %772 in 1 : vector<16x32xf32>, vector<16x32xf32> -> vector<16x64xf32>
    %774 = tpu.concatenate %751, %769 in 1 : vector<16x32xf32>, vector<16x32xf32> -> vector<16x64xf32>
    %775 = vector.broadcast %c2_i32_151 : i32 to vector<1x64xi32>
    %776 = vector.broadcast %723 : i32 to vector<1x64xi32>
    %777 = arith.select %13, %775, %776 : vector<1x64xi1>, vector<1x64xi32>
    %778 = vector.broadcast %0 : vector<16x1xi32> to vector<16x64xi32>
    %779 = vector.broadcast %777 : vector<1x64xi32> to vector<16x64xi32>
    %780 = arith.cmpi sgt, %778, %779 : vector<16x64xi32>
    %cst_160 = arith.constant 0.000000e+00 : f32
    %781 = vector.broadcast %cst_160 : f32 to vector<16x64xf32>
    %782 = arith.select %780, %773, %781 : vector<16x64xi1>, vector<16x64xf32>
    %783 = arith.select %780, %774, %720 : vector<16x64xi1>, vector<16x64xf32>
    %784 = arith.addf %721, %782 : vector<16x64xf32>
    %785 = arith.maximumf %722, %782 : vector<16x64xf32>
    %c3_i32_161 = arith.constant 3 : i32
    %c7_i32_162 = arith.constant 7 : i32
    %786 = arith.subi %c7_i32_162, %c3_i32_161 : i32
    %787 = arith.index_cast %c3_i32_161 : i32 to index
    %c0_163 = arith.constant 0 : index
    %c0_164 = arith.constant 0 : index
    %788 = vector.load %arg14[%787, %c0_163, %c0_164] : memref<8x16x256xbf16, #tpu.memory_space<vmem>>, vector<1x16x256xbf16>
    %789 = vector.shape_cast %788 : vector<1x16x256xbf16> to vector<16x256xbf16>
    %790 = vector.extract_strided_slice %789 {offsets = [0, 0], sizes = [16, 128], strides = [1, 1]} : vector<16x256xbf16> to vector<16x128xbf16>
    %791 = arith.index_cast %786 : i32 to index
    %c0_165 = arith.constant 0 : index
    %c0_166 = arith.constant 0 : index
    %792 = vector.load %arg14[%791, %c0_165, %c0_166] : memref<8x16x256xbf16, #tpu.memory_space<vmem>>, vector<1x16x256xbf16>
    %793 = vector.shape_cast %792 : vector<1x16x256xbf16> to vector<16x256xbf16>
    %794 = vector.extract_strided_slice %793 {offsets = [0, 128], sizes = [16, 128], strides = [1, 1]} : vector<16x256xbf16> to vector<16x128xbf16>
    %795 = tpu.concatenate %790, %794 in 1 : vector<16x128xbf16>, vector<16x128xbf16> -> vector<16x256xbf16>
    %796 = arith.extf %795 : vector<16x256xbf16> to vector<16x256xf32>
    %797 = arith.truncf %782 : vector<16x64xf32> to vector<16x64xbf16>
    %cst_167 = arith.constant dense<0.000000e+00> : vector<16x256xf32>
    %798 = tpu.matmul %797, %595, %cst_167 {dimension_numbers = #tpu.dot_dimension_numbers<[1], [0], [0], [1], [0, 0, 1, 1], [], []>} : vector<16x64xbf16>, vector<64x256xbf16>, vector<16x256xf32> -> vector<16x256xf32>
    %799 = arith.addf %796, %798 : vector<16x256xf32>
    %800 = vector.extract_strided_slice %799 {offsets = [0, 0], sizes = [16, 128], strides = [1, 1]} : vector<16x256xf32> to vector<16x128xf32>
    %801 = vector.extract_strided_slice %783 {offsets = [0, 0], sizes = [16, 32], strides = [1, 1]} : vector<16x64xf32> to vector<16x32xf32>
    %802 = vector.extract_strided_slice %800 {offsets = [0, 0], sizes = [16, 96], strides = [1, 1]} : vector<16x128xf32> to vector<16x96xf32>
    %803 = arith.negf %802 : vector<16x96xf32>
    %804 = math.exp %803 : vector<16x96xf32>
    %cst_168 = arith.constant 1.000000e+00 : f32
    %805 = vector.broadcast %cst_168 : f32 to vector<16x96xf32>
    %806 = arith.addf %805, %804 : vector<16x96xf32>
    %807 = arith.divf %805, %806 : vector<16x96xf32>
    %808 = vector.extract_strided_slice %800 {offsets = [0, 96], sizes = [16, 32], strides = [1, 1]} : vector<16x128xf32> to vector<16x32xf32>
    %809 = math.tanh %808 : vector<16x32xf32>
    %810 = vector.extract_strided_slice %807 {offsets = [0, 32], sizes = [16, 32], strides = [1, 1]} : vector<16x96xf32> to vector<16x32xf32>
    %811 = arith.mulf %810, %801 : vector<16x32xf32>
    %812 = vector.extract_strided_slice %807 {offsets = [0, 0], sizes = [16, 32], strides = [1, 1]} : vector<16x96xf32> to vector<16x32xf32>
    %813 = arith.mulf %812, %809 : vector<16x32xf32>
    %814 = arith.addf %811, %813 : vector<16x32xf32>
    %815 = vector.extract_strided_slice %807 {offsets = [0, 64], sizes = [16, 32], strides = [1, 1]} : vector<16x96xf32> to vector<16x32xf32>
    %816 = math.tanh %814 : vector<16x32xf32>
    %817 = arith.mulf %815, %816 : vector<16x32xf32>
    %818 = vector.extract_strided_slice %799 {offsets = [0, 128], sizes = [16, 128], strides = [1, 1]} : vector<16x256xf32> to vector<16x128xf32>
    %819 = vector.extract_strided_slice %783 {offsets = [0, 32], sizes = [16, 32], strides = [1, 1]} : vector<16x64xf32> to vector<16x32xf32>
    %820 = vector.extract_strided_slice %818 {offsets = [0, 0], sizes = [16, 96], strides = [1, 1]} : vector<16x128xf32> to vector<16x96xf32>
    %821 = arith.negf %820 : vector<16x96xf32>
    %822 = math.exp %821 : vector<16x96xf32>
    %cst_169 = arith.constant 1.000000e+00 : f32
    %823 = vector.broadcast %cst_169 : f32 to vector<16x96xf32>
    %824 = arith.addf %823, %822 : vector<16x96xf32>
    %825 = arith.divf %823, %824 : vector<16x96xf32>
    %826 = vector.extract_strided_slice %818 {offsets = [0, 96], sizes = [16, 32], strides = [1, 1]} : vector<16x128xf32> to vector<16x32xf32>
    %827 = math.tanh %826 : vector<16x32xf32>
    %828 = vector.extract_strided_slice %825 {offsets = [0, 32], sizes = [16, 32], strides = [1, 1]} : vector<16x96xf32> to vector<16x32xf32>
    %829 = arith.mulf %828, %819 : vector<16x32xf32>
    %830 = vector.extract_strided_slice %825 {offsets = [0, 0], sizes = [16, 32], strides = [1, 1]} : vector<16x96xf32> to vector<16x32xf32>
    %831 = arith.mulf %830, %827 : vector<16x32xf32>
    %832 = arith.addf %829, %831 : vector<16x32xf32>
    %833 = vector.extract_strided_slice %825 {offsets = [0, 64], sizes = [16, 32], strides = [1, 1]} : vector<16x96xf32> to vector<16x32xf32>
    %834 = math.tanh %832 : vector<16x32xf32>
    %835 = arith.mulf %833, %834 : vector<16x32xf32>
    %836 = tpu.concatenate %817, %835 in 1 : vector<16x32xf32>, vector<16x32xf32> -> vector<16x64xf32>
    %837 = tpu.concatenate %814, %832 in 1 : vector<16x32xf32>, vector<16x32xf32> -> vector<16x64xf32>
    %838 = vector.broadcast %c3_i32_161 : i32 to vector<1x64xi32>
    %839 = vector.broadcast %786 : i32 to vector<1x64xi32>
    %840 = arith.select %13, %838, %839 : vector<1x64xi1>, vector<1x64xi32>
    %841 = vector.broadcast %0 : vector<16x1xi32> to vector<16x64xi32>
    %842 = vector.broadcast %840 : vector<1x64xi32> to vector<16x64xi32>
    %843 = arith.cmpi sgt, %841, %842 : vector<16x64xi32>
    %cst_170 = arith.constant 0.000000e+00 : f32
    %844 = vector.broadcast %cst_170 : f32 to vector<16x64xf32>
    %845 = arith.select %843, %836, %844 : vector<16x64xi1>, vector<16x64xf32>
    %846 = arith.select %843, %837, %783 : vector<16x64xi1>, vector<16x64xf32>
    %847 = arith.addf %784, %845 : vector<16x64xf32>
    %848 = arith.maximumf %785, %845 : vector<16x64xf32>
    %c4_i32_171 = arith.constant 4 : i32
    %c7_i32_172 = arith.constant 7 : i32
    %849 = arith.subi %c7_i32_172, %c4_i32_171 : i32
    %850 = arith.index_cast %c4_i32_171 : i32 to index
    %c0_173 = arith.constant 0 : index
    %c0_174 = arith.constant 0 : index
    %851 = vector.load %arg14[%850, %c0_173, %c0_174] : memref<8x16x256xbf16, #tpu.memory_space<vmem>>, vector<1x16x256xbf16>
    %852 = vector.shape_cast %851 : vector<1x16x256xbf16> to vector<16x256xbf16>
    %853 = vector.extract_strided_slice %852 {offsets = [0, 0], sizes = [16, 128], strides = [1, 1]} : vector<16x256xbf16> to vector<16x128xbf16>
    %854 = arith.index_cast %849 : i32 to index
    %c0_175 = arith.constant 0 : index
    %c0_176 = arith.constant 0 : index
    %855 = vector.load %arg14[%854, %c0_175, %c0_176] : memref<8x16x256xbf16, #tpu.memory_space<vmem>>, vector<1x16x256xbf16>
    %856 = vector.shape_cast %855 : vector<1x16x256xbf16> to vector<16x256xbf16>
    %857 = vector.extract_strided_slice %856 {offsets = [0, 128], sizes = [16, 128], strides = [1, 1]} : vector<16x256xbf16> to vector<16x128xbf16>
    %858 = tpu.concatenate %853, %857 in 1 : vector<16x128xbf16>, vector<16x128xbf16> -> vector<16x256xbf16>
    %859 = arith.extf %858 : vector<16x256xbf16> to vector<16x256xf32>
    %860 = arith.truncf %845 : vector<16x64xf32> to vector<16x64xbf16>
    %cst_177 = arith.constant dense<0.000000e+00> : vector<16x256xf32>
    %861 = tpu.matmul %860, %595, %cst_177 {dimension_numbers = #tpu.dot_dimension_numbers<[1], [0], [0], [1], [0, 0, 1, 1], [], []>} : vector<16x64xbf16>, vector<64x256xbf16>, vector<16x256xf32> -> vector<16x256xf32>
    %862 = arith.addf %859, %861 : vector<16x256xf32>
    %863 = vector.extract_strided_slice %862 {offsets = [0, 0], sizes = [16, 128], strides = [1, 1]} : vector<16x256xf32> to vector<16x128xf32>
    %864 = vector.extract_strided_slice %846 {offsets = [0, 0], sizes = [16, 32], strides = [1, 1]} : vector<16x64xf32> to vector<16x32xf32>
    %865 = vector.extract_strided_slice %863 {offsets = [0, 0], sizes = [16, 96], strides = [1, 1]} : vector<16x128xf32> to vector<16x96xf32>
    %866 = arith.negf %865 : vector<16x96xf32>
    %867 = math.exp %866 : vector<16x96xf32>
    %cst_178 = arith.constant 1.000000e+00 : f32
    %868 = vector.broadcast %cst_178 : f32 to vector<16x96xf32>
    %869 = arith.addf %868, %867 : vector<16x96xf32>
    %870 = arith.divf %868, %869 : vector<16x96xf32>
    %871 = vector.extract_strided_slice %863 {offsets = [0, 96], sizes = [16, 32], strides = [1, 1]} : vector<16x128xf32> to vector<16x32xf32>
    %872 = math.tanh %871 : vector<16x32xf32>
    %873 = vector.extract_strided_slice %870 {offsets = [0, 32], sizes = [16, 32], strides = [1, 1]} : vector<16x96xf32> to vector<16x32xf32>
    %874 = arith.mulf %873, %864 : vector<16x32xf32>
    %875 = vector.extract_strided_slice %870 {offsets = [0, 0], sizes = [16, 32], strides = [1, 1]} : vector<16x96xf32> to vector<16x32xf32>
    %876 = arith.mulf %875, %872 : vector<16x32xf32>
    %877 = arith.addf %874, %876 : vector<16x32xf32>
    %878 = vector.extract_strided_slice %870 {offsets = [0, 64], sizes = [16, 32], strides = [1, 1]} : vector<16x96xf32> to vector<16x32xf32>
    %879 = math.tanh %877 : vector<16x32xf32>
    %880 = arith.mulf %878, %879 : vector<16x32xf32>
    %881 = vector.extract_strided_slice %862 {offsets = [0, 128], sizes = [16, 128], strides = [1, 1]} : vector<16x256xf32> to vector<16x128xf32>
    %882 = vector.extract_strided_slice %846 {offsets = [0, 32], sizes = [16, 32], strides = [1, 1]} : vector<16x64xf32> to vector<16x32xf32>
    %883 = vector.extract_strided_slice %881 {offsets = [0, 0], sizes = [16, 96], strides = [1, 1]} : vector<16x128xf32> to vector<16x96xf32>
    %884 = arith.negf %883 : vector<16x96xf32>
    %885 = math.exp %884 : vector<16x96xf32>
    %cst_179 = arith.constant 1.000000e+00 : f32
    %886 = vector.broadcast %cst_179 : f32 to vector<16x96xf32>
    %887 = arith.addf %886, %885 : vector<16x96xf32>
    %888 = arith.divf %886, %887 : vector<16x96xf32>
    %889 = vector.extract_strided_slice %881 {offsets = [0, 96], sizes = [16, 32], strides = [1, 1]} : vector<16x128xf32> to vector<16x32xf32>
    %890 = math.tanh %889 : vector<16x32xf32>
    %891 = vector.extract_strided_slice %888 {offsets = [0, 32], sizes = [16, 32], strides = [1, 1]} : vector<16x96xf32> to vector<16x32xf32>
    %892 = arith.mulf %891, %882 : vector<16x32xf32>
    %893 = vector.extract_strided_slice %888 {offsets = [0, 0], sizes = [16, 32], strides = [1, 1]} : vector<16x96xf32> to vector<16x32xf32>
    %894 = arith.mulf %893, %890 : vector<16x32xf32>
    %895 = arith.addf %892, %894 : vector<16x32xf32>
    %896 = vector.extract_strided_slice %888 {offsets = [0, 64], sizes = [16, 32], strides = [1, 1]} : vector<16x96xf32> to vector<16x32xf32>
    %897 = math.tanh %895 : vector<16x32xf32>
    %898 = arith.mulf %896, %897 : vector<16x32xf32>
    %899 = tpu.concatenate %880, %898 in 1 : vector<16x32xf32>, vector<16x32xf32> -> vector<16x64xf32>
    %900 = tpu.concatenate %877, %895 in 1 : vector<16x32xf32>, vector<16x32xf32> -> vector<16x64xf32>
    %901 = vector.broadcast %c4_i32_171 : i32 to vector<1x64xi32>
    %902 = vector.broadcast %849 : i32 to vector<1x64xi32>
    %903 = arith.select %13, %901, %902 : vector<1x64xi1>, vector<1x64xi32>
    %904 = vector.broadcast %0 : vector<16x1xi32> to vector<16x64xi32>
    %905 = vector.broadcast %903 : vector<1x64xi32> to vector<16x64xi32>
    %906 = arith.cmpi sgt, %904, %905 : vector<16x64xi32>
    %cst_180 = arith.constant 0.000000e+00 : f32
    %907 = vector.broadcast %cst_180 : f32 to vector<16x64xf32>
    %908 = arith.select %906, %899, %907 : vector<16x64xi1>, vector<16x64xf32>
    %909 = arith.select %906, %900, %846 : vector<16x64xi1>, vector<16x64xf32>
    %910 = arith.addf %847, %908 : vector<16x64xf32>
    %911 = arith.maximumf %848, %908 : vector<16x64xf32>
    %c5_i32_181 = arith.constant 5 : i32
    %c7_i32_182 = arith.constant 7 : i32
    %912 = arith.subi %c7_i32_182, %c5_i32_181 : i32
    %913 = arith.index_cast %c5_i32_181 : i32 to index
    %c0_183 = arith.constant 0 : index
    %c0_184 = arith.constant 0 : index
    %914 = vector.load %arg14[%913, %c0_183, %c0_184] : memref<8x16x256xbf16, #tpu.memory_space<vmem>>, vector<1x16x256xbf16>
    %915 = vector.shape_cast %914 : vector<1x16x256xbf16> to vector<16x256xbf16>
    %916 = vector.extract_strided_slice %915 {offsets = [0, 0], sizes = [16, 128], strides = [1, 1]} : vector<16x256xbf16> to vector<16x128xbf16>
    %917 = arith.index_cast %912 : i32 to index
    %c0_185 = arith.constant 0 : index
    %c0_186 = arith.constant 0 : index
    %918 = vector.load %arg14[%917, %c0_185, %c0_186] : memref<8x16x256xbf16, #tpu.memory_space<vmem>>, vector<1x16x256xbf16>
    %919 = vector.shape_cast %918 : vector<1x16x256xbf16> to vector<16x256xbf16>
    %920 = vector.extract_strided_slice %919 {offsets = [0, 128], sizes = [16, 128], strides = [1, 1]} : vector<16x256xbf16> to vector<16x128xbf16>
    %921 = tpu.concatenate %916, %920 in 1 : vector<16x128xbf16>, vector<16x128xbf16> -> vector<16x256xbf16>
    %922 = arith.extf %921 : vector<16x256xbf16> to vector<16x256xf32>
    %923 = arith.truncf %908 : vector<16x64xf32> to vector<16x64xbf16>
    %cst_187 = arith.constant dense<0.000000e+00> : vector<16x256xf32>
    %924 = tpu.matmul %923, %595, %cst_187 {dimension_numbers = #tpu.dot_dimension_numbers<[1], [0], [0], [1], [0, 0, 1, 1], [], []>} : vector<16x64xbf16>, vector<64x256xbf16>, vector<16x256xf32> -> vector<16x256xf32>
    %925 = arith.addf %922, %924 : vector<16x256xf32>
    %926 = vector.extract_strided_slice %925 {offsets = [0, 0], sizes = [16, 128], strides = [1, 1]} : vector<16x256xf32> to vector<16x128xf32>
    %927 = vector.extract_strided_slice %909 {offsets = [0, 0], sizes = [16, 32], strides = [1, 1]} : vector<16x64xf32> to vector<16x32xf32>
    %928 = vector.extract_strided_slice %926 {offsets = [0, 0], sizes = [16, 96], strides = [1, 1]} : vector<16x128xf32> to vector<16x96xf32>
    %929 = arith.negf %928 : vector<16x96xf32>
    %930 = math.exp %929 : vector<16x96xf32>
    %cst_188 = arith.constant 1.000000e+00 : f32
    %931 = vector.broadcast %cst_188 : f32 to vector<16x96xf32>
    %932 = arith.addf %931, %930 : vector<16x96xf32>
    %933 = arith.divf %931, %932 : vector<16x96xf32>
    %934 = vector.extract_strided_slice %926 {offsets = [0, 96], sizes = [16, 32], strides = [1, 1]} : vector<16x128xf32> to vector<16x32xf32>
    %935 = math.tanh %934 : vector<16x32xf32>
    %936 = vector.extract_strided_slice %933 {offsets = [0, 32], sizes = [16, 32], strides = [1, 1]} : vector<16x96xf32> to vector<16x32xf32>
    %937 = arith.mulf %936, %927 : vector<16x32xf32>
    %938 = vector.extract_strided_slice %933 {offsets = [0, 0], sizes = [16, 32], strides = [1, 1]} : vector<16x96xf32> to vector<16x32xf32>
    %939 = arith.mulf %938, %935 : vector<16x32xf32>
    %940 = arith.addf %937, %939 : vector<16x32xf32>
    %941 = vector.extract_strided_slice %933 {offsets = [0, 64], sizes = [16, 32], strides = [1, 1]} : vector<16x96xf32> to vector<16x32xf32>
    %942 = math.tanh %940 : vector<16x32xf32>
    %943 = arith.mulf %941, %942 : vector<16x32xf32>
    %944 = vector.extract_strided_slice %925 {offsets = [0, 128], sizes = [16, 128], strides = [1, 1]} : vector<16x256xf32> to vector<16x128xf32>
    %945 = vector.extract_strided_slice %909 {offsets = [0, 32], sizes = [16, 32], strides = [1, 1]} : vector<16x64xf32> to vector<16x32xf32>
    %946 = vector.extract_strided_slice %944 {offsets = [0, 0], sizes = [16, 96], strides = [1, 1]} : vector<16x128xf32> to vector<16x96xf32>
    %947 = arith.negf %946 : vector<16x96xf32>
    %948 = math.exp %947 : vector<16x96xf32>
    %cst_189 = arith.constant 1.000000e+00 : f32
    %949 = vector.broadcast %cst_189 : f32 to vector<16x96xf32>
    %950 = arith.addf %949, %948 : vector<16x96xf32>
    %951 = arith.divf %949, %950 : vector<16x96xf32>
    %952 = vector.extract_strided_slice %944 {offsets = [0, 96], sizes = [16, 32], strides = [1, 1]} : vector<16x128xf32> to vector<16x32xf32>
    %953 = math.tanh %952 : vector<16x32xf32>
    %954 = vector.extract_strided_slice %951 {offsets = [0, 32], sizes = [16, 32], strides = [1, 1]} : vector<16x96xf32> to vector<16x32xf32>
    %955 = arith.mulf %954, %945 : vector<16x32xf32>
    %956 = vector.extract_strided_slice %951 {offsets = [0, 0], sizes = [16, 32], strides = [1, 1]} : vector<16x96xf32> to vector<16x32xf32>
    %957 = arith.mulf %956, %953 : vector<16x32xf32>
    %958 = arith.addf %955, %957 : vector<16x32xf32>
    %959 = vector.extract_strided_slice %951 {offsets = [0, 64], sizes = [16, 32], strides = [1, 1]} : vector<16x96xf32> to vector<16x32xf32>
    %960 = math.tanh %958 : vector<16x32xf32>
    %961 = arith.mulf %959, %960 : vector<16x32xf32>
    %962 = tpu.concatenate %943, %961 in 1 : vector<16x32xf32>, vector<16x32xf32> -> vector<16x64xf32>
    %963 = tpu.concatenate %940, %958 in 1 : vector<16x32xf32>, vector<16x32xf32> -> vector<16x64xf32>
    %964 = vector.broadcast %c5_i32_181 : i32 to vector<1x64xi32>
    %965 = vector.broadcast %912 : i32 to vector<1x64xi32>
    %966 = arith.select %13, %964, %965 : vector<1x64xi1>, vector<1x64xi32>
    %967 = vector.broadcast %0 : vector<16x1xi32> to vector<16x64xi32>
    %968 = vector.broadcast %966 : vector<1x64xi32> to vector<16x64xi32>
    %969 = arith.cmpi sgt, %967, %968 : vector<16x64xi32>
    %cst_190 = arith.constant 0.000000e+00 : f32
    %970 = vector.broadcast %cst_190 : f32 to vector<16x64xf32>
    %971 = arith.select %969, %962, %970 : vector<16x64xi1>, vector<16x64xf32>
    %972 = arith.select %969, %963, %909 : vector<16x64xi1>, vector<16x64xf32>
    %973 = arith.addf %910, %971 : vector<16x64xf32>
    %974 = arith.maximumf %911, %971 : vector<16x64xf32>
    %c6_i32_191 = arith.constant 6 : i32
    %c7_i32_192 = arith.constant 7 : i32
    %975 = arith.subi %c7_i32_192, %c6_i32_191 : i32
    %976 = arith.index_cast %c6_i32_191 : i32 to index
    %c0_193 = arith.constant 0 : index
    %c0_194 = arith.constant 0 : index
    %977 = vector.load %arg14[%976, %c0_193, %c0_194] : memref<8x16x256xbf16, #tpu.memory_space<vmem>>, vector<1x16x256xbf16>
    %978 = vector.shape_cast %977 : vector<1x16x256xbf16> to vector<16x256xbf16>
    %979 = vector.extract_strided_slice %978 {offsets = [0, 0], sizes = [16, 128], strides = [1, 1]} : vector<16x256xbf16> to vector<16x128xbf16>
    %980 = arith.index_cast %975 : i32 to index
    %c0_195 = arith.constant 0 : index
    %c0_196 = arith.constant 0 : index
    %981 = vector.load %arg14[%980, %c0_195, %c0_196] : memref<8x16x256xbf16, #tpu.memory_space<vmem>>, vector<1x16x256xbf16>
    %982 = vector.shape_cast %981 : vector<1x16x256xbf16> to vector<16x256xbf16>
    %983 = vector.extract_strided_slice %982 {offsets = [0, 128], sizes = [16, 128], strides = [1, 1]} : vector<16x256xbf16> to vector<16x128xbf16>
    %984 = tpu.concatenate %979, %983 in 1 : vector<16x128xbf16>, vector<16x128xbf16> -> vector<16x256xbf16>
    %985 = arith.extf %984 : vector<16x256xbf16> to vector<16x256xf32>
    %986 = arith.truncf %971 : vector<16x64xf32> to vector<16x64xbf16>
    %cst_197 = arith.constant dense<0.000000e+00> : vector<16x256xf32>
    %987 = tpu.matmul %986, %595, %cst_197 {dimension_numbers = #tpu.dot_dimension_numbers<[1], [0], [0], [1], [0, 0, 1, 1], [], []>} : vector<16x64xbf16>, vector<64x256xbf16>, vector<16x256xf32> -> vector<16x256xf32>
    %988 = arith.addf %985, %987 : vector<16x256xf32>
    %989 = vector.extract_strided_slice %988 {offsets = [0, 0], sizes = [16, 128], strides = [1, 1]} : vector<16x256xf32> to vector<16x128xf32>
    %990 = vector.extract_strided_slice %972 {offsets = [0, 0], sizes = [16, 32], strides = [1, 1]} : vector<16x64xf32> to vector<16x32xf32>
    %991 = vector.extract_strided_slice %989 {offsets = [0, 0], sizes = [16, 96], strides = [1, 1]} : vector<16x128xf32> to vector<16x96xf32>
    %992 = arith.negf %991 : vector<16x96xf32>
    %993 = math.exp %992 : vector<16x96xf32>
    %cst_198 = arith.constant 1.000000e+00 : f32
    %994 = vector.broadcast %cst_198 : f32 to vector<16x96xf32>
    %995 = arith.addf %994, %993 : vector<16x96xf32>
    %996 = arith.divf %994, %995 : vector<16x96xf32>
    %997 = vector.extract_strided_slice %989 {offsets = [0, 96], sizes = [16, 32], strides = [1, 1]} : vector<16x128xf32> to vector<16x32xf32>
    %998 = math.tanh %997 : vector<16x32xf32>
    %999 = vector.extract_strided_slice %996 {offsets = [0, 32], sizes = [16, 32], strides = [1, 1]} : vector<16x96xf32> to vector<16x32xf32>
    %1000 = arith.mulf %999, %990 : vector<16x32xf32>
    %1001 = vector.extract_strided_slice %996 {offsets = [0, 0], sizes = [16, 32], strides = [1, 1]} : vector<16x96xf32> to vector<16x32xf32>
    %1002 = arith.mulf %1001, %998 : vector<16x32xf32>
    %1003 = arith.addf %1000, %1002 : vector<16x32xf32>
    %1004 = vector.extract_strided_slice %996 {offsets = [0, 64], sizes = [16, 32], strides = [1, 1]} : vector<16x96xf32> to vector<16x32xf32>
    %1005 = math.tanh %1003 : vector<16x32xf32>
    %1006 = arith.mulf %1004, %1005 : vector<16x32xf32>
    %1007 = vector.extract_strided_slice %988 {offsets = [0, 128], sizes = [16, 128], strides = [1, 1]} : vector<16x256xf32> to vector<16x128xf32>
    %1008 = vector.extract_strided_slice %972 {offsets = [0, 32], sizes = [16, 32], strides = [1, 1]} : vector<16x64xf32> to vector<16x32xf32>
    %1009 = vector.extract_strided_slice %1007 {offsets = [0, 0], sizes = [16, 96], strides = [1, 1]} : vector<16x128xf32> to vector<16x96xf32>
    %1010 = arith.negf %1009 : vector<16x96xf32>
    %1011 = math.exp %1010 : vector<16x96xf32>
    %cst_199 = arith.constant 1.000000e+00 : f32
    %1012 = vector.broadcast %cst_199 : f32 to vector<16x96xf32>
    %1013 = arith.addf %1012, %1011 : vector<16x96xf32>
    %1014 = arith.divf %1012, %1013 : vector<16x96xf32>
    %1015 = vector.extract_strided_slice %1007 {offsets = [0, 96], sizes = [16, 32], strides = [1, 1]} : vector<16x128xf32> to vector<16x32xf32>
    %1016 = math.tanh %1015 : vector<16x32xf32>
    %1017 = vector.extract_strided_slice %1014 {offsets = [0, 32], sizes = [16, 32], strides = [1, 1]} : vector<16x96xf32> to vector<16x32xf32>
    %1018 = arith.mulf %1017, %1008 : vector<16x32xf32>
    %1019 = vector.extract_strided_slice %1014 {offsets = [0, 0], sizes = [16, 32], strides = [1, 1]} : vector<16x96xf32> to vector<16x32xf32>
    %1020 = arith.mulf %1019, %1016 : vector<16x32xf32>
    %1021 = arith.addf %1018, %1020 : vector<16x32xf32>
    %1022 = vector.extract_strided_slice %1014 {offsets = [0, 64], sizes = [16, 32], strides = [1, 1]} : vector<16x96xf32> to vector<16x32xf32>
    %1023 = math.tanh %1021 : vector<16x32xf32>
    %1024 = arith.mulf %1022, %1023 : vector<16x32xf32>
    %1025 = tpu.concatenate %1006, %1024 in 1 : vector<16x32xf32>, vector<16x32xf32> -> vector<16x64xf32>
    %1026 = tpu.concatenate %1003, %1021 in 1 : vector<16x32xf32>, vector<16x32xf32> -> vector<16x64xf32>
    %1027 = vector.broadcast %c6_i32_191 : i32 to vector<1x64xi32>
    %1028 = vector.broadcast %975 : i32 to vector<1x64xi32>
    %1029 = arith.select %13, %1027, %1028 : vector<1x64xi1>, vector<1x64xi32>
    %1030 = vector.broadcast %0 : vector<16x1xi32> to vector<16x64xi32>
    %1031 = vector.broadcast %1029 : vector<1x64xi32> to vector<16x64xi32>
    %1032 = arith.cmpi sgt, %1030, %1031 : vector<16x64xi32>
    %cst_200 = arith.constant 0.000000e+00 : f32
    %1033 = vector.broadcast %cst_200 : f32 to vector<16x64xf32>
    %1034 = arith.select %1032, %1025, %1033 : vector<16x64xi1>, vector<16x64xf32>
    %1035 = arith.select %1032, %1026, %972 : vector<16x64xi1>, vector<16x64xf32>
    %1036 = arith.addf %973, %1034 : vector<16x64xf32>
    %1037 = arith.maximumf %974, %1034 : vector<16x64xf32>
    %c7_i32_201 = arith.constant 7 : i32
    %c7_i32_202 = arith.constant 7 : i32
    %1038 = arith.subi %c7_i32_202, %c7_i32_201 : i32
    %1039 = arith.index_cast %c7_i32_201 : i32 to index
    %c0_203 = arith.constant 0 : index
    %c0_204 = arith.constant 0 : index
    %1040 = vector.load %arg14[%1039, %c0_203, %c0_204] : memref<8x16x256xbf16, #tpu.memory_space<vmem>>, vector<1x16x256xbf16>
    %1041 = vector.shape_cast %1040 : vector<1x16x256xbf16> to vector<16x256xbf16>
    %1042 = vector.extract_strided_slice %1041 {offsets = [0, 0], sizes = [16, 128], strides = [1, 1]} : vector<16x256xbf16> to vector<16x128xbf16>
    %1043 = arith.index_cast %1038 : i32 to index
    %c0_205 = arith.constant 0 : index
    %c0_206 = arith.constant 0 : index
    %1044 = vector.load %arg14[%1043, %c0_205, %c0_206] : memref<8x16x256xbf16, #tpu.memory_space<vmem>>, vector<1x16x256xbf16>
    %1045 = vector.shape_cast %1044 : vector<1x16x256xbf16> to vector<16x256xbf16>
    %1046 = vector.extract_strided_slice %1045 {offsets = [0, 128], sizes = [16, 128], strides = [1, 1]} : vector<16x256xbf16> to vector<16x128xbf16>
    %1047 = tpu.concatenate %1042, %1046 in 1 : vector<16x128xbf16>, vector<16x128xbf16> -> vector<16x256xbf16>
    %1048 = arith.extf %1047 : vector<16x256xbf16> to vector<16x256xf32>
    %1049 = arith.truncf %1034 : vector<16x64xf32> to vector<16x64xbf16>
    %cst_207 = arith.constant dense<0.000000e+00> : vector<16x256xf32>
    %1050 = tpu.matmul %1049, %595, %cst_207 {dimension_numbers = #tpu.dot_dimension_numbers<[1], [0], [0], [1], [0, 0, 1, 1], [], []>} : vector<16x64xbf16>, vector<64x256xbf16>, vector<16x256xf32> -> vector<16x256xf32>
    %1051 = arith.addf %1048, %1050 : vector<16x256xf32>
    %1052 = vector.extract_strided_slice %1051 {offsets = [0, 0], sizes = [16, 128], strides = [1, 1]} : vector<16x256xf32> to vector<16x128xf32>
    %1053 = vector.extract_strided_slice %1035 {offsets = [0, 0], sizes = [16, 32], strides = [1, 1]} : vector<16x64xf32> to vector<16x32xf32>
    %1054 = vector.extract_strided_slice %1052 {offsets = [0, 0], sizes = [16, 96], strides = [1, 1]} : vector<16x128xf32> to vector<16x96xf32>
    %1055 = arith.negf %1054 : vector<16x96xf32>
    %1056 = math.exp %1055 : vector<16x96xf32>
    %cst_208 = arith.constant 1.000000e+00 : f32
    %1057 = vector.broadcast %cst_208 : f32 to vector<16x96xf32>
    %1058 = arith.addf %1057, %1056 : vector<16x96xf32>
    %1059 = arith.divf %1057, %1058 : vector<16x96xf32>
    %1060 = vector.extract_strided_slice %1052 {offsets = [0, 96], sizes = [16, 32], strides = [1, 1]} : vector<16x128xf32> to vector<16x32xf32>
    %1061 = math.tanh %1060 : vector<16x32xf32>
    %1062 = vector.extract_strided_slice %1059 {offsets = [0, 32], sizes = [16, 32], strides = [1, 1]} : vector<16x96xf32> to vector<16x32xf32>
    %1063 = arith.mulf %1062, %1053 : vector<16x32xf32>
    %1064 = vector.extract_strided_slice %1059 {offsets = [0, 0], sizes = [16, 32], strides = [1, 1]} : vector<16x96xf32> to vector<16x32xf32>
    %1065 = arith.mulf %1064, %1061 : vector<16x32xf32>
    %1066 = arith.addf %1063, %1065 : vector<16x32xf32>
    %1067 = vector.extract_strided_slice %1059 {offsets = [0, 64], sizes = [16, 32], strides = [1, 1]} : vector<16x96xf32> to vector<16x32xf32>
    %1068 = math.tanh %1066 : vector<16x32xf32>
    %1069 = arith.mulf %1067, %1068 : vector<16x32xf32>
    %1070 = vector.extract_strided_slice %1051 {offsets = [0, 128], sizes = [16, 128], strides = [1, 1]} : vector<16x256xf32> to vector<16x128xf32>
    %1071 = vector.extract_strided_slice %1035 {offsets = [0, 32], sizes = [16, 32], strides = [1, 1]} : vector<16x64xf32> to vector<16x32xf32>
    %1072 = vector.extract_strided_slice %1070 {offsets = [0, 0], sizes = [16, 96], strides = [1, 1]} : vector<16x128xf32> to vector<16x96xf32>
    %1073 = arith.negf %1072 : vector<16x96xf32>
    %1074 = math.exp %1073 : vector<16x96xf32>
    %cst_209 = arith.constant 1.000000e+00 : f32
    %1075 = vector.broadcast %cst_209 : f32 to vector<16x96xf32>
    %1076 = arith.addf %1075, %1074 : vector<16x96xf32>
    %1077 = arith.divf %1075, %1076 : vector<16x96xf32>
    %1078 = vector.extract_strided_slice %1070 {offsets = [0, 96], sizes = [16, 32], strides = [1, 1]} : vector<16x128xf32> to vector<16x32xf32>
    %1079 = math.tanh %1078 : vector<16x32xf32>
    %1080 = vector.extract_strided_slice %1077 {offsets = [0, 32], sizes = [16, 32], strides = [1, 1]} : vector<16x96xf32> to vector<16x32xf32>
    %1081 = arith.mulf %1080, %1071 : vector<16x32xf32>
    %1082 = vector.extract_strided_slice %1077 {offsets = [0, 0], sizes = [16, 32], strides = [1, 1]} : vector<16x96xf32> to vector<16x32xf32>
    %1083 = arith.mulf %1082, %1079 : vector<16x32xf32>
    %1084 = arith.addf %1081, %1083 : vector<16x32xf32>
    %1085 = vector.extract_strided_slice %1077 {offsets = [0, 64], sizes = [16, 32], strides = [1, 1]} : vector<16x96xf32> to vector<16x32xf32>
    %1086 = math.tanh %1084 : vector<16x32xf32>
    %1087 = arith.mulf %1085, %1086 : vector<16x32xf32>
    %1088 = tpu.concatenate %1069, %1087 in 1 : vector<16x32xf32>, vector<16x32xf32> -> vector<16x64xf32>
    %1089 = tpu.concatenate %1066, %1084 in 1 : vector<16x32xf32>, vector<16x32xf32> -> vector<16x64xf32>
    %1090 = vector.broadcast %c7_i32_201 : i32 to vector<1x64xi32>
    %1091 = vector.broadcast %1038 : i32 to vector<1x64xi32>
    %1092 = arith.select %13, %1090, %1091 : vector<1x64xi1>, vector<1x64xi32>
    %1093 = vector.broadcast %0 : vector<16x1xi32> to vector<16x64xi32>
    %1094 = vector.broadcast %1092 : vector<1x64xi32> to vector<16x64xi32>
    %1095 = arith.cmpi sgt, %1093, %1094 : vector<16x64xi32>
    %cst_210 = arith.constant 0.000000e+00 : f32
    %1096 = vector.broadcast %cst_210 : f32 to vector<16x64xf32>
    %1097 = arith.select %1095, %1088, %1096 : vector<16x64xi1>, vector<16x64xf32>
    %1098 = arith.select %1095, %1089, %1035 : vector<16x64xi1>, vector<16x64xf32>
    %1099 = arith.addf %1036, %1097 : vector<16x64xf32>
    %1100 = arith.maximumf %1037, %1097 : vector<16x64xf32>
    %c8_i32_211 = arith.constant 8 : i32
    %cst_212 = arith.constant 1.250000e-01 : f32
    %1101 = vector.broadcast %cst_212 : f32 to vector<16x64xf32>
    %1102 = arith.mulf %1099, %1101 : vector<16x64xf32>
    %1103 = tpu.concatenate %1102, %1100 in 1 : vector<16x64xf32>, vector<16x64xf32> -> vector<16x128xf32>
    %1104 = arith.truncf %1103 : vector<16x128xf32> to vector<16x128xbf16>
    %c0_213 = arith.constant 0 : index
    %c0_214 = arith.constant 0 : index
    %1105 = vector.load %arg9[%c0_213, %c0_214] : memref<128x32xbf16, #tpu.memory_space<vmem>>, vector<128x32xbf16>
    %cst_215 = arith.constant dense<0.000000e+00> : vector<16x32xf32>
    %1106 = tpu.matmul %1104, %1105, %cst_215 {dimension_numbers = #tpu.dot_dimension_numbers<[1], [0], [0], [1], [0, 0, 1, 1], [], []>} : vector<16x128xbf16>, vector<128x32xbf16>, vector<16x32xf32> -> vector<16x32xf32>
    %c0_216 = arith.constant 0 : index
    %c0_217 = arith.constant 0 : index
    %1107 = vector.load %arg10[%c0_216, %c0_217] : memref<1x32xf32, #tpu.memory_space<vmem>>, vector<1x32xf32>
    %1108 = vector.broadcast %1107 : vector<1x32xf32> to vector<16x32xf32>
    %1109 = arith.addf %1106, %1108 : vector<16x32xf32>
    %cst_218 = arith.constant 0.000000e+00 : f32
    %1110 = vector.broadcast %cst_218 : f32 to vector<16x32xf32>
    %1111 = arith.maximumf %1109, %1110 : vector<16x32xf32>
    %1112 = arith.truncf %1111 : vector<16x32xf32> to vector<16x32xbf16>
    %c0_219 = arith.constant 0 : index
    %c0_220 = arith.constant 0 : index
    %1113 = vector.load %arg11[%c0_219, %c0_220] : memref<32x7xbf16, #tpu.memory_space<vmem>>, vector<32x7xbf16>
    %cst_221 = arith.constant dense<0.000000e+00> : vector<16x7xf32>
    %1114 = tpu.matmul %1112, %1113, %cst_221 {dimension_numbers = #tpu.dot_dimension_numbers<[1], [0], [0], [1], [0, 0, 1, 1], [], []>} : vector<16x32xbf16>, vector<32x7xbf16>, vector<16x7xf32> -> vector<16x7xf32>
    %c0_222 = arith.constant 0 : index
    %c0_223 = arith.constant 0 : index
    %1115 = vector.load %arg12[%c0_222, %c0_223] : memref<1x7xf32, #tpu.memory_space<vmem>>, vector<1x7xf32>
    %1116 = vector.broadcast %1115 : vector<1x7xf32> to vector<16x7xf32>
    %1117 = arith.addf %1114, %1116 : vector<16x7xf32>
    %c0_224 = arith.constant 0 : index
    %c0_225 = arith.constant 0 : index
    %1118 = vector.load %arg13[%c0_224, %c0_225] : memref<16x7xf32, #tpu.memory_space<vmem>>, vector<16x7xf32>
    tpu.vector_store %arg13[%c0_224, %c0_225], %1117 {strides = array<i32>} : memref<16x7xf32, #tpu.memory_space<vmem>>, vector<16x7xf32>,
    return
  }
  func.func @transform_0(%arg0: i32) -> (i32, i32, i32) {
    %c0_i32 = arith.constant 0 : i32
    %c0_i32_0 = arith.constant 0 : i32
    %c0_i32_1 = arith.constant 0 : i32
    return %c0_i32, %arg0, %c0_i32_0 : i32, i32, i32
  }
  func.func @transform_1(%arg0: i32) -> (i32, i32) {
    %c0_i32 = arith.constant 0 : i32
    %c0_i32_0 = arith.constant 0 : i32
    return %arg0, %c0_i32 : i32, i32
  }
  func.func @transform_2(%arg0: i32) -> (i32, i32) {
    %c0_i32 = arith.constant 0 : i32
    %c0_i32_0 = arith.constant 0 : i32
    %c0_i32_1 = arith.constant 0 : i32
    return %c0_i32, %c0_i32_0 : i32, i32
  }
  func.func @transform_3(%arg0: i32) -> (i32, i32) {
    %c0_i32 = arith.constant 0 : i32
    %c0_i32_0 = arith.constant 0 : i32
    %c0_i32_1 = arith.constant 0 : i32
    return %c0_i32, %c0_i32_0 : i32, i32
  }
  func.func @transform_4(%arg0: i32) -> (i32, i32) {
    %c0_i32 = arith.constant 0 : i32
    %c0_i32_0 = arith.constant 0 : i32
    %c0_i32_1 = arith.constant 0 : i32
    return %c0_i32, %c0_i32_0 : i32, i32
  }
  func.func @transform_5(%arg0: i32) -> (i32, i32) {
    %c0_i32 = arith.constant 0 : i32
    %c0_i32_0 = arith.constant 0 : i32
    %c0_i32_1 = arith.constant 0 : i32
    return %c0_i32, %c0_i32_0 : i32, i32
  }
  func.func @transform_6(%arg0: i32) -> (i32, i32) {
    %c0_i32 = arith.constant 0 : i32
    %c0_i32_0 = arith.constant 0 : i32
    %c0_i32_1 = arith.constant 0 : i32
    return %c0_i32, %c0_i32_0 : i32, i32
  }
  func.func @transform_7(%arg0: i32) -> (i32, i32) {
    %c0_i32 = arith.constant 0 : i32
    %c0_i32_0 = arith.constant 0 : i32
    %c0_i32_1 = arith.constant 0 : i32
    return %c0_i32, %c0_i32_0 : i32, i32
  }
  func.func @transform_8(%arg0: i32) -> (i32, i32) {
    %c0_i32 = arith.constant 0 : i32
    %c0_i32_0 = arith.constant 0 : i32
    %c0_i32_1 = arith.constant 0 : i32
    return %c0_i32, %c0_i32_0 : i32, i32
  }
  func.func @transform_9(%arg0: i32) -> (i32, i32) {
    %c0_i32 = arith.constant 0 : i32
    %c0_i32_0 = arith.constant 0 : i32
    %c0_i32_1 = arith.constant 0 : i32
    return %c0_i32, %c0_i32_0 : i32, i32
  }
  func.func @transform_10(%arg0: i32) -> (i32, i32) {
    %c0_i32 = arith.constant 0 : i32
    %c0_i32_0 = arith.constant 0 : i32
    %c0_i32_1 = arith.constant 0 : i32
    return %c0_i32, %c0_i32_0 : i32, i32
  }
  func.func @transform_11(%arg0: i32) -> (i32, i32) {
    %c0_i32 = arith.constant 0 : i32
    %c0_i32_0 = arith.constant 0 : i32
    %c0_i32_1 = arith.constant 0 : i32
    return %c0_i32, %c0_i32_0 : i32, i32
  }
  func.func @transform_12(%arg0: i32) -> (i32, i32) {
    %c0_i32 = arith.constant 0 : i32
    %c0_i32_0 = arith.constant 0 : i32
    return %arg0, %c0_i32 : i32, i32
  }
}

</mosaic_0001>

<llo_original>
// kernel: tpu_custom_call.1
$region0: #{tpu_custom_call.1}
  #allocation0 [shape = 'u32[]', space=smem, size = 0x4, offset = 0x4, fixed_abs, tag = 'smem constant byte address 0x4 - core index']
  #allocation1 [shape = 'u32[72,128]{1,0:T(1,128)}', space=vmem, size = 0x9000, scoped, tag = 'internal scratch']
  #allocation2 [shape = 'bf16[8,16,256]{2,1,0:T(8,128)(2,1)}', space=vmem, size = 0x10000, scoped, tag = 'scratch operand']
  #allocation3 [shape = 'f32[8,16,64]{2,1,0:T(8,128)}', space=vmem, size = 0x10000, scoped, tag = 'scratch operand']
  %s0 = inlined_call_operand.vmem [shape: bf16[8,16,16], index: 0, kind: input, shape index: {}]
  %s1 = inlined_call_operand.vmem [shape: s32[16,1], index: 1, kind: input, shape index: {}]
  %s2 = inlined_call_operand.vmem [shape: bf16[16,256], index: 2, kind: input, shape index: {}]
  %s3 = inlined_call_operand.vmem [shape: f32[1,256], index: 3, kind: input, shape index: {}]
  %s4 = inlined_call_operand.hbm [shape: bf16[64,256], index: 4, kind: input, shape index: {}]
  %s5 = inlined_call_operand.hbm [shape: bf16[64,256], index: 5, kind: input, shape index: {}]
  %s6 = inlined_call_operand.vmem [shape: f32[1,256], index: 6, kind: input, shape index: {}]
  %s7 = inlined_call_operand.hbm [shape: bf16[64,256], index: 7, kind: input, shape index: {}]
  %s8 = inlined_call_operand.vmem [shape: bf16[128,32], index: 8, kind: input, shape index: {}]
  %s9 = inlined_call_operand.vmem [shape: f32[1,32], index: 9, kind: input, shape index: {}]
  %s10 = inlined_call_operand.vmem [shape: bf16[32,7], index: 10, kind: input, shape index: {}]
  %s11 = inlined_call_operand.vmem [shape: f32[1,7], index: 11, kind: input, shape index: {}]
  %s12 = inlined_call_operand.vmem [shape: f32[16,7], index: 12, kind: output, shape index: {}]
  %s13 = sld [smem:[#allocation0]]
  $region70: #{tpu_custom_call.1} parent=0
    _
  %s15 = ssub.s32 1, %s13
  %s16 = scalar_select 0, %s15, %s13
  $region1: #{tpu_custom_call.1} parent=0
    #allocation4 [shape = 'u8[32768]{0}', space=vmem, size = 0x8000, scoped, tag = 'input window, operand 4, single buffered']
    #allocation5 [shape = 's32[1]{0}', space=sflag, size = 0x4, scoped, tag = 'scoped memory for tpu_custom_call.1']
    #allocation6 [shape = 'u8[32768]{0}', space=vmem, size = 0x8000, scoped, tag = 'input window, operand 5, single buffered']
    #allocation7 [shape = 's32[1]{0}', space=sflag, size = 0x4, scoped, tag = 'scoped memory for tpu_custom_call.1']
    #allocation8 [shape = 'u8[32768]{0}', space=vmem, size = 0x8000, scoped, tag = 'input window, operand 7, single buffered']
    %17 = vsyncpa [#allocation5], 0
    %18 = vsyncpa [#allocation7], 0
    // Predicated region
    $region2: #{tpu_custom_call.1} parent=1 // pred_check
      _
    $region3: #{tpu_custom_call.1} parent=1 // pred_check_branch
      %20 = sbr.rel (0) target = $region5
    $region4: #{tpu_custom_call.1} parent=1 // pred_region
      _
    $region5: #{tpu_custom_call.1} parent=1 // pred_fallthru
      _
    // Predicated region
    $region6: #{tpu_custom_call.1} parent=1 // pred_check
      _
    $region7: #{tpu_custom_call.1} parent=1 // pred_check_branch
      %22 = sbr.rel (0) target = $region9
    $region8: #{tpu_custom_call.1} parent=1 // pred_region
      _
    $region9: #{tpu_custom_call.1} parent=1 // pred_fallthru
      _
    // Predicated region
    $region10: #{tpu_custom_call.1} parent=1 // pred_check
      _
    $region11: #{tpu_custom_call.1} parent=1 // pred_check_branch
      %24 = sbr.rel (0) target = $region13
    $region12: #{tpu_custom_call.1} parent=1 // pred_region
      _
    $region13: #{tpu_custom_call.1} parent=1 // pred_fallthru
      _
    // Predicated region
    $region14: #{tpu_custom_call.1} parent=1 // pred_check
      _
    $region15: #{tpu_custom_call.1} parent=1 // pred_check_branch
      %26 = sbr.rel (0) target = $region17
    $region16: #{tpu_custom_call.1} parent=1 // pred_region
      _
    $region17: #{tpu_custom_call.1} parent=1 // pred_fallthru
      _
    // Predicated region
    $region18: #{tpu_custom_call.1} parent=1 // pred_check
      _
    $region19: #{tpu_custom_call.1} parent=1 // pred_check_branch
      %28 = sbr.rel (0) target = $region21
    $region20: #{tpu_custom_call.1} parent=1 // pred_region
      %30 = vsyncadd [#allocation5], 0
      %s31 = sshll.u32 %s4, 4
      %s32 = int_to_ptr.hbm [resolvable:$true] %s31
      %s33 = sshll.u32 [#allocation4], 4
      %s34 = int_to_ptr.vmem [resolvable:$true] %s33
      %39 = dma.hbm_to_vmem [thread:$0]  %s32, 1024, %s34, [#allocation5], 128, 128, 8
    $region21: #{tpu_custom_call.1} parent=1 // pred_fallthru
      _
    // Predicated region
    $region22: #{tpu_custom_call.1} parent=1 // pred_check
      _
    $region23: #{tpu_custom_call.1} parent=1 // pred_check_branch
      %41 = sbr.rel (0) target = $region25
    $region24: #{tpu_custom_call.1} parent=1 // pred_region
      %43 = vsyncadd [#allocation7], 0
      %s44 = sshll.u32 %s5, 4
      %s45 = int_to_ptr.hbm [resolvable:$true] %s44
      %s46 = sshll.u32 [#allocation6], 4
      %s47 = int_to_ptr.vmem [resolvable:$true] %s46
      %52 = dma.hbm_to_vmem [thread:$0]  %s45, 1024, %s47, [#allocation7], 128, 128, 8
    $region25: #{tpu_custom_call.1} parent=1 // pred_fallthru
      _
    // Predicated region
    $region26: #{tpu_custom_call.1} parent=1 // pred_check
      _
    $region27: #{tpu_custom_call.1} parent=1 // pred_check_branch
      %54 = sbr.rel (0) target = $region29
    $region28: #{tpu_custom_call.1} parent=1 // pred_region
      _
    $region29: #{tpu_custom_call.1} parent=1 // pred_fallthru
      _
    // Predicated region
    $region30: #{tpu_custom_call.1} parent=1 // pred_check
      _
    $region31: #{tpu_custom_call.1} parent=1 // pred_check_branch
      %56 = sbr.rel (0) target = $region33
    $region32: #{tpu_custom_call.1} parent=1 // pred_region
      %58 = vsyncadd [#allocation7], 0
      %s59 = sshll.u32 %s7, 4
      %s60 = int_to_ptr.hbm [resolvable:$true] %s59
      %s61 = sshll.u32 [#allocation8], 4
      %s62 = int_to_ptr.vmem [resolvable:$true] %s61
      %67 = dma.hbm_to_vmem [thread:$0]  %s60, 1024, %s62, [#allocation7], 128, 128, 8
    $region33: #{tpu_custom_call.1} parent=1 // pred_fallthru
      _
    // Predicated region
    $region34: #{tpu_custom_call.1} parent=1 // pred_check
      _
    $region35: #{tpu_custom_call.1} parent=1 // pred_check_branch
      %69 = sbr.rel (0) target = $region37
    $region36: #{tpu_custom_call.1} parent=1 // pred_region
      _
    $region37: #{tpu_custom_call.1} parent=1 // pred_fallthru
      _
    // Predicated region
    $region38: #{tpu_custom_call.1} parent=1 // pred_check
      _
    $region39: #{tpu_custom_call.1} parent=1 // pred_check_branch
      %71 = sbr.rel (0) target = $region41
    $region40: #{tpu_custom_call.1} parent=1 // pred_region
      _
    $region41: #{tpu_custom_call.1} parent=1 // pred_fallthru
      _
    // Predicated region
    $region42: #{tpu_custom_call.1} parent=1 // pred_check
      _
    $region43: #{tpu_custom_call.1} parent=1 // pred_check_branch
      %73 = sbr.rel (0) target = $region45
    $region44: #{tpu_custom_call.1} parent=1 // pred_region
      _
    $region45: #{tpu_custom_call.1} parent=1 // pred_fallthru
      _
    // Predicated region
    $region46: #{tpu_custom_call.1} parent=1 // pred_check
      _
    $region47: #{tpu_custom_call.1} parent=1 // pred_check_branch
      %75 = sbr.rel (0) target = $region49
    $region48: #{tpu_custom_call.1} parent=1 // pred_region
      _
    $region49: #{tpu_custom_call.1} parent=1 // pred_fallthru
      _
    // Predicated region
    $region50: #{tpu_custom_call.1} parent=1 // pred_check
      _
    $region51: #{tpu_custom_call.1} parent=1 // pred_check_branch
      %77 = sbr.rel (0) target = $region53
    $region52: #{tpu_custom_call.1} parent=1 // pred_region
      %79 = dma.done [#allocation5], 1024
    $region53: #{tpu_custom_call.1} parent=1 // pred_fallthru
      _
    // Predicated region
    $region54: #{tpu_custom_call.1} parent=1 // pred_check
      _
    $region55: #{tpu_custom_call.1} parent=1 // pred_check_branch
      %81 = sbr.rel (0) target = $region57
    $region56: #{tpu_custom_call.1} parent=1 // pred_region
      %83 = dma.done [#allocation7], 1024
    $region57: #{tpu_custom_call.1} parent=1 // pred_fallthru
      _
    // Predicated region
    $region58: #{tpu_custom_call.1} parent=1 // pred_check
      _
    $region59: #{tpu_custom_call.1} parent=1 // pred_check_branch
      %85 = sbr.rel (0) target = $region61
    $region60: #{tpu_custom_call.1} parent=1 // pred_region
      %87 = dma.done [#allocation7], 1024
    $region61: #{tpu_custom_call.1} parent=1 // pred_fallthru
      _
    %v89 = vld [vmem:[%s1] sm:$0xff]
    %v90 = vld [vmem:[%s1 + $0x8] sm:$0xff]
    %v91 = vld [vmem:[%s0] sm:$0xf]
    %v92 = vld [vmem:[%s0 + $0x4] sm:$0xf]
    %v93 = vld [vmem:[%s0 + $0x8] sm:$0xf]
    %v94 = vld [vmem:[%s0 + $0xc] sm:$0xf]
    %v95 = vld [vmem:[%s0 + $0x10] sm:$0xf]
    %v96 = vld [vmem:[%s0 + $0x14] sm:$0xf]
    %v97 = vld [vmem:[%s0 + $0x18] sm:$0xf]
    %v98 = vld [vmem:[%s0 + $0x1c] sm:$0xf]
    %v99 = vld [vmem:[%s0 + $0x20] sm:$0xf]
    %v100 = vld [vmem:[%s0 + $0x24] sm:$0xf]
    %v101 = vld [vmem:[%s0 + $0x28] sm:$0xf]
    %v102 = vld [vmem:[%s0 + $0x2c] sm:$0xf]
    %v103 = vld [vmem:[%s0 + $0x30] sm:$0xf]
    %v104 = vld [vmem:[%s0 + $0x34] sm:$0xf]
    %v105 = vld [vmem:[%s0 + $0x38] sm:$0xf]
    %v106 = vld [vmem:[%s0 + $0x3c] sm:$0xf]
    %v107 = vld [vmem:[%s2] sm:$0xff]
    %v108 = vld [vmem:[%s2 + $0x8] sm:$0xff]
    %v109 = vld [vmem:[%s3] sm:$0x3]
    %v111 = vperm.slane %v109, 0
    %v112 = vperm.slane %v109, 1
    %v131 = vunpack.c.l.b16 %v91
    %v132 = vunpack.c.l.b16 %v92
    %v133 = vunpack.c.l.b16 %v93
    %v134 = vunpack.c.l.b16 %v94
    %v135 = vunpack.c.l.b16 %v95
    %v136 = vunpack.c.l.b16 %v96
    %v137 = vunpack.c.l.b16 %v97
    %v138 = vunpack.c.l.b16 %v98
    %v139 = vunpack.c.l.b16 %v99
    %v140 = vunpack.c.l.b16 %v100
    %v141 = vunpack.c.l.b16 %v101
    %v142 = vunpack.c.l.b16 %v102
    %v143 = vunpack.c.l.b16 %v103
    %v144 = vunpack.c.l.b16 %v104
    %v145 = vunpack.c.l.b16 %v105
    %v146 = vunpack.c.l.b16 %v106
    %v147 = vpack.c.b16 %v132, %v131
    %v148 = vpack.c.b16 %v134, %v133
    %v149 = vpack.c.b16 %v136, %v135
    %v150 = vpack.c.b16 %v138, %v137
    %v151 = vpack.c.b16 %v140, %v139
    %v152 = vpack.c.b16 %v142, %v141
    %v153 = vpack.c.b16 %v144, %v143
    %v154 = vpack.c.b16 %v146, %v145
    %v157 = vunpack.c.l.b16 %v107
    %v158 = vunpack.c.h.b16 %v107
    %v159 = vunpack.c.l.b16 %v108
    %v160 = vunpack.c.h.b16 %v108
    %v161 = vpack.c.b16 %v159, %v157
    %v162 = vpack.c.b16 %v160, %v158
    %vm165 = vcmask 130048
    %v167 = vsel %vm165, %v147, 0
    %v170 = vsel %vm165, %v148, 0
    %v173 = vsel %vm165, %v149, 0
    %v176 = vsel %vm165, %v150, 0
    %v179 = vsel %vm165, %v151, 0
    %v182 = vsel %vm165, %v152, 0
    %v185 = vsel %vm165, %v153, 0
    %v188 = vsel %vm165, %v154, 0
    %190 = vmatpush.bf16.msra.mxu0 0
    %191 = vmatpush.bf16.msra.mxu0 0
    %192 = vmatpush.bf16.msra.mxu0 0
    %193 = vmatpush.bf16.msra.mxu0 0
    %194 = vmatpush.bf16.msra.mxu0 0
    %195 = vmatpush.bf16.msra.mxu0 0
    %196 = vmatpush.bf16.msra.mxu0 0
    %197 = vmatpush.bf16.msra.mxu0 %v161
    %198 = vmatmul.bf16.gmra.mxu0 %v167
    %v199 = vpop.f32.mrf.mxu0
    %v200 = vadd.f32 %v111, %v199
    %v201 = vpop.f32.mrf.mxu0
    %v202 = vadd.f32 %v111, %v201
    %203 = vmatmul.bf16.gmra.mxu0 %v170
    %v204 = vpop.f32.mrf.mxu0
    %v205 = vadd.f32 %v111, %v204
    %v206 = vpop.f32.mrf.mxu0
    %v207 = vadd.f32 %v111, %v206
    %208 = vmatmul.bf16.gmra.mxu0 %v173
    %v209 = vpop.f32.mrf.mxu0
    %v210 = vadd.f32 %v111, %v209
    %v211 = vpop.f32.mrf.mxu0
    %v212 = vadd.f32 %v111, %v211
    %213 = vmatmul.bf16.gmra.mxu0 %v176
    %v214 = vpop.f32.mrf.mxu0
    %v215 = vadd.f32 %v111, %v214
    %v216 = vpop.f32.mrf.mxu0
    %v217 = vadd.f32 %v111, %v216
    %218 = vmatmul.bf16.gmra.mxu0 %v179
    %v219 = vpop.f32.mrf.mxu0
    %v220 = vadd.f32 %v111, %v219
    %v221 = vpop.f32.mrf.mxu0
    %v222 = vadd.f32 %v111, %v221
    %223 = vmatmul.bf16.gmra.mxu0 %v182
    %v224 = vpop.f32.mrf.mxu0
    %v225 = vadd.f32 %v111, %v224
    %v226 = vpop.f32.mrf.mxu0
    %v227 = vadd.f32 %v111, %v226
    %228 = vmatmul.bf16.gmra.mxu0 %v185
    %v229 = vpop.f32.mrf.mxu0
    %v230 = vadd.f32 %v111, %v229
    %v231 = vpop.f32.mrf.mxu0
    %v232 = vadd.f32 %v111, %v231
    %233 = vmatmul.bf16.gmra.mxu0 %v188
    %v234 = vpop.f32.mrf.mxu0
    %v235 = vadd.f32 %v111, %v234
    %v236 = vpop.f32.mrf.mxu0
    %v237 = vadd.f32 %v111, %v236
    %238 = vdwg.mxu0
    %239 = vmatpush.bf16.msra.mxu0 0
    %240 = vmatpush.bf16.msra.mxu0 0
    %241 = vmatpush.bf16.msra.mxu0 0
    %242 = vmatpush.bf16.msra.mxu0 0
    %243 = vmatpush.bf16.msra.mxu0 0
    %244 = vmatpush.bf16.msra.mxu0 0
    %245 = vmatpush.bf16.msra.mxu0 0
    %246 = vmatpush.bf16.msra.mxu0 %v162
    %247 = vmatmul.bf16.gmra.mxu0 %v167
    %v248 = vpop.f32.mrf.mxu0
    %v249 = vadd.f32 %v112, %v248
    %v250 = vpop.f32.mrf.mxu0
    %v251 = vadd.f32 %v112, %v250
    %252 = vmatmul.bf16.gmra.mxu0 %v170
    %v253 = vpop.f32.mrf.mxu0
    %v254 = vadd.f32 %v112, %v253
    %v255 = vpop.f32.mrf.mxu0
    %v256 = vadd.f32 %v112, %v255
    %257 = vmatmul.bf16.gmra.mxu0 %v173
    %v258 = vpop.f32.mrf.mxu0
    %v259 = vadd.f32 %v112, %v258
    %v260 = vpop.f32.mrf.mxu0
    %v261 = vadd.f32 %v112, %v260
    %262 = vmatmul.bf16.gmra.mxu0 %v176
    %v263 = vpop.f32.mrf.mxu0
    %v264 = vadd.f32 %v112, %v263
    %v265 = vpop.f32.mrf.mxu0
    %v266 = vadd.f32 %v112, %v265
    %267 = vmatmul.bf16.gmra.mxu0 %v179
    %v268 = vpop.f32.mrf.mxu0
    %v269 = vadd.f32 %v112, %v268
    %v270 = vpop.f32.mrf.mxu0
    %v271 = vadd.f32 %v112, %v270
    %272 = vmatmul.bf16.gmra.mxu0 %v182
    %v273 = vpop.f32.mrf.mxu0
    %v274 = vadd.f32 %v112, %v273
    %v275 = vpop.f32.mrf.mxu0
    %v276 = vadd.f32 %v112, %v275
    %277 = vmatmul.bf16.gmra.mxu0 %v185
    %v278 = vpop.f32.mrf.mxu0
    %v279 = vadd.f32 %v112, %v278
    %v280 = vpop.f32.mrf.mxu0
    %v281 = vadd.f32 %v112, %v280
    %282 = vmatmul.bf16.gmra.mxu0 %v188
    %v283 = vpop.f32.mrf.mxu0
    %v284 = vadd.f32 %v112, %v283
    %v285 = vpop.f32.mrf.mxu0
    %v286 = vadd.f32 %v112, %v285
    %287 = vdwg.mxu0
    %v288 = vpack.c.bf16 %v249, %v200
    %v289 = vpack.c.bf16 %v251, %v202
    %v290 = vpack.c.bf16 %v254, %v205
    %v291 = vpack.c.bf16 %v256, %v207
    %v292 = vpack.c.bf16 %v259, %v210
    %v293 = vpack.c.bf16 %v261, %v212
    %v294 = vpack.c.bf16 %v264, %v215
    %v295 = vpack.c.bf16 %v266, %v217
    %v296 = vpack.c.bf16 %v269, %v220
    %v297 = vpack.c.bf16 %v271, %v222
    %v298 = vpack.c.bf16 %v274, %v225
    %v299 = vpack.c.bf16 %v276, %v227
    %v300 = vpack.c.bf16 %v279, %v230
    %v301 = vpack.c.bf16 %v281, %v232
    %v302 = vpack.c.bf16 %v284, %v235
    %v303 = vpack.c.bf16 %v286, %v237
    %304 = vst [vmem:[#allocation2] sm:$0xff] %v288
    %305 = vst [vmem:[#allocation2 + $0x8] sm:$0xff] %v289
    %306 = vst [vmem:[#allocation2 + $0x10] sm:$0xff] %v290
    %307 = vst [vmem:[#allocation2 + $0x18] sm:$0xff] %v291
    %308 = vst [vmem:[#allocation2 + $0x20] sm:$0xff] %v292
    %309 = vst [vmem:[#allocation2 + $0x28] sm:$0xff] %v293
    %310 = vst [vmem:[#allocation2 + $0x30] sm:$0xff] %v294
    %311 = vst [vmem:[#allocation2 + $0x38] sm:$0xff] %v295
    %312 = vst [vmem:[#allocation2 + $0x40] sm:$0xff] %v296
    %313 = vst [vmem:[#allocation2 + $0x48] sm:$0xff] %v297
    %314 = vst [vmem:[#allocation2 + $0x50] sm:$0xff] %v298
    %315 = vst [vmem:[#allocation2 + $0x58] sm:$0xff] %v299
    %316 = vst [vmem:[#allocation2 + $0x60] sm:$0xff] %v300
    %317 = vst [vmem:[#allocation2 + $0x68] sm:$0xff] %v301
    %318 = vst [vmem:[#allocation2 + $0x70] sm:$0xff] %v302
    %319 = vst [vmem:[#allocation2 + $0x78] sm:$0xff] %v303
    %v320 = vlaneseq
    %v321 = vand.u32 %v320, 127
    %vm322 = vcmp.lt.s32.totalorder %v321, 32
    %v323 = vld [vmem:[#allocation4] sm:$0xff]
    %v324 = vld [vmem:[#allocation4 + $0x8] sm:$0xff]
    %v325 = vld [vmem:[#allocation4 + $0x10] sm:$0xff]
    %v326 = vld [vmem:[#allocation4 + $0x18] sm:$0xff]
    %v327 = vld [vmem:[#allocation4 + $0x20] sm:$0xff]
    %v328 = vld [vmem:[#allocation4 + $0x28] sm:$0xff]
    %v329 = vld [vmem:[#allocation4 + $0x30] sm:$0xff]
    %v330 = vld [vmem:[#allocation4 + $0x38] sm:$0xff]
    %v331 = vld [vmem:[#allocation2] sm:$0xff]
    %v332 = vld [vmem:[#allocation2 + $0x8] sm:$0xff]
    %s333 = scalar_lea.vmem [#allocation2], 112
    %v334 = vld [vmem:[%s333] sm:$0xff]
    %v335 = vld [vmem:[%s333 + $0x8] sm:$0xff]
    %v338 = vunpack.c.l.b16 %v331
    %v339 = vunpack.c.l.b16 %v332
    %v340 = vpack.c.b16 %v339, %v338
    %v344 = vunpack.c.h.b16 %v334
    %v345 = vunpack.c.h.b16 %v335
    %v346 = vpack.c.b16 %v345, %v344
    %v348 = vunpack.c.l.bf16 %v340
    %v349 = vunpack.c.l.bf16 %v346
    %v350 = vunpack.c.h.bf16 %v340
    %v351 = vunpack.c.h.bf16 %v346
    %v360 = vunpack.c.l.b16 %v323
    %v361 = vunpack.c.h.b16 %v323
    %v362 = vunpack.c.l.b16 %v324
    %v363 = vunpack.c.h.b16 %v324
    %v364 = vunpack.c.l.b16 %v325
    %v365 = vunpack.c.h.b16 %v325
    %v366 = vunpack.c.l.b16 %v326
    %v367 = vunpack.c.h.b16 %v326
    %v368 = vunpack.c.l.b16 %v327
    %v369 = vunpack.c.h.b16 %v327
    %v370 = vunpack.c.l.b16 %v328
    %v371 = vunpack.c.h.b16 %v328
    %v372 = vunpack.c.l.b16 %v329
    %v373 = vunpack.c.h.b16 %v329
    %v374 = vunpack.c.l.b16 %v330
    %v375 = vunpack.c.h.b16 %v330
    %v376 = vpack.c.b16 %v362, %v360
    %v377 = vpack.c.b16 %v363, %v361
    %v378 = vpack.c.b16 %v366, %v364
    %v379 = vpack.c.b16 %v367, %v365
    %v380 = vpack.c.b16 %v370, %v368
    %v381 = vpack.c.b16 %v371, %v369
    %v382 = vpack.c.b16 %v374, %v372
    %v383 = vpack.c.b16 %v375, %v373
    %vm392 = vcmask 523264
    %v394 = vsel %vm392, 0, 0
    %396 = vmatpush.bf16.msra.mxu0 0
    %397 = vmatpush.bf16.msra.mxu0 0
    %398 = vmatpush.bf16.msra.mxu0 0
    %399 = vmatpush.bf16.msra.mxu0 0
    %400 = vmatpush.bf16.msra.mxu0 %v382
    %401 = vmatpush.bf16.msra.mxu0 %v380
    %402 = vmatpush.bf16.msra.mxu0 %v378
    %403 = vmatpush.bf16.msra.mxu0 %v376
    %404 = vmatmul.bf16.gmra.mxu0 %v394
    %v405 = vpop.f32.mrf.mxu0
    %v406 = vadd.f32 0.0, %v405
    %v407 = vpop.f32.mrf.mxu0
    %v408 = vadd.f32 0.0, %v407
    %409 = vdwg.mxu0
    %410 = vmatpush.bf16.msra.mxu0 0
    %411 = vmatpush.bf16.msra.mxu0 0
    %412 = vmatpush.bf16.msra.mxu0 0
    %413 = vmatpush.bf16.msra.mxu0 0
    %414 = vmatpush.bf16.msra.mxu0 %v383
    %415 = vmatpush.bf16.msra.mxu0 %v381
    %416 = vmatpush.bf16.msra.mxu0 %v379
    %417 = vmatpush.bf16.msra.mxu0 %v377
    %418 = vmatmul.bf16.gmra.mxu0 %v394
    %v419 = vpop.f32.mrf.mxu0
    %v420 = vadd.f32 0.0, %v419
    %v421 = vpop.f32.mrf.mxu0
    %v422 = vadd.f32 0.0, %v421
    %423 = vdwg.mxu0
    %v424 = vadd.f32 %v348, %v406
    %v425 = vadd.f32 %v349, %v420
    %v426 = vadd.f32 %v350, %v408
    %v427 = vadd.f32 %v351, %v422
    %v428 = vxor.u32 %v424, 2147483648
    %v429 = vxor.u32 %v426, 2147483648
    %v430 = vmul.f32 %v428, 1.442695
    %v431 = vpow.pop %v430
    %v432 = vmul.f32 %v429, 1.442695
    %v433 = vpow.pop %v432
    %v434 = vadd.f32 %v431, 1.0
    %v435 = vadd.f32 %v433, 1.0
    %v436 = vrcp.pop %v434
    %v437 = vmul.f32 %v434, %v436
    %v438 = vsub.f32 1.0, %v437
    %v439 = vmul.f32 %v436, %v438
    %v440 = vadd.f32 %v436, %v439
    %vm441 = vweird.f32 %v434
    %vm442 = vweird.f32 %v436
    %vm443 = vmor %vm441, %vm442
    %v444 = vsel %vm443, %v436, %v440
    %v445 = vand.u32 2147483647, %v434
    %vm446 = vcmp.eq.f32.partialorder %v445, 8.507059e+37
    %v447 = vand.u32 %v434, 2147483648
    %v448 = vor.u32 1.1754944e-38, %v447
    %v449 = vsel %vm446, %v448, %v444
    %v450 = vmul.f32 1.0, %v449
    %v451 = vrcp.pop %v435
    %v452 = vmul.f32 %v435, %v451
    %v453 = vsub.f32 1.0, %v452
    %v454 = vmul.f32 %v451, %v453
    %v455 = vadd.f32 %v451, %v454
    %vm456 = vweird.f32 %v435
    %vm457 = vweird.f32 %v451
    %vm458 = vmor %vm456, %vm457
    %v459 = vsel %vm458, %v451, %v455
    %v460 = vand.u32 2147483647, %v435
    %vm461 = vcmp.eq.f32.partialorder %v460, 8.507059e+37
    %v462 = vand.u32 %v435, 2147483648
    %v463 = vor.u32 1.1754944e-38, %v462
    %v464 = vsel %vm461, %v463, %v459
    %v465 = vmul.f32 1.0, %v464
    %v466 = vtanh.pop %v424
    %v467 = vtanh.pop %v426
    %v468 = vmul.f32 %v450, 0.0
    %v469 = vmul.f32 %v465, 0.0
    %472 = vrot.lane.b32.xlu0 %v466, 32
    %v473 = vpop.permute.xlu0 %472
    %474 = vrot.lane.b32.xlu0 %v467, 32
    %v475 = vpop.permute.xlu0 %474
    %v478 = vmul.f32 %v450, %v473
    %v479 = vmul.f32 %v465, %v475
    %482 = vrot.lane.b32.xlu0 %v478, 32
    %v483 = vpop.permute.xlu0 %482
    %484 = vrot.lane.b32.xlu0 %v479, 32
    %v485 = vpop.permute.xlu0 %484
    %v488 = vadd.f32 %v468, %v483
    %v489 = vadd.f32 %v469, %v485
    %v490 = vtanh.pop %v488
    %v491 = vtanh.pop %v489
    %494 = vrot.lane.b32.xlu0 %v490, 32
    %v495 = vpop.permute.xlu0 %494
    %496 = vrot.lane.b32.xlu0 %v491, 32
    %v497 = vpop.permute.xlu0 %496
    %v500 = vmul.f32 %v450, %v495
    %v501 = vmul.f32 %v465, %v497
    %v502 = vxor.u32 %v425, 2147483648
    %v503 = vxor.u32 %v427, 2147483648
    %v504 = vmul.f32 %v502, 1.442695
    %v505 = vpow.pop %v504
    %v506 = vmul.f32 %v503, 1.442695
    %v507 = vpow.pop %v506
    %v508 = vadd.f32 %v505, 1.0
    %v509 = vadd.f32 %v507, 1.0
    %v510 = vrcp.pop %v508
    %v511 = vmul.f32 %v508, %v510
    %v512 = vsub.f32 1.0, %v511
    %v513 = vmul.f32 %v510, %v512
    %v514 = vadd.f32 %v510, %v513
    %vm515 = vweird.f32 %v508
    %vm516 = vweird.f32 %v510
    %vm517 = vmor %vm515, %vm516
    %v518 = vsel %vm517, %v510, %v514
    %v519 = vand.u32 2147483647, %v508
    %vm520 = vcmp.eq.f32.partialorder %v519, 8.507059e+37
    %v521 = vand.u32 %v508, 2147483648
    %v522 = vor.u32 1.1754944e-38, %v521
    %v523 = vsel %vm520, %v522, %v518
    %v524 = vmul.f32 1.0, %v523
    %v525 = vrcp.pop %v509
    %v526 = vmul.f32 %v509, %v525
    %v527 = vsub.f32 1.0, %v526
    %v528 = vmul.f32 %v525, %v527
    %v529 = vadd.f32 %v525, %v528
    %vm530 = vweird.f32 %v509
    %vm531 = vweird.f32 %v525
    %vm532 = vmor %vm530, %vm531
    %v533 = vsel %vm532, %v525, %v529
    %v534 = vand.u32 2147483647, %v509
    %vm535 = vcmp.eq.f32.partialorder %v534, 8.507059e+37
    %v536 = vand.u32 %v509, 2147483648
    %v537 = vor.u32 1.1754944e-38, %v536
    %v538 = vsel %vm535, %v537, %v533
    %v539 = vmul.f32 1.0, %v538
    %v540 = vtanh.pop %v425
    %v541 = vtanh.pop %v427
    %v542 = vmul.f32 %v524, 0.0
    %v543 = vmul.f32 %v539, 0.0
    %546 = vrot.lane.b32.xlu0 %v540, 32
    %v547 = vpop.permute.xlu0 %546
    %548 = vrot.lane.b32.xlu0 %v541, 32
    %v549 = vpop.permute.xlu0 %548
    %v552 = vmul.f32 %v524, %v547
    %v553 = vmul.f32 %v539, %v549
    %556 = vrot.lane.b32.xlu0 %v552, 32
    %v557 = vpop.permute.xlu0 %556
    %558 = vrot.lane.b32.xlu0 %v553, 32
    %v559 = vpop.permute.xlu0 %558
    %v562 = vadd.f32 %v542, %v557
    %v563 = vadd.f32 %v543, %v559
    %v564 = vtanh.pop %v562
    %v565 = vtanh.pop %v563
    %568 = vrot.lane.b32.xlu0 %v564, 32
    %v569 = vpop.permute.xlu0 %568
    %570 = vrot.lane.b32.xlu0 %v565, 32
    %v571 = vpop.permute.xlu0 %570
    %v574 = vmul.f32 %v524, %v569
    %v575 = vmul.f32 %v539, %v571
    %578 = vrot.lane.b32.xlu0 %v500, 64
    %v579 = vpop.permute.xlu0 %578
    %580 = vrot.lane.b32.xlu0 %v501, 64
    %v581 = vpop.permute.xlu0 %580
    %586 = vrot.lane.b32.xlu0 %v574, 96
    %v587 = vpop.permute.xlu0 %586
    %588 = vrot.lane.b32.xlu0 %v575, 96
    %v589 = vpop.permute.xlu0 %588
    %vm592 = vcmask 261120
    %v593 = vsel %vm592, %v579, %v587
    %v594 = vsel %vm592, %v581, %v589
    %597 = vrot.lane.b32.xlu0 %v488, 96
    %v598 = vpop.permute.xlu0 %597
    %599 = vrot.lane.b32.xlu0 %v489, 96
    %v600 = vpop.permute.xlu0 %599
    %v603 = vsel %vm592, %v598, %v562
    %v604 = vsel %vm592, %v600, %v563
    %v605 = vsel %vm322, 0, 7
    %606 = vset.pattern.permute.xlu0 0
    %607 = vperm.xlu0 %606, %v89
    %v608 = vpop.permute.xlu0 %607
    %609 = vset.pattern.permute.xlu0 0
    %610 = vperm.xlu0 %609, %v90
    %v611 = vpop.permute.xlu0 %610
    %vm612 = vcmp.gt.s32.totalorder %v608, %v605
    %vm613 = vcmp.gt.s32.totalorder %v611, %v605
    %v614 = vsel %vm612, %v593, 0.0
    %v615 = vsel %vm613, %v594, 0.0
    %v616 = vsel %vm612, %v603, 0.0
    %v617 = vsel %vm613, %v604, 0.0
    %618 = vst.msk [vmem:[#allocation3] sm:$0xff] %vm592, %v614
    %619 = vst.msk [vmem:[#allocation3 + $0x8] sm:$0xff] %vm592, %v615
    %s620 = scalar_lea.vmem [#allocation3], 112
    %vm621 = vcmask 523520
    %622 = vst.msk [vmem:[%s620] sm:$0xff] %vm621, %v614
    %623 = vst.msk [vmem:[%s620 + $0x8] sm:$0xff] %vm621, %v615
    %s624 = scalar_lea.vmem [#allocation2], 16
    %v625 = vld [vmem:[%s624] sm:$0xff]
    %v626 = vld [vmem:[%s624 + $0x8] sm:$0xff]
    %s627 = scalar_lea.vmem [#allocation2], 96
    %v628 = vld [vmem:[%s627] sm:$0xff]
    %v629 = vld [vmem:[%s627 + $0x8] sm:$0xff]
    %v632 = vunpack.c.l.b16 %v625
    %v633 = vunpack.c.l.b16 %v626
    %v634 = vpack.c.b16 %v633, %v632
    %v638 = vunpack.c.h.b16 %v628
    %v639 = vunpack.c.h.b16 %v629
    %v640 = vpack.c.b16 %v639, %v638
    %v642 = vunpack.c.l.bf16 %v634
    %v643 = vunpack.c.l.bf16 %v640
    %v644 = vunpack.c.h.bf16 %v634
    %v645 = vunpack.c.h.bf16 %v640
    %v646 = vpack.c.bf16 %v615, %v614
    %v648 = vsel %vm392, %v646, 0
    %650 = vmatpush.bf16.msra.mxu0 0
    %651 = vmatpush.bf16.msra.mxu0 0
    %652 = vmatpush.bf16.msra.mxu0 0
    %653 = vmatpush.bf16.msra.mxu0 0
    %654 = vmatpush.bf16.msra.mxu0 %v382
    %655 = vmatpush.bf16.msra.mxu0 %v380
    %656 = vmatpush.bf16.msra.mxu0 %v378
    %657 = vmatpush.bf16.msra.mxu0 %v376
    %658 = vmatmul.bf16.gmra.mxu0 %v648
    %v659 = vpop.f32.mrf.mxu0
    %v660 = vadd.f32 0.0, %v659
    %v661 = vpop.f32.mrf.mxu0
    %v662 = vadd.f32 0.0, %v661
    %663 = vdwg.mxu0
    %664 = vmatpush.bf16.msra.mxu0 0
    %665 = vmatpush.bf16.msra.mxu0 0
    %666 = vmatpush.bf16.msra.mxu0 0
    %667 = vmatpush.bf16.msra.mxu0 0
    %668 = vmatpush.bf16.msra.mxu0 %v383
    %669 = vmatpush.bf16.msra.mxu0 %v381
    %670 = vmatpush.bf16.msra.mxu0 %v379
    %671 = vmatpush.bf16.msra.mxu0 %v377
    %672 = vmatmul.bf16.gmra.mxu0 %v648
    %v673 = vpop.f32.mrf.mxu0
    %v674 = vadd.f32 0.0, %v673
    %v675 = vpop.f32.mrf.mxu0
    %v676 = vadd.f32 0.0, %v675
    %677 = vdwg.mxu0
    %v678 = vadd.f32 %v642, %v660
    %v679 = vadd.f32 %v643, %v674
    %v680 = vadd.f32 %v644, %v662
    %v681 = vadd.f32 %v645, %v676
    %v682 = vxor.u32 %v678, 2147483648
    %v683 = vxor.u32 %v680, 2147483648
    %v684 = vmul.f32 %v682, 1.442695
    %v685 = vpow.pop %v684
    %v686 = vmul.f32 %v683, 1.442695
    %v687 = vpow.pop %v686
    %v688 = vadd.f32 %v685, 1.0
    %v689 = vadd.f32 %v687, 1.0
    %v690 = vrcp.pop %v688
    %v691 = vmul.f32 %v688, %v690
    %v692 = vsub.f32 1.0, %v691
    %v693 = vmul.f32 %v690, %v692
    %v694 = vadd.f32 %v690, %v693
    %vm695 = vweird.f32 %v688
    %vm696 = vweird.f32 %v690
    %vm697 = vmor %vm695, %vm696
    %v698 = vsel %vm697, %v690, %v694
    %v699 = vand.u32 2147483647, %v688
    %vm700 = vcmp.eq.f32.partialorder %v699, 8.507059e+37
    %v701 = vand.u32 %v688, 2147483648
    %v702 = vor.u32 1.1754944e-38, %v701
    %v703 = vsel %vm700, %v702, %v698
    %v704 = vmul.f32 1.0, %v703
    %v705 = vrcp.pop %v689
    %v706 = vmul.f32 %v689, %v705
    %v707 = vsub.f32 1.0, %v706
    %v708 = vmul.f32 %v705, %v707
    %v709 = vadd.f32 %v705, %v708
    %vm710 = vweird.f32 %v689
    %vm711 = vweird.f32 %v705
    %vm712 = vmor %vm710, %vm711
    %v713 = vsel %vm712, %v705, %v709
    %v714 = vand.u32 2147483647, %v689
    %vm715 = vcmp.eq.f32.partialorder %v714, 8.507059e+37
    %v716 = vand.u32 %v689, 2147483648
    %v717 = vor.u32 1.1754944e-38, %v716
    %v718 = vsel %vm715, %v717, %v713
    %v719 = vmul.f32 1.0, %v718
    %v720 = vtanh.pop %v678
    %v721 = vtanh.pop %v680
    %724 = vrot.lane.b32.xlu0 %v616, 32
    %v725 = vpop.permute.xlu0 %724
    %726 = vrot.lane.b32.xlu0 %v617, 32
    %v727 = vpop.permute.xlu0 %726
    %v730 = vmul.f32 %v704, %v725
    %v731 = vmul.f32 %v719, %v727
    %734 = vrot.lane.b32.xlu0 %v720, 32
    %v735 = vpop.permute.xlu0 %734
    %736 = vrot.lane.b32.xlu0 %v721, 32
    %v737 = vpop.permute.xlu0 %736
    %v740 = vmul.f32 %v704, %v735
    %v741 = vmul.f32 %v719, %v737
    %744 = vrot.lane.b32.xlu0 %v740, 32
    %v745 = vpop.permute.xlu0 %744
    %746 = vrot.lane.b32.xlu0 %v741, 32
    %v747 = vpop.permute.xlu0 %746
    %v750 = vadd.f32 %v730, %v745
    %v751 = vadd.f32 %v731, %v747
    %v752 = vtanh.pop %v750
    %v753 = vtanh.pop %v751
    %756 = vrot.lane.b32.xlu0 %v752, 32
    %v757 = vpop.permute.xlu0 %756
    %758 = vrot.lane.b32.xlu0 %v753, 32
    %v759 = vpop.permute.xlu0 %758
    %v762 = vmul.f32 %v704, %v757
    %v763 = vmul.f32 %v719, %v759
    %v764 = vxor.u32 %v679, 2147483648
    %v765 = vxor.u32 %v681, 2147483648
    %v766 = vmul.f32 %v764, 1.442695
    %v767 = vpow.pop %v766
    %v768 = vmul.f32 %v765, 1.442695
    %v769 = vpow.pop %v768
    %v770 = vadd.f32 %v767, 1.0
    %v771 = vadd.f32 %v769, 1.0
    %v772 = vrcp.pop %v770
    %v773 = vmul.f32 %v770, %v772
    %v774 = vsub.f32 1.0, %v773
    %v775 = vmul.f32 %v772, %v774
    %v776 = vadd.f32 %v772, %v775
    %vm777 = vweird.f32 %v770
    %vm778 = vweird.f32 %v772
    %vm779 = vmor %vm777, %vm778
    %v780 = vsel %vm779, %v772, %v776
    %v781 = vand.u32 2147483647, %v770
    %vm782 = vcmp.eq.f32.partialorder %v781, 8.507059e+37
    %v783 = vand.u32 %v770, 2147483648
    %v784 = vor.u32 1.1754944e-38, %v783
    %v785 = vsel %vm782, %v784, %v780
    %v786 = vmul.f32 1.0, %v785
    %v787 = vrcp.pop %v771
    %v788 = vmul.f32 %v771, %v787
    %v789 = vsub.f32 1.0, %v788
    %v790 = vmul.f32 %v787, %v789
    %v791 = vadd.f32 %v787, %v790
    %vm792 = vweird.f32 %v771
    %vm793 = vweird.f32 %v787
    %vm794 = vmor %vm792, %vm793
    %v795 = vsel %vm794, %v787, %v791
    %v796 = vand.u32 2147483647, %v771
    %vm797 = vcmp.eq.f32.partialorder %v796, 8.507059e+37
    %v798 = vand.u32 %v771, 2147483648
    %v799 = vor.u32 1.1754944e-38, %v798
    %v800 = vsel %vm797, %v799, %v795
    %v801 = vmul.f32 1.0, %v800
    %v802 = vtanh.pop %v679
    %v803 = vtanh.pop %v681
    %v804 = vmul.f32 %v786, %v616
    %v805 = vmul.f32 %v801, %v617
    %808 = vrot.lane.b32.xlu0 %v802, 32
    %v809 = vpop.permute.xlu0 %808
    %810 = vrot.lane.b32.xlu0 %v803, 32
    %v811 = vpop.permute.xlu0 %810
    %v814 = vmul.f32 %v786, %v809
    %v815 = vmul.f32 %v801, %v811
    %818 = vrot.lane.b32.xlu0 %v814, 32
    %v819 = vpop.permute.xlu0 %818
    %820 = vrot.lane.b32.xlu0 %v815, 32
    %v821 = vpop.permute.xlu0 %820
    %v824 = vadd.f32 %v804, %v819
    %v825 = vadd.f32 %v805, %v821
    %v826 = vtanh.pop %v824
    %v827 = vtanh.pop %v825
    %830 = vrot.lane.b32.xlu0 %v826, 32
    %v831 = vpop.permute.xlu0 %830
    %832 = vrot.lane.b32.xlu0 %v827, 32
    %v833 = vpop.permute.xlu0 %832
    %v836 = vmul.f32 %v786, %v831
    %v837 = vmul.f32 %v801, %v833
    %840 = vrot.lane.b32.xlu0 %v762, 64
    %v841 = vpop.permute.xlu0 %840
    %842 = vrot.lane.b32.xlu0 %v763, 64
    %v843 = vpop.permute.xlu0 %842
    %848 = vrot.lane.b32.xlu0 %v836, 96
    %v849 = vpop.permute.xlu0 %848
    %850 = vrot.lane.b32.xlu0 %v837, 96
    %v851 = vpop.permute.xlu0 %850
    %v854 = vsel %vm592, %v841, %v849
    %v855 = vsel %vm592, %v843, %v851
    %858 = vrot.lane.b32.xlu0 %v750, 96
    %v859 = vpop.permute.xlu0 %858
    %860 = vrot.lane.b32.xlu0 %v751, 96
    %v861 = vpop.permute.xlu0 %860
    %v864 = vsel %vm592, %v859, %v824
    %v865 = vsel %vm592, %v861, %v825
    %v866 = vsel %vm322, 1, 6
    %vm867 = vcmp.gt.s32.totalorder %v608, %v866
    %vm868 = vcmp.gt.s32.totalorder %v611, %v866
    %v869 = vsel %vm867, %v854, 0.0
    %v870 = vsel %vm868, %v855, 0.0
    %v871 = vsel %vm867, %v864, %v616
    %v872 = vsel %vm868, %v865, %v617
    %s873 = scalar_lea.vmem [#allocation3], 16
    %874 = vst.msk [vmem:[%s873] sm:$0xff] %vm592, %v869
    %875 = vst.msk [vmem:[%s873 + $0x8] sm:$0xff] %vm592, %v870
    %s876 = scalar_lea.vmem [#allocation3], 96
    %877 = vst.msk [vmem:[%s876] sm:$0xff] %vm621, %v869
    %878 = vst.msk [vmem:[%s876 + $0x8] sm:$0xff] %vm621, %v870
    %s879 = scalar_lea.vmem [#allocation2], 32
    %v880 = vld [vmem:[%s879] sm:$0xff]
    %v881 = vld [vmem:[%s879 + $0x8] sm:$0xff]
    %s882 = scalar_lea.vmem [#allocation2], 80
    %v883 = vld [vmem:[%s882] sm:$0xff]
    %v884 = vld [vmem:[%s882 + $0x8] sm:$0xff]
    %v887 = vunpack.c.l.b16 %v880
    %v888 = vunpack.c.l.b16 %v881
    %v889 = vpack.c.b16 %v888, %v887
    %v893 = vunpack.c.h.b16 %v883
    %v894 = vunpack.c.h.b16 %v884
    %v895 = vpack.c.b16 %v894, %v893
    %v897 = vunpack.c.l.bf16 %v889
    %v898 = vunpack.c.l.bf16 %v895
    %v899 = vunpack.c.h.bf16 %v889
    %v900 = vunpack.c.h.bf16 %v895
    %v901 = vpack.c.bf16 %v870, %v869
    %v903 = vsel %vm392, %v901, 0
    %905 = vmatpush.bf16.msra.mxu0 0
    %906 = vmatpush.bf16.msra.mxu0 0
    %907 = vmatpush.bf16.msra.mxu0 0
    %908 = vmatpush.bf16.msra.mxu0 0
    %909 = vmatpush.bf16.msra.mxu0 %v382
    %910 = vmatpush.bf16.msra.mxu0 %v380
    %911 = vmatpush.bf16.msra.mxu0 %v378
    %912 = vmatpush.bf16.msra.mxu0 %v376
    %913 = vmatmul.bf16.gmra.mxu0 %v903
    %v914 = vpop.f32.mrf.mxu0
    %v915 = vadd.f32 0.0, %v914
    %v916 = vpop.f32.mrf.mxu0
    %v917 = vadd.f32 0.0, %v916
    %918 = vdwg.mxu0
    %919 = vmatpush.bf16.msra.mxu0 0
    %920 = vmatpush.bf16.msra.mxu0 0
    %921 = vmatpush.bf16.msra.mxu0 0
    %922 = vmatpush.bf16.msra.mxu0 0
    %923 = vmatpush.bf16.msra.mxu0 %v383
    %924 = vmatpush.bf16.msra.mxu0 %v381
    %925 = vmatpush.bf16.msra.mxu0 %v379
    %926 = vmatpush.bf16.msra.mxu0 %v377
    %927 = vmatmul.bf16.gmra.mxu0 %v903
    %v928 = vpop.f32.mrf.mxu0
    %v929 = vadd.f32 0.0, %v928
    %v930 = vpop.f32.mrf.mxu0
    %v931 = vadd.f32 0.0, %v930
    %932 = vdwg.mxu0
    %v933 = vadd.f32 %v897, %v915
    %v934 = vadd.f32 %v898, %v929
    %v935 = vadd.f32 %v899, %v917
    %v936 = vadd.f32 %v900, %v931
    %v937 = vxor.u32 %v933, 2147483648
    %v938 = vxor.u32 %v935, 2147483648
    %v939 = vmul.f32 %v937, 1.442695
    %v940 = vpow.pop %v939
    %v941 = vmul.f32 %v938, 1.442695
    %v942 = vpow.pop %v941
    %v943 = vadd.f32 %v940, 1.0
    %v944 = vadd.f32 %v942, 1.0
    %v945 = vrcp.pop %v943
    %v946 = vmul.f32 %v943, %v945
    %v947 = vsub.f32 1.0, %v946
    %v948 = vmul.f32 %v945, %v947
    %v949 = vadd.f32 %v945, %v948
    %vm950 = vweird.f32 %v943
    %vm951 = vweird.f32 %v945
    %vm952 = vmor %vm950, %vm951
    %v953 = vsel %vm952, %v945, %v949
    %v954 = vand.u32 2147483647, %v943
    %vm955 = vcmp.eq.f32.partialorder %v954, 8.507059e+37
    %v956 = vand.u32 %v943, 2147483648
    %v957 = vor.u32 1.1754944e-38, %v956
    %v958 = vsel %vm955, %v957, %v953
    %v959 = vmul.f32 1.0, %v958
    %v960 = vrcp.pop %v944
    %v961 = vmul.f32 %v944, %v960
    %v962 = vsub.f32 1.0, %v961
    %v963 = vmul.f32 %v960, %v962
    %v964 = vadd.f32 %v960, %v963
    %vm965 = vweird.f32 %v944
    %vm966 = vweird.f32 %v960
    %vm967 = vmor %vm965, %vm966
    %v968 = vsel %vm967, %v960, %v964
    %v969 = vand.u32 2147483647, %v944
    %vm970 = vcmp.eq.f32.partialorder %v969, 8.507059e+37
    %v971 = vand.u32 %v944, 2147483648
    %v972 = vor.u32 1.1754944e-38, %v971
    %v973 = vsel %vm970, %v972, %v968
    %v974 = vmul.f32 1.0, %v973
    %v975 = vtanh.pop %v933
    %v976 = vtanh.pop %v935
    %979 = vrot.lane.b32.xlu0 %v871, 32
    %v980 = vpop.permute.xlu0 %979
    %981 = vrot.lane.b32.xlu0 %v872, 32
    %v982 = vpop.permute.xlu0 %981
    %v985 = vmul.f32 %v959, %v980
    %v986 = vmul.f32 %v974, %v982
    %989 = vrot.lane.b32.xlu0 %v975, 32
    %v990 = vpop.permute.xlu0 %989
    %991 = vrot.lane.b32.xlu0 %v976, 32
    %v992 = vpop.permute.xlu0 %991
    %v995 = vmul.f32 %v959, %v990
    %v996 = vmul.f32 %v974, %v992
    %999 = vrot.lane.b32.xlu0 %v995, 32
    %v1000 = vpop.permute.xlu0 %999
    %1001 = vrot.lane.b32.xlu0 %v996, 32
    %v1002 = vpop.permute.xlu0 %1001
    %v1005 = vadd.f32 %v985, %v1000
    %v1006 = vadd.f32 %v986, %v1002
    %v1007 = vtanh.pop %v1005
    %v1008 = vtanh.pop %v1006
    %1011 = vrot.lane.b32.xlu0 %v1007, 32
    %v1012 = vpop.permute.xlu0 %1011
    %1013 = vrot.lane.b32.xlu0 %v1008, 32
    %v1014 = vpop.permute.xlu0 %1013
    %v1017 = vmul.f32 %v959, %v1012
    %v1018 = vmul.f32 %v974, %v1014
    %v1019 = vxor.u32 %v934, 2147483648
    %v1020 = vxor.u32 %v936, 2147483648
    %v1021 = vmul.f32 %v1019, 1.442695
    %v1022 = vpow.pop %v1021
    %v1023 = vmul.f32 %v1020, 1.442695
    %v1024 = vpow.pop %v1023
    %v1025 = vadd.f32 %v1022, 1.0
    %v1026 = vadd.f32 %v1024, 1.0
    %v1027 = vrcp.pop %v1025
    %v1028 = vmul.f32 %v1025, %v1027
    %v1029 = vsub.f32 1.0, %v1028
    %v1030 = vmul.f32 %v1027, %v1029
    %v1031 = vadd.f32 %v1027, %v1030
    %vm1032 = vweird.f32 %v1025
    %vm1033 = vweird.f32 %v1027
    %vm1034 = vmor %vm1032, %vm1033
    %v1035 = vsel %vm1034, %v1027, %v1031
    %v1036 = vand.u32 2147483647, %v1025
    %vm1037 = vcmp.eq.f32.partialorder %v1036, 8.507059e+37
    %v1038 = vand.u32 %v1025, 2147483648
    %v1039 = vor.u32 1.1754944e-38, %v1038
    %v1040 = vsel %vm1037, %v1039, %v1035
    %v1041 = vmul.f32 1.0, %v1040
    %v1042 = vrcp.pop %v1026
    %v1043 = vmul.f32 %v1026, %v1042
    %v1044 = vsub.f32 1.0, %v1043
    %v1045 = vmul.f32 %v1042, %v1044
    %v1046 = vadd.f32 %v1042, %v1045
    %vm1047 = vweird.f32 %v1026
    %vm1048 = vweird.f32 %v1042
    %vm1049 = vmor %vm1047, %vm1048
    %v1050 = vsel %vm1049, %v1042, %v1046
    %v1051 = vand.u32 2147483647, %v1026
    %vm1052 = vcmp.eq.f32.partialorder %v1051, 8.507059e+37
    %v1053 = vand.u32 %v1026, 2147483648
    %v1054 = vor.u32 1.1754944e-38, %v1053
    %v1055 = vsel %vm1052, %v1054, %v1050
    %v1056 = vmul.f32 1.0, %v1055
    %v1057 = vtanh.pop %v934
    %v1058 = vtanh.pop %v936
    %v1059 = vmul.f32 %v1041, %v871
    %v1060 = vmul.f32 %v1056, %v872
    %1063 = vrot.lane.b32.xlu0 %v1057, 32
    %v1064 = vpop.permute.xlu0 %1063
    %1065 = vrot.lane.b32.xlu0 %v1058, 32
    %v1066 = vpop.permute.xlu0 %1065
    %v1069 = vmul.f32 %v1041, %v1064
    %v1070 = vmul.f32 %v1056, %v1066
    %1073 = vrot.lane.b32.xlu0 %v1069, 32
    %v1074 = vpop.permute.xlu0 %1073
    %1075 = vrot.lane.b32.xlu0 %v1070, 32
    %v1076 = vpop.permute.xlu0 %1075
    %v1079 = vadd.f32 %v1059, %v1074
    %v1080 = vadd.f32 %v1060, %v1076
    %v1081 = vtanh.pop %v1079
    %v1082 = vtanh.pop %v1080
    %1085 = vrot.lane.b32.xlu0 %v1081, 32
    %v1086 = vpop.permute.xlu0 %1085
    %1087 = vrot.lane.b32.xlu0 %v1082, 32
    %v1088 = vpop.permute.xlu0 %1087
    %v1091 = vmul.f32 %v1041, %v1086
    %v1092 = vmul.f32 %v1056, %v1088
    %1095 = vrot.lane.b32.xlu0 %v1017, 64
    %v1096 = vpop.permute.xlu0 %1095
    %1097 = vrot.lane.b32.xlu0 %v1018, 64
    %v1098 = vpop.permute.xlu0 %1097
    %1103 = vrot.lane.b32.xlu0 %v1091, 96
    %v1104 = vpop.permute.xlu0 %1103
    %1105 = vrot.lane.b32.xlu0 %v1092, 96
    %v1106 = vpop.permute.xlu0 %1105
    %v1109 = vsel %vm592, %v1096, %v1104
    %v1110 = vsel %vm592, %v1098, %v1106
    %1113 = vrot.lane.b32.xlu0 %v1005, 96
    %v1114 = vpop.permute.xlu0 %1113
    %1115 = vrot.lane.b32.xlu0 %v1006, 96
    %v1116 = vpop.permute.xlu0 %1115
    %v1119 = vsel %vm592, %v1114, %v1079
    %v1120 = vsel %vm592, %v1116, %v1080
    %v1121 = vsel %vm322, 2, 5
    %vm1122 = vcmp.gt.s32.totalorder %v608, %v1121
    %vm1123 = vcmp.gt.s32.totalorder %v611, %v1121
    %v1124 = vsel %vm1122, %v1109, 0.0
    %v1125 = vsel %vm1123, %v1110, 0.0
    %v1126 = vsel %vm1122, %v1119, %v871
    %v1127 = vsel %vm1123, %v1120, %v872
    %s1128 = scalar_lea.vmem [#allocation3], 32
    %1129 = vst.msk [vmem:[%s1128] sm:$0xff] %vm592, %v1124
    %1130 = vst.msk [vmem:[%s1128 + $0x8] sm:$0xff] %vm592, %v1125
    %s1131 = scalar_lea.vmem [#allocation3], 80
    %1132 = vst.msk [vmem:[%s1131] sm:$0xff] %vm621, %v1124
    %1133 = vst.msk [vmem:[%s1131 + $0x8] sm:$0xff] %vm621, %v1125
    %s1134 = scalar_lea.vmem [#allocation2], 48
    %v1135 = vld [vmem:[%s1134] sm:$0xff]
    %v1136 = vld [vmem:[%s1134 + $0x8] sm:$0xff]
    %s1137 = scalar_lea.vmem [#allocation2], 64
    %v1138 = vld [vmem:[%s1137] sm:$0xff]
    %v1139 = vld [vmem:[%s1137 + $0x8] sm:$0xff]
    %v1142 = vunpack.c.l.b16 %v1135
    %v1143 = vunpack.c.l.b16 %v1136
    %v1144 = vpack.c.b16 %v1143, %v1142
    %v1148 = vunpack.c.h.b16 %v1138
    %v1149 = vunpack.c.h.b16 %v1139
    %v1150 = vpack.c.b16 %v1149, %v1148
    %v1152 = vunpack.c.l.bf16 %v1144
    %v1153 = vunpack.c.l.bf16 %v1150
    %v1154 = vunpack.c.h.bf16 %v1144
    %v1155 = vunpack.c.h.bf16 %v1150
    %v1156 = vpack.c.bf16 %v1125, %v1124
    %v1158 = vsel %vm392, %v1156, 0
    %1160 = vmatpush.bf16.msra.mxu0 0
    %1161 = vmatpush.bf16.msra.mxu0 0
    %1162 = vmatpush.bf16.msra.mxu0 0
    %1163 = vmatpush.bf16.msra.mxu0 0
    %1164 = vmatpush.bf16.msra.mxu0 %v382
    %1165 = vmatpush.bf16.msra.mxu0 %v380
    %1166 = vmatpush.bf16.msra.mxu0 %v378
    %1167 = vmatpush.bf16.msra.mxu0 %v376
    %1168 = vmatmul.bf16.gmra.mxu0 %v1158
    %v1169 = vpop.f32.mrf.mxu0
    %v1170 = vadd.f32 0.0, %v1169
    %v1171 = vpop.f32.mrf.mxu0
    %v1172 = vadd.f32 0.0, %v1171
    %1173 = vdwg.mxu0
    %1174 = vmatpush.bf16.msra.mxu0 0
    %1175 = vmatpush.bf16.msra.mxu0 0
    %1176 = vmatpush.bf16.msra.mxu0 0
    %1177 = vmatpush.bf16.msra.mxu0 0
    %1178 = vmatpush.bf16.msra.mxu0 %v383
    %1179 = vmatpush.bf16.msra.mxu0 %v381
    %1180 = vmatpush.bf16.msra.mxu0 %v379
    %1181 = vmatpush.bf16.msra.mxu0 %v377
    %1182 = vmatmul.bf16.gmra.mxu0 %v1158
    %v1183 = vpop.f32.mrf.mxu0
    %v1184 = vadd.f32 0.0, %v1183
    %v1185 = vpop.f32.mrf.mxu0
    %v1186 = vadd.f32 0.0, %v1185
    %1187 = vdwg.mxu0
    %v1188 = vadd.f32 %v1152, %v1170
    %v1189 = vadd.f32 %v1153, %v1184
    %v1190 = vadd.f32 %v1154, %v1172
    %v1191 = vadd.f32 %v1155, %v1186
    %v1192 = vxor.u32 %v1188, 2147483648
    %v1193 = vxor.u32 %v1190, 2147483648
    %v1194 = vmul.f32 %v1192, 1.442695
    %v1195 = vpow.pop %v1194
    %v1196 = vmul.f32 %v1193, 1.442695
    %v1197 = vpow.pop %v1196
    %v1198 = vadd.f32 %v1195, 1.0
    %v1199 = vadd.f32 %v1197, 1.0
    %v1200 = vrcp.pop %v1198
    %v1201 = vmul.f32 %v1198, %v1200
    %v1202 = vsub.f32 1.0, %v1201
    %v1203 = vmul.f32 %v1200, %v1202
    %v1204 = vadd.f32 %v1200, %v1203
    %vm1205 = vweird.f32 %v1198
    %vm1206 = vweird.f32 %v1200
    %vm1207 = vmor %vm1205, %vm1206
    %v1208 = vsel %vm1207, %v1200, %v1204
    %v1209 = vand.u32 2147483647, %v1198
    %vm1210 = vcmp.eq.f32.partialorder %v1209, 8.507059e+37
    %v1211 = vand.u32 %v1198, 2147483648
    %v1212 = vor.u32 1.1754944e-38, %v1211
    %v1213 = vsel %vm1210, %v1212, %v1208
    %v1214 = vmul.f32 1.0, %v1213
    %v1215 = vrcp.pop %v1199
    %v1216 = vmul.f32 %v1199, %v1215
    %v1217 = vsub.f32 1.0, %v1216
    %v1218 = vmul.f32 %v1215, %v1217
    %v1219 = vadd.f32 %v1215, %v1218
    %vm1220 = vweird.f32 %v1199
    %vm1221 = vweird.f32 %v1215
    %vm1222 = vmor %vm1220, %vm1221
    %v1223 = vsel %vm1222, %v1215, %v1219
    %v1224 = vand.u32 2147483647, %v1199
    %vm1225 = vcmp.eq.f32.partialorder %v1224, 8.507059e+37
    %v1226 = vand.u32 %v1199, 2147483648
    %v1227 = vor.u32 1.1754944e-38, %v1226
    %v1228 = vsel %vm1225, %v1227, %v1223
    %v1229 = vmul.f32 1.0, %v1228
    %v1230 = vtanh.pop %v1188
    %v1231 = vtanh.pop %v1190
    %1234 = vrot.lane.b32.xlu0 %v1126, 32
    %v1235 = vpop.permute.xlu0 %1234
    %1236 = vrot.lane.b32.xlu0 %v1127, 32
    %v1237 = vpop.permute.xlu0 %1236
    %v1240 = vmul.f32 %v1214, %v1235
    %v1241 = vmul.f32 %v1229, %v1237
    %1244 = vrot.lane.b32.xlu0 %v1230, 32
    %v1245 = vpop.permute.xlu0 %1244
    %1246 = vrot.lane.b32.xlu0 %v1231, 32
    %v1247 = vpop.permute.xlu0 %1246
    %v1250 = vmul.f32 %v1214, %v1245
    %v1251 = vmul.f32 %v1229, %v1247
    %1254 = vrot.lane.b32.xlu0 %v1250, 32
    %v1255 = vpop.permute.xlu0 %1254
    %1256 = vrot.lane.b32.xlu0 %v1251, 32
    %v1257 = vpop.permute.xlu0 %1256
    %v1260 = vadd.f32 %v1240, %v1255
    %v1261 = vadd.f32 %v1241, %v1257
    %v1262 = vtanh.pop %v1260
    %v1263 = vtanh.pop %v1261
    %1266 = vrot.lane.b32.xlu0 %v1262, 32
    %v1267 = vpop.permute.xlu0 %1266
    %1268 = vrot.lane.b32.xlu0 %v1263, 32
    %v1269 = vpop.permute.xlu0 %1268
    %v1272 = vmul.f32 %v1214, %v1267
    %v1273 = vmul.f32 %v1229, %v1269
    %v1274 = vxor.u32 %v1189, 2147483648
    %v1275 = vxor.u32 %v1191, 2147483648
    %v1276 = vmul.f32 %v1274, 1.442695
    %v1277 = vpow.pop %v1276
    %v1278 = vmul.f32 %v1275, 1.442695
    %v1279 = vpow.pop %v1278
    %v1280 = vadd.f32 %v1277, 1.0
    %v1281 = vadd.f32 %v1279, 1.0
    %v1282 = vrcp.pop %v1280
    %v1283 = vmul.f32 %v1280, %v1282
    %v1284 = vsub.f32 1.0, %v1283
    %v1285 = vmul.f32 %v1282, %v1284
    %v1286 = vadd.f32 %v1282, %v1285
    %vm1287 = vweird.f32 %v1280
    %vm1288 = vweird.f32 %v1282
    %vm1289 = vmor %vm1287, %vm1288
    %v1290 = vsel %vm1289, %v1282, %v1286
    %v1291 = vand.u32 2147483647, %v1280
    %vm1292 = vcmp.eq.f32.partialorder %v1291, 8.507059e+37
    %v1293 = vand.u32 %v1280, 2147483648
    %v1294 = vor.u32 1.1754944e-38, %v1293
    %v1295 = vsel %vm1292, %v1294, %v1290
    %v1296 = vmul.f32 1.0, %v1295
    %v1297 = vrcp.pop %v1281
    %v1298 = vmul.f32 %v1281, %v1297
    %v1299 = vsub.f32 1.0, %v1298
    %v1300 = vmul.f32 %v1297, %v1299
    %v1301 = vadd.f32 %v1297, %v1300
    %vm1302 = vweird.f32 %v1281
    %vm1303 = vweird.f32 %v1297
    %vm1304 = vmor %vm1302, %vm1303
    %v1305 = vsel %vm1304, %v1297, %v1301
    %v1306 = vand.u32 2147483647, %v1281
    %vm1307 = vcmp.eq.f32.partialorder %v1306, 8.507059e+37
    %v1308 = vand.u32 %v1281, 2147483648
    %v1309 = vor.u32 1.1754944e-38, %v1308
    %v1310 = vsel %vm1307, %v1309, %v1305
    %v1311 = vmul.f32 1.0, %v1310
    %v1312 = vtanh.pop %v1189
    %v1313 = vtanh.pop %v1191
    %v1314 = vmul.f32 %v1296, %v1126
    %v1315 = vmul.f32 %v1311, %v1127
    %1318 = vrot.lane.b32.xlu0 %v1312, 32
    %v1319 = vpop.permute.xlu0 %1318
    %1320 = vrot.lane.b32.xlu0 %v1313, 32
    %v1321 = vpop.permute.xlu0 %1320
    %v1324 = vmul.f32 %v1296, %v1319
    %v1325 = vmul.f32 %v1311, %v1321
    %1328 = vrot.lane.b32.xlu0 %v1324, 32
    %v1329 = vpop.permute.xlu0 %1328
    %1330 = vrot.lane.b32.xlu0 %v1325, 32
    %v1331 = vpop.permute.xlu0 %1330
    %v1334 = vadd.f32 %v1314, %v1329
    %v1335 = vadd.f32 %v1315, %v1331
    %v1336 = vtanh.pop %v1334
    %v1337 = vtanh.pop %v1335
    %1340 = vrot.lane.b32.xlu0 %v1336, 32
    %v1341 = vpop.permute.xlu0 %1340
    %1342 = vrot.lane.b32.xlu0 %v1337, 32
    %v1343 = vpop.permute.xlu0 %1342
    %v1346 = vmul.f32 %v1296, %v1341
    %v1347 = vmul.f32 %v1311, %v1343
    %1350 = vrot.lane.b32.xlu0 %v1272, 64
    %v1351 = vpop.permute.xlu0 %1350
    %1352 = vrot.lane.b32.xlu0 %v1273, 64
    %v1353 = vpop.permute.xlu0 %1352
    %1358 = vrot.lane.b32.xlu0 %v1346, 96
    %v1359 = vpop.permute.xlu0 %1358
    %1360 = vrot.lane.b32.xlu0 %v1347, 96
    %v1361 = vpop.permute.xlu0 %1360
    %v1364 = vsel %vm592, %v1351, %v1359
    %v1365 = vsel %vm592, %v1353, %v1361
    %1368 = vrot.lane.b32.xlu0 %v1260, 96
    %v1369 = vpop.permute.xlu0 %1368
    %1370 = vrot.lane.b32.xlu0 %v1261, 96
    %v1371 = vpop.permute.xlu0 %1370
    %v1374 = vsel %vm592, %v1369, %v1334
    %v1375 = vsel %vm592, %v1371, %v1335
    %v1376 = vsel %vm322, 3, 4
    %vm1377 = vcmp.gt.s32.totalorder %v608, %v1376
    %vm1378 = vcmp.gt.s32.totalorder %v611, %v1376
    %v1379 = vsel %vm1377, %v1364, 0.0
    %v1380 = vsel %vm1378, %v1365, 0.0
    %v1381 = vsel %vm1377, %v1374, %v1126
    %v1382 = vsel %vm1378, %v1375, %v1127
    %s1383 = scalar_lea.vmem [#allocation3], 48
    %1384 = vst.msk [vmem:[%s1383] sm:$0xff] %vm592, %v1379
    %1385 = vst.msk [vmem:[%s1383 + $0x8] sm:$0xff] %vm592, %v1380
    %s1386 = scalar_lea.vmem [#allocation3], 64
    %1387 = vst.msk [vmem:[%s1386] sm:$0xff] %vm621, %v1379
    %1388 = vst.msk [vmem:[%s1386 + $0x8] sm:$0xff] %vm621, %v1380
    %v1389 = vld [vmem:[%s1137] sm:$0xff]
    %v1390 = vld [vmem:[%s1137 + $0x8] sm:$0xff]
    %v1391 = vld [vmem:[%s1134] sm:$0xff]
    %v1392 = vld [vmem:[%s1134 + $0x8] sm:$0xff]
    %v1395 = vunpack.c.l.b16 %v1389
    %v1396 = vunpack.c.l.b16 %v1390
    %v1397 = vpack.c.b16 %v1396, %v1395
    %v1401 = vunpack.c.h.b16 %v1391
    %v1402 = vunpack.c.h.b16 %v1392
    %v1403 = vpack.c.b16 %v1402, %v1401
    %v1405 = vunpack.c.l.bf16 %v1397
    %v1406 = vunpack.c.l.bf16 %v1403
    %v1407 = vunpack.c.h.bf16 %v1397
    %v1408 = vunpack.c.h.bf16 %v1403
    %v1409 = vpack.c.bf16 %v1380, %v1379
    %v1411 = vsel %vm392, %v1409, 0
    %1413 = vmatpush.bf16.msra.mxu0 0
    %1414 = vmatpush.bf16.msra.mxu0 0
    %1415 = vmatpush.bf16.msra.mxu0 0
    %1416 = vmatpush.bf16.msra.mxu0 0
    %1417 = vmatpush.bf16.msra.mxu0 %v382
    %1418 = vmatpush.bf16.msra.mxu0 %v380
    %1419 = vmatpush.bf16.msra.mxu0 %v378
    %1420 = vmatpush.bf16.msra.mxu0 %v376
    %1421 = vmatmul.bf16.gmra.mxu0 %v1411
    %v1422 = vpop.f32.mrf.mxu0
    %v1423 = vadd.f32 0.0, %v1422
    %v1424 = vpop.f32.mrf.mxu0
    %v1425 = vadd.f32 0.0, %v1424
    %1426 = vdwg.mxu0
    %1427 = vmatpush.bf16.msra.mxu0 0
    %1428 = vmatpush.bf16.msra.mxu0 0
    %1429 = vmatpush.bf16.msra.mxu0 0
    %1430 = vmatpush.bf16.msra.mxu0 0
    %1431 = vmatpush.bf16.msra.mxu0 %v383
    %1432 = vmatpush.bf16.msra.mxu0 %v381
    %1433 = vmatpush.bf16.msra.mxu0 %v379
    %1434 = vmatpush.bf16.msra.mxu0 %v377
    %1435 = vmatmul.bf16.gmra.mxu0 %v1411
    %v1436 = vpop.f32.mrf.mxu0
    %v1437 = vadd.f32 0.0, %v1436
    %v1438 = vpop.f32.mrf.mxu0
    %v1439 = vadd.f32 0.0, %v1438
    %1440 = vdwg.mxu0
    %v1441 = vadd.f32 %v1405, %v1423
    %v1442 = vadd.f32 %v1406, %v1437
    %v1443 = vadd.f32 %v1407, %v1425
    %v1444 = vadd.f32 %v1408, %v1439
    %v1445 = vxor.u32 %v1441, 2147483648
    %v1446 = vxor.u32 %v1443, 2147483648
    %v1447 = vmul.f32 %v1445, 1.442695
    %v1448 = vpow.pop %v1447
    %v1449 = vmul.f32 %v1446, 1.442695
    %v1450 = vpow.pop %v1449
    %v1451 = vadd.f32 %v1448, 1.0
    %v1452 = vadd.f32 %v1450, 1.0
    %v1453 = vrcp.pop %v1451
    %v1454 = vmul.f32 %v1451, %v1453
    %v1455 = vsub.f32 1.0, %v1454
    %v1456 = vmul.f32 %v1453, %v1455
    %v1457 = vadd.f32 %v1453, %v1456
    %vm1458 = vweird.f32 %v1451
    %vm1459 = vweird.f32 %v1453
    %vm1460 = vmor %vm1458, %vm1459
    %v1461 = vsel %vm1460, %v1453, %v1457
    %v1462 = vand.u32 2147483647, %v1451
    %vm1463 = vcmp.eq.f32.partialorder %v1462, 8.507059e+37
    %v1464 = vand.u32 %v1451, 2147483648
    %v1465 = vor.u32 1.1754944e-38, %v1464
    %v1466 = vsel %vm1463, %v1465, %v1461
    %v1467 = vmul.f32 1.0, %v1466
    %v1468 = vrcp.pop %v1452
    %v1469 = vmul.f32 %v1452, %v1468
    %v1470 = vsub.f32 1.0, %v1469
    %v1471 = vmul.f32 %v1468, %v1470
    %v1472 = vadd.f32 %v1468, %v1471
    %vm1473 = vweird.f32 %v1452
    %vm1474 = vweird.f32 %v1468
    %vm1475 = vmor %vm1473, %vm1474
    %v1476 = vsel %vm1475, %v1468, %v1472
    %v1477 = vand.u32 2147483647, %v1452
    %vm1478 = vcmp.eq.f32.partialorder %v1477, 8.507059e+37
    %v1479 = vand.u32 %v1452, 2147483648
    %v1480 = vor.u32 1.1754944e-38, %v1479
    %v1481 = vsel %vm1478, %v1480, %v1476
    %v1482 = vmul.f32 1.0, %v1481
    %v1483 = vtanh.pop %v1441
    %v1484 = vtanh.pop %v1443
    %1487 = vrot.lane.b32.xlu0 %v1381, 32
    %v1488 = vpop.permute.xlu0 %1487
    %1489 = vrot.lane.b32.xlu0 %v1382, 32
    %v1490 = vpop.permute.xlu0 %1489
    %v1493 = vmul.f32 %v1467, %v1488
    %v1494 = vmul.f32 %v1482, %v1490
    %1497 = vrot.lane.b32.xlu0 %v1483, 32
    %v1498 = vpop.permute.xlu0 %1497
    %1499 = vrot.lane.b32.xlu0 %v1484, 32
    %v1500 = vpop.permute.xlu0 %1499
    %v1503 = vmul.f32 %v1467, %v1498
    %v1504 = vmul.f32 %v1482, %v1500
    %1507 = vrot.lane.b32.xlu0 %v1503, 32
    %v1508 = vpop.permute.xlu0 %1507
    %1509 = vrot.lane.b32.xlu0 %v1504, 32
    %v1510 = vpop.permute.xlu0 %1509
    %v1513 = vadd.f32 %v1493, %v1508
    %v1514 = vadd.f32 %v1494, %v1510
    %v1515 = vtanh.pop %v1513
    %v1516 = vtanh.pop %v1514
    %1519 = vrot.lane.b32.xlu0 %v1515, 32
    %v1520 = vpop.permute.xlu0 %1519
    %1521 = vrot.lane.b32.xlu0 %v1516, 32
    %v1522 = vpop.permute.xlu0 %1521
    %v1525 = vmul.f32 %v1467, %v1520
    %v1526 = vmul.f32 %v1482, %v1522
    %v1527 = vxor.u32 %v1442, 2147483648
    %v1528 = vxor.u32 %v1444, 2147483648
    %v1529 = vmul.f32 %v1527, 1.442695
    %v1530 = vpow.pop %v1529
    %v1531 = vmul.f32 %v1528, 1.442695
    %v1532 = vpow.pop %v1531
    %v1533 = vadd.f32 %v1530, 1.0
    %v1534 = vadd.f32 %v1532, 1.0
    %v1535 = vrcp.pop %v1533
    %v1536 = vmul.f32 %v1533, %v1535
    %v1537 = vsub.f32 1.0, %v1536
    %v1538 = vmul.f32 %v1535, %v1537
    %v1539 = vadd.f32 %v1535, %v1538
    %vm1540 = vweird.f32 %v1533
    %vm1541 = vweird.f32 %v1535
    %vm1542 = vmor %vm1540, %vm1541
    %v1543 = vsel %vm1542, %v1535, %v1539
    %v1544 = vand.u32 2147483647, %v1533
    %vm1545 = vcmp.eq.f32.partialorder %v1544, 8.507059e+37
    %v1546 = vand.u32 %v1533, 2147483648
    %v1547 = vor.u32 1.1754944e-38, %v1546
    %v1548 = vsel %vm1545, %v1547, %v1543
    %v1549 = vmul.f32 1.0, %v1548
    %v1550 = vrcp.pop %v1534
    %v1551 = vmul.f32 %v1534, %v1550
    %v1552 = vsub.f32 1.0, %v1551
    %v1553 = vmul.f32 %v1550, %v1552
    %v1554 = vadd.f32 %v1550, %v1553
    %vm1555 = vweird.f32 %v1534
    %vm1556 = vweird.f32 %v1550
    %vm1557 = vmor %vm1555, %vm1556
    %v1558 = vsel %vm1557, %v1550, %v1554
    %v1559 = vand.u32 2147483647, %v1534
    %vm1560 = vcmp.eq.f32.partialorder %v1559, 8.507059e+37
    %v1561 = vand.u32 %v1534, 2147483648
    %v1562 = vor.u32 1.1754944e-38, %v1561
    %v1563 = vsel %vm1560, %v1562, %v1558
    %v1564 = vmul.f32 1.0, %v1563
    %v1565 = vtanh.pop %v1442
    %v1566 = vtanh.pop %v1444
    %v1567 = vmul.f32 %v1549, %v1381
    %v1568 = vmul.f32 %v1564, %v1382
    %1571 = vrot.lane.b32.xlu0 %v1565, 32
    %v1572 = vpop.permute.xlu0 %1571
    %1573 = vrot.lane.b32.xlu0 %v1566, 32
    %v1574 = vpop.permute.xlu0 %1573
    %v1577 = vmul.f32 %v1549, %v1572
    %v1578 = vmul.f32 %v1564, %v1574
    %1581 = vrot.lane.b32.xlu0 %v1577, 32
    %v1582 = vpop.permute.xlu0 %1581
    %1583 = vrot.lane.b32.xlu0 %v1578, 32
    %v1584 = vpop.permute.xlu0 %1583
    %v1587 = vadd.f32 %v1567, %v1582
    %v1588 = vadd.f32 %v1568, %v1584
    %v1589 = vtanh.pop %v1587
    %v1590 = vtanh.pop %v1588
    %1593 = vrot.lane.b32.xlu0 %v1589, 32
    %v1594 = vpop.permute.xlu0 %1593
    %1595 = vrot.lane.b32.xlu0 %v1590, 32
    %v1596 = vpop.permute.xlu0 %1595
    %v1599 = vmul.f32 %v1549, %v1594
    %v1600 = vmul.f32 %v1564, %v1596
    %1603 = vrot.lane.b32.xlu0 %v1525, 64
    %v1604 = vpop.permute.xlu0 %1603
    %1605 = vrot.lane.b32.xlu0 %v1526, 64
    %v1606 = vpop.permute.xlu0 %1605
    %1611 = vrot.lane.b32.xlu0 %v1599, 96
    %v1612 = vpop.permute.xlu0 %1611
    %1613 = vrot.lane.b32.xlu0 %v1600, 96
    %v1614 = vpop.permute.xlu0 %1613
    %v1617 = vsel %vm592, %v1604, %v1612
    %v1618 = vsel %vm592, %v1606, %v1614
    %1621 = vrot.lane.b32.xlu0 %v1513, 96
    %v1622 = vpop.permute.xlu0 %1621
    %1623 = vrot.lane.b32.xlu0 %v1514, 96
    %v1624 = vpop.permute.xlu0 %1623
    %v1627 = vsel %vm592, %v1622, %v1587
    %v1628 = vsel %vm592, %v1624, %v1588
    %v1629 = vsel %vm322, 4, 3
    %vm1630 = vcmp.gt.s32.totalorder %v608, %v1629
    %vm1631 = vcmp.gt.s32.totalorder %v611, %v1629
    %v1632 = vsel %vm1630, %v1617, 0.0
    %v1633 = vsel %vm1631, %v1618, 0.0
    %v1634 = vsel %vm1630, %v1627, %v1381
    %v1635 = vsel %vm1631, %v1628, %v1382
    %1636 = vst.msk [vmem:[%s1386] sm:$0xff] %vm592, %v1632
    %1637 = vst.msk [vmem:[%s1386 + $0x8] sm:$0xff] %vm592, %v1633
    %1638 = vst.msk [vmem:[%s1383] sm:$0xff] %vm621, %v1632
    %1639 = vst.msk [vmem:[%s1383 + $0x8] sm:$0xff] %vm621, %v1633
    %v1640 = vld [vmem:[%s882] sm:$0xff]
    %v1641 = vld [vmem:[%s882 + $0x8] sm:$0xff]
    %v1642 = vld [vmem:[%s879] sm:$0xff]
    %v1643 = vld [vmem:[%s879 + $0x8] sm:$0xff]
    %v1646 = vunpack.c.l.b16 %v1640
    %v1647 = vunpack.c.l.b16 %v1641
    %v1648 = vpack.c.b16 %v1647, %v1646
    %v1652 = vunpack.c.h.b16 %v1642
    %v1653 = vunpack.c.h.b16 %v1643
    %v1654 = vpack.c.b16 %v1653, %v1652
    %v1656 = vunpack.c.l.bf16 %v1648
    %v1657 = vunpack.c.l.bf16 %v1654
    %v1658 = vunpack.c.h.bf16 %v1648
    %v1659 = vunpack.c.h.bf16 %v1654
    %v1660 = vpack.c.bf16 %v1633, %v1632
    %v1662 = vsel %vm392, %v1660, 0
    %1664 = vmatpush.bf16.msra.mxu0 0
    %1665 = vmatpush.bf16.msra.mxu0 0
    %1666 = vmatpush.bf16.msra.mxu0 0
    %1667 = vmatpush.bf16.msra.mxu0 0
    %1668 = vmatpush.bf16.msra.mxu0 %v382
    %1669 = vmatpush.bf16.msra.mxu0 %v380
    %1670 = vmatpush.bf16.msra.mxu0 %v378
    %1671 = vmatpush.bf16.msra.mxu0 %v376
    %1672 = vmatmul.bf16.gmra.mxu0 %v1662
    %v1673 = vpop.f32.mrf.mxu0
    %v1674 = vadd.f32 0.0, %v1673
    %v1675 = vpop.f32.mrf.mxu0
    %v1676 = vadd.f32 0.0, %v1675
    %1677 = vdwg.mxu0
    %1678 = vmatpush.bf16.msra.mxu0 0
    %1679 = vmatpush.bf16.msra.mxu0 0
    %1680 = vmatpush.bf16.msra.mxu0 0
    %1681 = vmatpush.bf16.msra.mxu0 0
    %1682 = vmatpush.bf16.msra.mxu0 %v383
    %1683 = vmatpush.bf16.msra.mxu0 %v381
    %1684 = vmatpush.bf16.msra.mxu0 %v379
    %1685 = vmatpush.bf16.msra.mxu0 %v377
    %1686 = vmatmul.bf16.gmra.mxu0 %v1662
    %v1687 = vpop.f32.mrf.mxu0
    %v1688 = vadd.f32 0.0, %v1687
    %v1689 = vpop.f32.mrf.mxu0
    %v1690 = vadd.f32 0.0, %v1689
    %1691 = vdwg.mxu0
    %v1692 = vadd.f32 %v1656, %v1674
    %v1693 = vadd.f32 %v1657, %v1688
    %v1694 = vadd.f32 %v1658, %v1676
    %v1695 = vadd.f32 %v1659, %v1690
    %v1696 = vxor.u32 %v1692, 2147483648
    %v1697 = vxor.u32 %v1694, 2147483648
    %v1698 = vmul.f32 %v1696, 1.442695
    %v1699 = vpow.pop %v1698
    %v1700 = vmul.f32 %v1697, 1.442695
    %v1701 = vpow.pop %v1700
    %v1702 = vadd.f32 %v1699, 1.0
    %v1703 = vadd.f32 %v1701, 1.0
    %v1704 = vrcp.pop %v1702
    %v1705 = vmul.f32 %v1702, %v1704
    %v1706 = vsub.f32 1.0, %v1705
    %v1707 = vmul.f32 %v1704, %v1706
    %v1708 = vadd.f32 %v1704, %v1707
    %vm1709 = vweird.f32 %v1702
    %vm1710 = vweird.f32 %v1704
    %vm1711 = vmor %vm1709, %vm1710
    %v1712 = vsel %vm1711, %v1704, %v1708
    %v1713 = vand.u32 2147483647, %v1702
    %vm1714 = vcmp.eq.f32.partialorder %v1713, 8.507059e+37
    %v1715 = vand.u32 %v1702, 2147483648
    %v1716 = vor.u32 1.1754944e-38, %v1715
    %v1717 = vsel %vm1714, %v1716, %v1712
    %v1718 = vmul.f32 1.0, %v1717
    %v1719 = vrcp.pop %v1703
    %v1720 = vmul.f32 %v1703, %v1719
    %v1721 = vsub.f32 1.0, %v1720
    %v1722 = vmul.f32 %v1719, %v1721
    %v1723 = vadd.f32 %v1719, %v1722
    %vm1724 = vweird.f32 %v1703
    %vm1725 = vweird.f32 %v1719
    %vm1726 = vmor %vm1724, %vm1725
    %v1727 = vsel %vm1726, %v1719, %v1723
    %v1728 = vand.u32 2147483647, %v1703
    %vm1729 = vcmp.eq.f32.partialorder %v1728, 8.507059e+37
    %v1730 = vand.u32 %v1703, 2147483648
    %v1731 = vor.u32 1.1754944e-38, %v1730
    %v1732 = vsel %vm1729, %v1731, %v1727
    %v1733 = vmul.f32 1.0, %v1732
    %v1734 = vtanh.pop %v1692
    %v1735 = vtanh.pop %v1694
    %1738 = vrot.lane.b32.xlu0 %v1634, 32
    %v1739 = vpop.permute.xlu0 %1738
    %1740 = vrot.lane.b32.xlu0 %v1635, 32
    %v1741 = vpop.permute.xlu0 %1740
    %v1744 = vmul.f32 %v1718, %v1739
    %v1745 = vmul.f32 %v1733, %v1741
    %1748 = vrot.lane.b32.xlu0 %v1734, 32
    %v1749 = vpop.permute.xlu0 %1748
    %1750 = vrot.lane.b32.xlu0 %v1735, 32
    %v1751 = vpop.permute.xlu0 %1750
    %v1754 = vmul.f32 %v1718, %v1749
    %v1755 = vmul.f32 %v1733, %v1751
    %1758 = vrot.lane.b32.xlu0 %v1754, 32
    %v1759 = vpop.permute.xlu0 %1758
    %1760 = vrot.lane.b32.xlu0 %v1755, 32
    %v1761 = vpop.permute.xlu0 %1760
    %v1764 = vadd.f32 %v1744, %v1759
    %v1765 = vadd.f32 %v1745, %v1761
    %v1766 = vtanh.pop %v1764
    %v1767 = vtanh.pop %v1765
    %1770 = vrot.lane.b32.xlu0 %v1766, 32
    %v1771 = vpop.permute.xlu0 %1770
    %1772 = vrot.lane.b32.xlu0 %v1767, 32
    %v1773 = vpop.permute.xlu0 %1772
    %v1776 = vmul.f32 %v1718, %v1771
    %v1777 = vmul.f32 %v1733, %v1773
    %v1778 = vxor.u32 %v1693, 2147483648
    %v1779 = vxor.u32 %v1695, 2147483648
    %v1780 = vmul.f32 %v1778, 1.442695
    %v1781 = vpow.pop %v1780
    %v1782 = vmul.f32 %v1779, 1.442695
    %v1783 = vpow.pop %v1782
    %v1784 = vadd.f32 %v1781, 1.0
    %v1785 = vadd.f32 %v1783, 1.0
    %v1786 = vrcp.pop %v1784
    %v1787 = vmul.f32 %v1784, %v1786
    %v1788 = vsub.f32 1.0, %v1787
    %v1789 = vmul.f32 %v1786, %v1788
    %v1790 = vadd.f32 %v1786, %v1789
    %vm1791 = vweird.f32 %v1784
    %vm1792 = vweird.f32 %v1786
    %vm1793 = vmor %vm1791, %vm1792
    %v1794 = vsel %vm1793, %v1786, %v1790
    %v1795 = vand.u32 2147483647, %v1784
    %vm1796 = vcmp.eq.f32.partialorder %v1795, 8.507059e+37
    %v1797 = vand.u32 %v1784, 2147483648
    %v1798 = vor.u32 1.1754944e-38, %v1797
    %v1799 = vsel %vm1796, %v1798, %v1794
    %v1800 = vmul.f32 1.0, %v1799
    %v1801 = vrcp.pop %v1785
    %v1802 = vmul.f32 %v1785, %v1801
    %v1803 = vsub.f32 1.0, %v1802
    %v1804 = vmul.f32 %v1801, %v1803
    %v1805 = vadd.f32 %v1801, %v1804
    %vm1806 = vweird.f32 %v1785
    %vm1807 = vweird.f32 %v1801
    %vm1808 = vmor %vm1806, %vm1807
    %v1809 = vsel %vm1808, %v1801, %v1805
    %v1810 = vand.u32 2147483647, %v1785
    %vm1811 = vcmp.eq.f32.partialorder %v1810, 8.507059e+37
    %v1812 = vand.u32 %v1785, 2147483648
    %v1813 = vor.u32 1.1754944e-38, %v1812
    %v1814 = vsel %vm1811, %v1813, %v1809
    %v1815 = vmul.f32 1.0, %v1814
    %v1816 = vtanh.pop %v1693
    %v1817 = vtanh.pop %v1695
    %v1818 = vmul.f32 %v1800, %v1634
    %v1819 = vmul.f32 %v1815, %v1635
    %1822 = vrot.lane.b32.xlu0 %v1816, 32
    %v1823 = vpop.permute.xlu0 %1822
    %1824 = vrot.lane.b32.xlu0 %v1817, 32
    %v1825 = vpop.permute.xlu0 %1824
    %v1828 = vmul.f32 %v1800, %v1823
    %v1829 = vmul.f32 %v1815, %v1825
    %1832 = vrot.lane.b32.xlu0 %v1828, 32
    %v1833 = vpop.permute.xlu0 %1832
    %1834 = vrot.lane.b32.xlu0 %v1829, 32
    %v1835 = vpop.permute.xlu0 %1834
    %v1838 = vadd.f32 %v1818, %v1833
    %v1839 = vadd.f32 %v1819, %v1835
    %v1840 = vtanh.pop %v1838
    %v1841 = vtanh.pop %v1839
    %1844 = vrot.lane.b32.xlu0 %v1840, 32
    %v1845 = vpop.permute.xlu0 %1844
    %1846 = vrot.lane.b32.xlu0 %v1841, 32
    %v1847 = vpop.permute.xlu0 %1846
    %v1850 = vmul.f32 %v1800, %v1845
    %v1851 = vmul.f32 %v1815, %v1847
    %1854 = vrot.lane.b32.xlu0 %v1776, 64
    %v1855 = vpop.permute.xlu0 %1854
    %1856 = vrot.lane.b32.xlu0 %v1777, 64
    %v1857 = vpop.permute.xlu0 %1856
    %1862 = vrot.lane.b32.xlu0 %v1850, 96
    %v1863 = vpop.permute.xlu0 %1862
    %1864 = vrot.lane.b32.xlu0 %v1851, 96
    %v1865 = vpop.permute.xlu0 %1864
    %v1868 = vsel %vm592, %v1855, %v1863
    %v1869 = vsel %vm592, %v1857, %v1865
    %1872 = vrot.lane.b32.xlu0 %v1764, 96
    %v1873 = vpop.permute.xlu0 %1872
    %1874 = vrot.lane.b32.xlu0 %v1765, 96
    %v1875 = vpop.permute.xlu0 %1874
    %v1878 = vsel %vm592, %v1873, %v1838
    %v1879 = vsel %vm592, %v1875, %v1839
    %v1880 = vsel %vm322, 5, 2
    %vm1881 = vcmp.gt.s32.totalorder %v608, %v1880
    %vm1882 = vcmp.gt.s32.totalorder %v611, %v1880
    %v1883 = vsel %vm1881, %v1868, 0.0
    %v1884 = vsel %vm1882, %v1869, 0.0
    %v1885 = vsel %vm1881, %v1878, %v1634
    %v1886 = vsel %vm1882, %v1879, %v1635
    %1887 = vst.msk [vmem:[%s1131] sm:$0xff] %vm592, %v1883
    %1888 = vst.msk [vmem:[%s1131 + $0x8] sm:$0xff] %vm592, %v1884
    %1889 = vst.msk [vmem:[%s1128] sm:$0xff] %vm621, %v1883
    %1890 = vst.msk [vmem:[%s1128 + $0x8] sm:$0xff] %vm621, %v1884
    %v1891 = vld [vmem:[%s627] sm:$0xff]
    %v1892 = vld [vmem:[%s627 + $0x8] sm:$0xff]
    %v1893 = vld [vmem:[%s624] sm:$0xff]
    %v1894 = vld [vmem:[%s624 + $0x8] sm:$0xff]
    %v1897 = vunpack.c.l.b16 %v1891
    %v1898 = vunpack.c.l.b16 %v1892
    %v1899 = vpack.c.b16 %v1898, %v1897
    %v1903 = vunpack.c.h.b16 %v1893
    %v1904 = vunpack.c.h.b16 %v1894
    %v1905 = vpack.c.b16 %v1904, %v1903
    %v1907 = vunpack.c.l.bf16 %v1899
    %v1908 = vunpack.c.l.bf16 %v1905
    %v1909 = vunpack.c.h.bf16 %v1899
    %v1910 = vunpack.c.h.bf16 %v1905
    %v1911 = vpack.c.bf16 %v1884, %v1883
    %v1913 = vsel %vm392, %v1911, 0
    %1915 = vmatpush.bf16.msra.mxu0 0
    %1916 = vmatpush.bf16.msra.mxu0 0
    %1917 = vmatpush.bf16.msra.mxu0 0
    %1918 = vmatpush.bf16.msra.mxu0 0
    %1919 = vmatpush.bf16.msra.mxu0 %v382
    %1920 = vmatpush.bf16.msra.mxu0 %v380
    %1921 = vmatpush.bf16.msra.mxu0 %v378
    %1922 = vmatpush.bf16.msra.mxu0 %v376
    %1923 = vmatmul.bf16.gmra.mxu0 %v1913
    %v1924 = vpop.f32.mrf.mxu0
    %v1925 = vadd.f32 0.0, %v1924
    %v1926 = vpop.f32.mrf.mxu0
    %v1927 = vadd.f32 0.0, %v1926
    %1928 = vdwg.mxu0
    %1929 = vmatpush.bf16.msra.mxu0 0
    %1930 = vmatpush.bf16.msra.mxu0 0
    %1931 = vmatpush.bf16.msra.mxu0 0
    %1932 = vmatpush.bf16.msra.mxu0 0
    %1933 = vmatpush.bf16.msra.mxu0 %v383
    %1934 = vmatpush.bf16.msra.mxu0 %v381
    %1935 = vmatpush.bf16.msra.mxu0 %v379
    %1936 = vmatpush.bf16.msra.mxu0 %v377
    %1937 = vmatmul.bf16.gmra.mxu0 %v1913
    %v1938 = vpop.f32.mrf.mxu0
    %v1939 = vadd.f32 0.0, %v1938
    %v1940 = vpop.f32.mrf.mxu0
    %v1941 = vadd.f32 0.0, %v1940
    %1942 = vdwg.mxu0
    %v1943 = vadd.f32 %v1907, %v1925
    %v1944 = vadd.f32 %v1908, %v1939
    %v1945 = vadd.f32 %v1909, %v1927
    %v1946 = vadd.f32 %v1910, %v1941
    %v1947 = vxor.u32 %v1943, 2147483648
    %v1948 = vxor.u32 %v1945, 2147483648
    %v1949 = vmul.f32 %v1947, 1.442695
    %v1950 = vpow.pop %v1949
    %v1951 = vmul.f32 %v1948, 1.442695
    %v1952 = vpow.pop %v1951
    %v1953 = vadd.f32 %v1950, 1.0
    %v1954 = vadd.f32 %v1952, 1.0
    %v1955 = vrcp.pop %v1953
    %v1956 = vmul.f32 %v1953, %v1955
    %v1957 = vsub.f32 1.0, %v1956
    %v1958 = vmul.f32 %v1955, %v1957
    %v1959 = vadd.f32 %v1955, %v1958
    %vm1960 = vweird.f32 %v1953
    %vm1961 = vweird.f32 %v1955
    %vm1962 = vmor %vm1960, %vm1961
    %v1963 = vsel %vm1962, %v1955, %v1959
    %v1964 = vand.u32 2147483647, %v1953
    %vm1965 = vcmp.eq.f32.partialorder %v1964, 8.507059e+37
    %v1966 = vand.u32 %v1953, 2147483648
    %v1967 = vor.u32 1.1754944e-38, %v1966
    %v1968 = vsel %vm1965, %v1967, %v1963
    %v1969 = vmul.f32 1.0, %v1968
    %v1970 = vrcp.pop %v1954
    %v1971 = vmul.f32 %v1954, %v1970
    %v1972 = vsub.f32 1.0, %v1971
    %v1973 = vmul.f32 %v1970, %v1972
    %v1974 = vadd.f32 %v1970, %v1973
    %vm1975 = vweird.f32 %v1954
    %vm1976 = vweird.f32 %v1970
    %vm1977 = vmor %vm1975, %vm1976
    %v1978 = vsel %vm1977, %v1970, %v1974
    %v1979 = vand.u32 2147483647, %v1954
    %vm1980 = vcmp.eq.f32.partialorder %v1979, 8.507059e+37
    %v1981 = vand.u32 %v1954, 2147483648
    %v1982 = vor.u32 1.1754944e-38, %v1981
    %v1983 = vsel %vm1980, %v1982, %v1978
    %v1984 = vmul.f32 1.0, %v1983
    %v1985 = vtanh.pop %v1943
    %v1986 = vtanh.pop %v1945
    %1989 = vrot.lane.b32.xlu0 %v1885, 32
    %v1990 = vpop.permute.xlu0 %1989
    %1991 = vrot.lane.b32.xlu0 %v1886, 32
    %v1992 = vpop.permute.xlu0 %1991
    %v1995 = vmul.f32 %v1969, %v1990
    %v1996 = vmul.f32 %v1984, %v1992
    %1999 = vrot.lane.b32.xlu0 %v1985, 32
    %v2000 = vpop.permute.xlu0 %1999
    %2001 = vrot.lane.b32.xlu0 %v1986, 32
    %v2002 = vpop.permute.xlu0 %2001
    %v2005 = vmul.f32 %v1969, %v2000
    %v2006 = vmul.f32 %v1984, %v2002
    %2009 = vrot.lane.b32.xlu0 %v2005, 32
    %v2010 = vpop.permute.xlu0 %2009
    %2011 = vrot.lane.b32.xlu0 %v2006, 32
    %v2012 = vpop.permute.xlu0 %2011
    %v2015 = vadd.f32 %v1995, %v2010
    %v2016 = vadd.f32 %v1996, %v2012
    %v2017 = vtanh.pop %v2015
    %v2018 = vtanh.pop %v2016
    %2021 = vrot.lane.b32.xlu0 %v2017, 32
    %v2022 = vpop.permute.xlu0 %2021
    %2023 = vrot.lane.b32.xlu0 %v2018, 32
    %v2024 = vpop.permute.xlu0 %2023
    %v2027 = vmul.f32 %v1969, %v2022
    %v2028 = vmul.f32 %v1984, %v2024
    %v2029 = vxor.u32 %v1944, 2147483648
    %v2030 = vxor.u32 %v1946, 2147483648
    %v2031 = vmul.f32 %v2029, 1.442695
    %v2032 = vpow.pop %v2031
    %v2033 = vmul.f32 %v2030, 1.442695
    %v2034 = vpow.pop %v2033
    %v2035 = vadd.f32 %v2032, 1.0
    %v2036 = vadd.f32 %v2034, 1.0
    %v2037 = vrcp.pop %v2035
    %v2038 = vmul.f32 %v2035, %v2037
    %v2039 = vsub.f32 1.0, %v2038
    %v2040 = vmul.f32 %v2037, %v2039
    %v2041 = vadd.f32 %v2037, %v2040
    %vm2042 = vweird.f32 %v2035
    %vm2043 = vweird.f32 %v2037
    %vm2044 = vmor %vm2042, %vm2043
    %v2045 = vsel %vm2044, %v2037, %v2041
    %v2046 = vand.u32 2147483647, %v2035
    %vm2047 = vcmp.eq.f32.partialorder %v2046, 8.507059e+37
    %v2048 = vand.u32 %v2035, 2147483648
    %v2049 = vor.u32 1.1754944e-38, %v2048
    %v2050 = vsel %vm2047, %v2049, %v2045
    %v2051 = vmul.f32 1.0, %v2050
    %v2052 = vrcp.pop %v2036
    %v2053 = vmul.f32 %v2036, %v2052
    %v2054 = vsub.f32 1.0, %v2053
    %v2055 = vmul.f32 %v2052, %v2054
    %v2056 = vadd.f32 %v2052, %v2055
    %vm2057 = vweird.f32 %v2036
    %vm2058 = vweird.f32 %v2052
    %vm2059 = vmor %vm2057, %vm2058
    %v2060 = vsel %vm2059, %v2052, %v2056
    %v2061 = vand.u32 2147483647, %v2036
    %vm2062 = vcmp.eq.f32.partialorder %v2061, 8.507059e+37
    %v2063 = vand.u32 %v2036, 2147483648
    %v2064 = vor.u32 1.1754944e-38, %v2063
    %v2065 = vsel %vm2062, %v2064, %v2060
    %v2066 = vmul.f32 1.0, %v2065
    %v2067 = vtanh.pop %v1944
    %v2068 = vtanh.pop %v1946
    %v2069 = vmul.f32 %v2051, %v1885
    %v2070 = vmul.f32 %v2066, %v1886
    %2073 = vrot.lane.b32.xlu0 %v2067, 32
    %v2074 = vpop.permute.xlu0 %2073
    %2075 = vrot.lane.b32.xlu0 %v2068, 32
    %v2076 = vpop.permute.xlu0 %2075
    %v2079 = vmul.f32 %v2051, %v2074
    %v2080 = vmul.f32 %v2066, %v2076
    %2083 = vrot.lane.b32.xlu0 %v2079, 32
    %v2084 = vpop.permute.xlu0 %2083
    %2085 = vrot.lane.b32.xlu0 %v2080, 32
    %v2086 = vpop.permute.xlu0 %2085
    %v2089 = vadd.f32 %v2069, %v2084
    %v2090 = vadd.f32 %v2070, %v2086
    %v2091 = vtanh.pop %v2089
    %v2092 = vtanh.pop %v2090
    %2095 = vrot.lane.b32.xlu0 %v2091, 32
    %v2096 = vpop.permute.xlu0 %2095
    %2097 = vrot.lane.b32.xlu0 %v2092, 32
    %v2098 = vpop.permute.xlu0 %2097
    %v2101 = vmul.f32 %v2051, %v2096
    %v2102 = vmul.f32 %v2066, %v2098
    %2105 = vrot.lane.b32.xlu0 %v2027, 64
    %v2106 = vpop.permute.xlu0 %2105
    %2107 = vrot.lane.b32.xlu0 %v2028, 64
    %v2108 = vpop.permute.xlu0 %2107
    %2113 = vrot.lane.b32.xlu0 %v2101, 96
    %v2114 = vpop.permute.xlu0 %2113
    %2115 = vrot.lane.b32.xlu0 %v2102, 96
    %v2116 = vpop.permute.xlu0 %2115
    %v2119 = vsel %vm592, %v2106, %v2114
    %v2120 = vsel %vm592, %v2108, %v2116
    %2123 = vrot.lane.b32.xlu0 %v2015, 96
    %v2124 = vpop.permute.xlu0 %2123
    %2125 = vrot.lane.b32.xlu0 %v2016, 96
    %v2126 = vpop.permute.xlu0 %2125
    %v2129 = vsel %vm592, %v2124, %v2089
    %v2130 = vsel %vm592, %v2126, %v2090
    %v2131 = vsel %vm322, 6, 1
    %vm2132 = vcmp.gt.s32.totalorder %v608, %v2131
    %vm2133 = vcmp.gt.s32.totalorder %v611, %v2131
    %v2134 = vsel %vm2132, %v2119, 0.0
    %v2135 = vsel %vm2133, %v2120, 0.0
    %v2136 = vsel %vm2132, %v2129, %v1885
    %v2137 = vsel %vm2133, %v2130, %v1886
    %2138 = vst.msk [vmem:[%s876] sm:$0xff] %vm592, %v2134
    %2139 = vst.msk [vmem:[%s876 + $0x8] sm:$0xff] %vm592, %v2135
    %2140 = vst.msk [vmem:[%s873] sm:$0xff] %vm621, %v2134
    %2141 = vst.msk [vmem:[%s873 + $0x8] sm:$0xff] %vm621, %v2135
    %v2142 = vld [vmem:[%s333] sm:$0xff]
    %v2143 = vld [vmem:[%s333 + $0x8] sm:$0xff]
    %v2144 = vld [vmem:[#allocation2] sm:$0xff]
    %v2145 = vld [vmem:[#allocation2 + $0x8] sm:$0xff]
    %v2148 = vunpack.c.l.b16 %v2142
    %v2149 = vunpack.c.l.b16 %v2143
    %v2150 = vpack.c.b16 %v2149, %v2148
    %v2154 = vunpack.c.h.b16 %v2144
    %v2155 = vunpack.c.h.b16 %v2145
    %v2156 = vpack.c.b16 %v2155, %v2154
    %v2158 = vunpack.c.l.bf16 %v2150
    %v2159 = vunpack.c.l.bf16 %v2156
    %v2160 = vunpack.c.h.bf16 %v2150
    %v2161 = vunpack.c.h.bf16 %v2156
    %v2162 = vpack.c.bf16 %v2135, %v2134
    %v2164 = vsel %vm392, %v2162, 0
    %2166 = vmatpush.bf16.msra.mxu0 0
    %2167 = vmatpush.bf16.msra.mxu0 0
    %2168 = vmatpush.bf16.msra.mxu0 0
    %2169 = vmatpush.bf16.msra.mxu0 0
    %2170 = vmatpush.bf16.msra.mxu0 %v382
    %2171 = vmatpush.bf16.msra.mxu0 %v380
    %2172 = vmatpush.bf16.msra.mxu0 %v378
    %2173 = vmatpush.bf16.msra.mxu0 %v376
    %2174 = vmatmul.bf16.gmra.mxu0 %v2164
    %v2175 = vpop.f32.mrf.mxu0
    %v2176 = vadd.f32 0.0, %v2175
    %v2177 = vpop.f32.mrf.mxu0
    %v2178 = vadd.f32 0.0, %v2177
    %2179 = vdwg.mxu0
    %2180 = vmatpush.bf16.msra.mxu0 0
    %2181 = vmatpush.bf16.msra.mxu0 0
    %2182 = vmatpush.bf16.msra.mxu0 0
    %2183 = vmatpush.bf16.msra.mxu0 0
    %2184 = vmatpush.bf16.msra.mxu0 %v383
    %2185 = vmatpush.bf16.msra.mxu0 %v381
    %2186 = vmatpush.bf16.msra.mxu0 %v379
    %2187 = vmatpush.bf16.msra.mxu0 %v377
    %2188 = vmatmul.bf16.gmra.mxu0 %v2164
    %v2189 = vpop.f32.mrf.mxu0
    %v2190 = vadd.f32 0.0, %v2189
    %v2191 = vpop.f32.mrf.mxu0
    %v2192 = vadd.f32 0.0, %v2191
    %2193 = vdwg.mxu0
    %v2194 = vadd.f32 %v2158, %v2176
    %v2195 = vadd.f32 %v2159, %v2190
    %v2196 = vadd.f32 %v2160, %v2178
    %v2197 = vadd.f32 %v2161, %v2192
    %v2198 = vxor.u32 %v2194, 2147483648
    %v2199 = vxor.u32 %v2196, 2147483648
    %v2200 = vmul.f32 %v2198, 1.442695
    %v2201 = vpow.pop %v2200
    %v2202 = vmul.f32 %v2199, 1.442695
    %v2203 = vpow.pop %v2202
    %v2204 = vadd.f32 %v2201, 1.0
    %v2205 = vadd.f32 %v2203, 1.0
    %v2206 = vrcp.pop %v2204
    %v2207 = vmul.f32 %v2204, %v2206
    %v2208 = vsub.f32 1.0, %v2207
    %v2209 = vmul.f32 %v2206, %v2208
    %v2210 = vadd.f32 %v2206, %v2209
    %vm2211 = vweird.f32 %v2204
    %vm2212 = vweird.f32 %v2206
    %vm2213 = vmor %vm2211, %vm2212
    %v2214 = vsel %vm2213, %v2206, %v2210
    %v2215 = vand.u32 2147483647, %v2204
    %vm2216 = vcmp.eq.f32.partialorder %v2215, 8.507059e+37
    %v2217 = vand.u32 %v2204, 2147483648
    %v2218 = vor.u32 1.1754944e-38, %v2217
    %v2219 = vsel %vm2216, %v2218, %v2214
    %v2220 = vmul.f32 1.0, %v2219
    %v2221 = vrcp.pop %v2205
    %v2222 = vmul.f32 %v2205, %v2221
    %v2223 = vsub.f32 1.0, %v2222
    %v2224 = vmul.f32 %v2221, %v2223
    %v2225 = vadd.f32 %v2221, %v2224
    %vm2226 = vweird.f32 %v2205
    %vm2227 = vweird.f32 %v2221
    %vm2228 = vmor %vm2226, %vm2227
    %v2229 = vsel %vm2228, %v2221, %v2225
    %v2230 = vand.u32 2147483647, %v2205
    %vm2231 = vcmp.eq.f32.partialorder %v2230, 8.507059e+37
    %v2232 = vand.u32 %v2205, 2147483648
    %v2233 = vor.u32 1.1754944e-38, %v2232
    %v2234 = vsel %vm2231, %v2233, %v2229
    %v2235 = vmul.f32 1.0, %v2234
    %v2236 = vtanh.pop %v2194
    %v2237 = vtanh.pop %v2196
    %2240 = vrot.lane.b32.xlu0 %v2136, 32
    %v2241 = vpop.permute.xlu0 %2240
    %2242 = vrot.lane.b32.xlu0 %v2137, 32
    %v2243 = vpop.permute.xlu0 %2242
    %v2246 = vmul.f32 %v2220, %v2241
    %v2247 = vmul.f32 %v2235, %v2243
    %2250 = vrot.lane.b32.xlu0 %v2236, 32
    %v2251 = vpop.permute.xlu0 %2250
    %2252 = vrot.lane.b32.xlu0 %v2237, 32
    %v2253 = vpop.permute.xlu0 %2252
    %v2256 = vmul.f32 %v2220, %v2251
    %v2257 = vmul.f32 %v2235, %v2253
    %2260 = vrot.lane.b32.xlu0 %v2256, 32
    %v2261 = vpop.permute.xlu0 %2260
    %2262 = vrot.lane.b32.xlu0 %v2257, 32
    %v2263 = vpop.permute.xlu0 %2262
    %v2266 = vadd.f32 %v2246, %v2261
    %v2267 = vadd.f32 %v2247, %v2263
    %v2268 = vtanh.pop %v2266
    %v2269 = vtanh.pop %v2267
    %2272 = vrot.lane.b32.xlu0 %v2268, 32
    %v2273 = vpop.permute.xlu0 %2272
    %2274 = vrot.lane.b32.xlu0 %v2269, 32
    %v2275 = vpop.permute.xlu0 %2274
    %v2278 = vmul.f32 %v2220, %v2273
    %v2279 = vmul.f32 %v2235, %v2275
    %v2280 = vxor.u32 %v2195, 2147483648
    %v2281 = vxor.u32 %v2197, 2147483648
    %v2282 = vmul.f32 %v2280, 1.442695
    %v2283 = vpow.pop %v2282
    %v2284 = vmul.f32 %v2281, 1.442695
    %v2285 = vpow.pop %v2284
    %v2286 = vadd.f32 %v2283, 1.0
    %v2287 = vadd.f32 %v2285, 1.0
    %v2288 = vrcp.pop %v2286
    %v2289 = vmul.f32 %v2286, %v2288
    %v2290 = vsub.f32 1.0, %v2289
    %v2291 = vmul.f32 %v2288, %v2290
    %v2292 = vadd.f32 %v2288, %v2291
    %vm2293 = vweird.f32 %v2286
    %vm2294 = vweird.f32 %v2288
    %vm2295 = vmor %vm2293, %vm2294
    %v2296 = vsel %vm2295, %v2288, %v2292
    %v2297 = vand.u32 2147483647, %v2286
    %vm2298 = vcmp.eq.f32.partialorder %v2297, 8.507059e+37
    %v2299 = vand.u32 %v2286, 2147483648
    %v2300 = vor.u32 1.1754944e-38, %v2299
    %v2301 = vsel %vm2298, %v2300, %v2296
    %v2302 = vmul.f32 1.0, %v2301
    %v2303 = vrcp.pop %v2287
    %v2304 = vmul.f32 %v2287, %v2303
    %v2305 = vsub.f32 1.0, %v2304
    %v2306 = vmul.f32 %v2303, %v2305
    %v2307 = vadd.f32 %v2303, %v2306
    %vm2308 = vweird.f32 %v2287
    %vm2309 = vweird.f32 %v2303
    %vm2310 = vmor %vm2308, %vm2309
    %v2311 = vsel %vm2310, %v2303, %v2307
    %v2312 = vand.u32 2147483647, %v2287
    %vm2313 = vcmp.eq.f32.partialorder %v2312, 8.507059e+37
    %v2314 = vand.u32 %v2287, 2147483648
    %v2315 = vor.u32 1.1754944e-38, %v2314
    %v2316 = vsel %vm2313, %v2315, %v2311
    %v2317 = vmul.f32 1.0, %v2316
    %v2318 = vtanh.pop %v2195
    %v2319 = vtanh.pop %v2197
    %v2320 = vmul.f32 %v2302, %v2136
    %v2321 = vmul.f32 %v2317, %v2137
    %2324 = vrot.lane.b32.xlu0 %v2318, 32
    %v2325 = vpop.permute.xlu0 %2324
    %2326 = vrot.lane.b32.xlu0 %v2319, 32
    %v2327 = vpop.permute.xlu0 %2326
    %v2330 = vmul.f32 %v2302, %v2325
    %v2331 = vmul.f32 %v2317, %v2327
    %2334 = vrot.lane.b32.xlu0 %v2330, 32
    %v2335 = vpop.permute.xlu0 %2334
    %2336 = vrot.lane.b32.xlu0 %v2331, 32
    %v2337 = vpop.permute.xlu0 %2336
    %v2340 = vadd.f32 %v2320, %v2335
    %v2341 = vadd.f32 %v2321, %v2337
    %v2342 = vtanh.pop %v2340
    %v2343 = vtanh.pop %v2341
    %2346 = vrot.lane.b32.xlu0 %v2342, 32
    %v2347 = vpop.permute.xlu0 %2346
    %2348 = vrot.lane.b32.xlu0 %v2343, 32
    %v2349 = vpop.permute.xlu0 %2348
    %v2352 = vmul.f32 %v2302, %v2347
    %v2353 = vmul.f32 %v2317, %v2349
    %2356 = vrot.lane.b32.xlu0 %v2278, 64
    %v2357 = vpop.permute.xlu0 %2356
    %2358 = vrot.lane.b32.xlu0 %v2279, 64
    %v2359 = vpop.permute.xlu0 %2358
    %2364 = vrot.lane.b32.xlu0 %v2352, 96
    %v2365 = vpop.permute.xlu0 %2364
    %2366 = vrot.lane.b32.xlu0 %v2353, 96
    %v2367 = vpop.permute.xlu0 %2366
    %v2370 = vsel %vm592, %v2357, %v2365
    %v2371 = vsel %vm592, %v2359, %v2367
    %v2372 = vsel %vm322, 7, 0
    %vm2373 = vcmp.gt.s32.totalorder %v608, %v2372
    %vm2374 = vcmp.gt.s32.totalorder %v611, %v2372
    %v2375 = vsel %vm2373, %v2370, 0.0
    %v2376 = vsel %vm2374, %v2371, 0.0
    %2377 = vst.msk [vmem:[%s620] sm:$0xff] %vm592, %v2375
    %2378 = vst.msk [vmem:[%s620 + $0x8] sm:$0xff] %vm592, %v2376
    %2379 = vst.msk [vmem:[#allocation3] sm:$0xff] %vm621, %v2375
    %2380 = vst.msk [vmem:[#allocation3 + $0x8] sm:$0xff] %vm621, %v2376
    %v2381 = vld [vmem:[#allocation3] sm:$0xff]
    %v2382 = vld [vmem:[#allocation3 + $0x8] sm:$0xff]
    %v2383 = vld [vmem:[#allocation3 + $0x10] sm:$0xff]
    %v2384 = vld [vmem:[#allocation3 + $0x18] sm:$0xff]
    %v2385 = vld [vmem:[#allocation3 + $0x20] sm:$0xff]
    %v2386 = vld [vmem:[#allocation3 + $0x28] sm:$0xff]
    %v2387 = vld [vmem:[#allocation3 + $0x30] sm:$0xff]
    %v2388 = vld [vmem:[#allocation3 + $0x38] sm:$0xff]
    %v2389 = vld [vmem:[#allocation3 + $0x40] sm:$0xff]
    %v2390 = vld [vmem:[#allocation3 + $0x48] sm:$0xff]
    %v2391 = vld [vmem:[#allocation3 + $0x50] sm:$0xff]
    %v2392 = vld [vmem:[#allocation3 + $0x58] sm:$0xff]
    %v2393 = vld [vmem:[#allocation3 + $0x60] sm:$0xff]
    %v2394 = vld [vmem:[#allocation3 + $0x68] sm:$0xff]
    %v2395 = vld [vmem:[#allocation3 + $0x70] sm:$0xff]
    %v2396 = vld [vmem:[#allocation3 + $0x78] sm:$0xff]
    %v2397 = vpack.c.bf16 %v2381, %v2381
    %v2398 = vpack.c.bf16 %v2382, %v2382
    %v2399 = vpack.c.bf16 %v2383, %v2383
    %v2400 = vpack.c.bf16 %v2384, %v2384
    %v2401 = vpack.c.bf16 %v2385, %v2385
    %v2402 = vpack.c.bf16 %v2386, %v2386
    %v2403 = vpack.c.bf16 %v2387, %v2387
    %v2404 = vpack.c.bf16 %v2388, %v2388
    %v2405 = vpack.c.bf16 %v2389, %v2389
    %v2406 = vpack.c.bf16 %v2390, %v2390
    %v2407 = vpack.c.bf16 %v2391, %v2391
    %v2408 = vpack.c.bf16 %v2392, %v2392
    %v2409 = vpack.c.bf16 %v2393, %v2393
    %v2410 = vpack.c.bf16 %v2394, %v2394
    %v2411 = vpack.c.bf16 %v2395, %v2395
    %v2412 = vpack.c.bf16 %v2396, %v2396
    %v2413 = vld [vmem:[#allocation6] sm:$0xff]
    %v2414 = vld [vmem:[#allocation6 + $0x8] sm:$0xff]
    %v2415 = vld [vmem:[#allocation6 + $0x10] sm:$0xff]
    %v2416 = vld [vmem:[#allocation6 + $0x18] sm:$0xff]
    %v2417 = vld [vmem:[#allocation6 + $0x20] sm:$0xff]
    %v2418 = vld [vmem:[#allocation6 + $0x28] sm:$0xff]
    %v2419 = vld [vmem:[#allocation6 + $0x30] sm:$0xff]
    %v2420 = vld [vmem:[#allocation6 + $0x38] sm:$0xff]
    %v2421 = vld [vmem:[%s6] sm:$0x3]
    %v2423 = vperm.slane %v2421, 0
    %v2424 = vperm.slane %v2421, 1
    %v2443 = vunpack.c.l.b16 %v2397
    %v2444 = vunpack.c.l.b16 %v2398
    %v2445 = vunpack.c.l.b16 %v2399
    %v2446 = vunpack.c.l.b16 %v2400
    %v2447 = vunpack.c.l.b16 %v2401
    %v2448 = vunpack.c.l.b16 %v2402
    %v2449 = vunpack.c.l.b16 %v2403
    %v2450 = vunpack.c.l.b16 %v2404
    %v2451 = vunpack.c.l.b16 %v2405
    %v2452 = vunpack.c.l.b16 %v2406
    %v2453 = vunpack.c.l.b16 %v2407
    %v2454 = vunpack.c.l.b16 %v2408
    %v2455 = vunpack.c.l.b16 %v2409
    %v2456 = vunpack.c.l.b16 %v2410
    %v2457 = vunpack.c.l.b16 %v2411
    %v2458 = vunpack.c.l.b16 %v2412
    %v2459 = vpack.c.b16 %v2444, %v2443
    %v2460 = vpack.c.b16 %v2446, %v2445
    %v2461 = vpack.c.b16 %v2448, %v2447
    %v2462 = vpack.c.b16 %v2450, %v2449
    %v2463 = vpack.c.b16 %v2452, %v2451
    %v2464 = vpack.c.b16 %v2454, %v2453
    %v2465 = vpack.c.b16 %v2456, %v2455
    %v2466 = vpack.c.b16 %v2458, %v2457
    %v2475 = vunpack.c.l.b16 %v2413
    %v2476 = vunpack.c.h.b16 %v2413
    %v2477 = vunpack.c.l.b16 %v2414
    %v2478 = vunpack.c.h.b16 %v2414
    %v2479 = vunpack.c.l.b16 %v2415
    %v2480 = vunpack.c.h.b16 %v2415
    %v2481 = vunpack.c.l.b16 %v2416
    %v2482 = vunpack.c.h.b16 %v2416
    %v2483 = vunpack.c.l.b16 %v2417
    %v2484 = vunpack.c.h.b16 %v2417
    %v2485 = vunpack.c.l.b16 %v2418
    %v2486 = vunpack.c.h.b16 %v2418
    %v2487 = vunpack.c.l.b16 %v2419
    %v2488 = vunpack.c.h.b16 %v2419
    %v2489 = vunpack.c.l.b16 %v2420
    %v2490 = vunpack.c.h.b16 %v2420
    %v2491 = vpack.c.b16 %v2477, %v2475
    %v2492 = vpack.c.b16 %v2478, %v2476
    %v2493 = vpack.c.b16 %v2481, %v2479
    %v2494 = vpack.c.b16 %v2482, %v2480
    %v2495 = vpack.c.b16 %v2485, %v2483
    %v2496 = vpack.c.b16 %v2486, %v2484
    %v2497 = vpack.c.b16 %v2489, %v2487
    %v2498 = vpack.c.b16 %v2490, %v2488
    %v2508 = vsel %vm392, %v2459, 0
    %v2511 = vsel %vm392, %v2460, 0
    %v2514 = vsel %vm392, %v2461, 0
    %v2517 = vsel %vm392, %v2462, 0
    %v2520 = vsel %vm392, %v2463, 0
    %v2523 = vsel %vm392, %v2464, 0
    %v2526 = vsel %vm392, %v2465, 0
    %v2529 = vsel %vm392, %v2466, 0
    %2531 = vmatpush.bf16.msra.mxu0 0
    %2532 = vmatpush.bf16.msra.mxu0 0
    %2533 = vmatpush.bf16.msra.mxu0 0
    %2534 = vmatpush.bf16.msra.mxu0 0
    %2535 = vmatpush.bf16.msra.mxu0 %v2497
    %2536 = vmatpush.bf16.msra.mxu0 %v2495
    %2537 = vmatpush.bf16.msra.mxu0 %v2493
    %2538 = vmatpush.bf16.msra.mxu0 %v2491
    %2539 = vmatmul.bf16.gmra.mxu0 %v2508
    %v2540 = vpop.f32.mrf.mxu0
    %v2541 = vadd.f32 %v2423, %v2540
    %v2542 = vpop.f32.mrf.mxu0
    %v2543 = vadd.f32 %v2423, %v2542
    %2544 = vmatmul.bf16.gmra.mxu0 %v2511
    %v2545 = vpop.f32.mrf.mxu0
    %v2546 = vadd.f32 %v2423, %v2545
    %v2547 = vpop.f32.mrf.mxu0
    %v2548 = vadd.f32 %v2423, %v2547
    %2549 = vmatmul.bf16.gmra.mxu0 %v2514
    %v2550 = vpop.f32.mrf.mxu0
    %v2551 = vadd.f32 %v2423, %v2550
    %v2552 = vpop.f32.mrf.mxu0
    %v2553 = vadd.f32 %v2423, %v2552
    %2554 = vmatmul.bf16.gmra.mxu0 %v2517
    %v2555 = vpop.f32.mrf.mxu0
    %v2556 = vadd.f32 %v2423, %v2555
    %v2557 = vpop.f32.mrf.mxu0
    %v2558 = vadd.f32 %v2423, %v2557
    %2559 = vmatmul.bf16.gmra.mxu0 %v2520
    %v2560 = vpop.f32.mrf.mxu0
    %v2561 = vadd.f32 %v2423, %v2560
    %v2562 = vpop.f32.mrf.mxu0
    %v2563 = vadd.f32 %v2423, %v2562
    %2564 = vmatmul.bf16.gmra.mxu0 %v2523
    %v2565 = vpop.f32.mrf.mxu0
    %v2566 = vadd.f32 %v2423, %v2565
    %v2567 = vpop.f32.mrf.mxu0
    %v2568 = vadd.f32 %v2423, %v2567
    %2569 = vmatmul.bf16.gmra.mxu0 %v2526
    %v2570 = vpop.f32.mrf.mxu0
    %v2571 = vadd.f32 %v2423, %v2570
    %v2572 = vpop.f32.mrf.mxu0
    %v2573 = vadd.f32 %v2423, %v2572
    %2574 = vmatmul.bf16.gmra.mxu0 %v2529
    %v2575 = vpop.f32.mrf.mxu0
    %v2576 = vadd.f32 %v2423, %v2575
    %v2577 = vpop.f32.mrf.mxu0
    %v2578 = vadd.f32 %v2423, %v2577
    %2579 = vdwg.mxu0
    %2580 = vmatpush.bf16.msra.mxu0 0
    %2581 = vmatpush.bf16.msra.mxu0 0
    %2582 = vmatpush.bf16.msra.mxu0 0
    %2583 = vmatpush.bf16.msra.mxu0 0
    %2584 = vmatpush.bf16.msra.mxu0 %v2498
    %2585 = vmatpush.bf16.msra.mxu0 %v2496
    %2586 = vmatpush.bf16.msra.mxu0 %v2494
    %2587 = vmatpush.bf16.msra.mxu0 %v2492
    %2588 = vmatmul.bf16.gmra.mxu0 %v2508
    %v2589 = vpop.f32.mrf.mxu0
    %v2590 = vadd.f32 %v2424, %v2589
    %v2591 = vpop.f32.mrf.mxu0
    %v2592 = vadd.f32 %v2424, %v2591
    %2593 = vmatmul.bf16.gmra.mxu0 %v2511
    %v2594 = vpop.f32.mrf.mxu0
    %v2595 = vadd.f32 %v2424, %v2594
    %v2596 = vpop.f32.mrf.mxu0
    %v2597 = vadd.f32 %v2424, %v2596
    %2598 = vmatmul.bf16.gmra.mxu0 %v2514
    %v2599 = vpop.f32.mrf.mxu0
    %v2600 = vadd.f32 %v2424, %v2599
    %v2601 = vpop.f32.mrf.mxu0
    %v2602 = vadd.f32 %v2424, %v2601
    %2603 = vmatmul.bf16.gmra.mxu0 %v2517
    %v2604 = vpop.f32.mrf.mxu0
    %v2605 = vadd.f32 %v2424, %v2604
    %v2606 = vpop.f32.mrf.mxu0
    %v2607 = vadd.f32 %v2424, %v2606
    %2608 = vmatmul.bf16.gmra.mxu0 %v2520
    %v2609 = vpop.f32.mrf.mxu0
    %v2610 = vadd.f32 %v2424, %v2609
    %v2611 = vpop.f32.mrf.mxu0
    %v2612 = vadd.f32 %v2424, %v2611
    %2613 = vmatmul.bf16.gmra.mxu0 %v2523
    %v2614 = vpop.f32.mrf.mxu0
    %v2615 = vadd.f32 %v2424, %v2614
    %v2616 = vpop.f32.mrf.mxu0
    %v2617 = vadd.f32 %v2424, %v2616
    %2618 = vmatmul.bf16.gmra.mxu0 %v2526
    %v2619 = vpop.f32.mrf.mxu0
    %v2620 = vadd.f32 %v2424, %v2619
    %v2621 = vpop.f32.mrf.mxu0
    %v2622 = vadd.f32 %v2424, %v2621
    %2623 = vmatmul.bf16.gmra.mxu0 %v2529
    %v2624 = vpop.f32.mrf.mxu0
    %v2625 = vadd.f32 %v2424, %v2624
    %v2626 = vpop.f32.mrf.mxu0
    %v2627 = vadd.f32 %v2424, %v2626
    %2628 = vdwg.mxu0
    %v2629 = vpack.c.bf16 %v2590, %v2541
    %v2630 = vpack.c.bf16 %v2592, %v2543
    %v2631 = vpack.c.bf16 %v2595, %v2546
    %v2632 = vpack.c.bf16 %v2597, %v2548
    %v2633 = vpack.c.bf16 %v2600, %v2551
    %v2634 = vpack.c.bf16 %v2602, %v2553
    %v2635 = vpack.c.bf16 %v2605, %v2556
    %v2636 = vpack.c.bf16 %v2607, %v2558
    %v2637 = vpack.c.bf16 %v2610, %v2561
    %v2638 = vpack.c.bf16 %v2612, %v2563
    %v2639 = vpack.c.bf16 %v2615, %v2566
    %v2640 = vpack.c.bf16 %v2617, %v2568
    %v2641 = vpack.c.bf16 %v2620, %v2571
    %v2642 = vpack.c.bf16 %v2622, %v2573
    %v2643 = vpack.c.bf16 %v2625, %v2576
    %v2644 = vpack.c.bf16 %v2627, %v2578
    %2645 = vst [vmem:[#allocation2] sm:$0xff] %v2629
    %2646 = vst [vmem:[#allocation2 + $0x8] sm:$0xff] %v2630
    %2647 = vst [vmem:[#allocation2 + $0x10] sm:$0xff] %v2631
    %2648 = vst [vmem:[#allocation2 + $0x18] sm:$0xff] %v2632
    %2649 = vst [vmem:[#allocation2 + $0x20] sm:$0xff] %v2633
    %2650 = vst [vmem:[#allocation2 + $0x28] sm:$0xff] %v2634
    %2651 = vst [vmem:[#allocation2 + $0x30] sm:$0xff] %v2635
    %2652 = vst [vmem:[#allocation2 + $0x38] sm:$0xff] %v2636
    %2653 = vst [vmem:[#allocation2 + $0x40] sm:$0xff] %v2637
    %2654 = vst [vmem:[#allocation2 + $0x48] sm:$0xff] %v2638
    %2655 = vst [vmem:[#allocation2 + $0x50] sm:$0xff] %v2639
    %2656 = vst [vmem:[#allocation2 + $0x58] sm:$0xff] %v2640
    %2657 = vst [vmem:[#allocation2 + $0x60] sm:$0xff] %v2641
    %2658 = vst [vmem:[#allocation2 + $0x68] sm:$0xff] %v2642
    %2659 = vst [vmem:[#allocation2 + $0x70] sm:$0xff] %v2643
    %2660 = vst [vmem:[#allocation2 + $0x78] sm:$0xff] %v2644
    %v2661 = vld [vmem:[#allocation8] sm:$0xff]
    %v2662 = vld [vmem:[#allocation8 + $0x8] sm:$0xff]
    %v2663 = vld [vmem:[#allocation8 + $0x10] sm:$0xff]
    %v2664 = vld [vmem:[#allocation8 + $0x18] sm:$0xff]
    %v2665 = vld [vmem:[#allocation8 + $0x20] sm:$0xff]
    %v2666 = vld [vmem:[#allocation8 + $0x28] sm:$0xff]
    %v2667 = vld [vmem:[#allocation8 + $0x30] sm:$0xff]
    %v2668 = vld [vmem:[#allocation8 + $0x38] sm:$0xff]
    %v2669 = vld [vmem:[#allocation2] sm:$0xff]
    %v2670 = vld [vmem:[#allocation2 + $0x8] sm:$0xff]
    %v2671 = vld [vmem:[%s333] sm:$0xff]
    %v2672 = vld [vmem:[%s333 + $0x8] sm:$0xff]
    %v2675 = vunpack.c.l.b16 %v2669
    %v2676 = vunpack.c.l.b16 %v2670
    %v2677 = vpack.c.b16 %v2676, %v2675
    %v2681 = vunpack.c.h.b16 %v2671
    %v2682 = vunpack.c.h.b16 %v2672
    %v2683 = vpack.c.b16 %v2682, %v2681
    %v2685 = vunpack.c.l.bf16 %v2677
    %v2686 = vunpack.c.l.bf16 %v2683
    %v2687 = vunpack.c.h.bf16 %v2677
    %v2688 = vunpack.c.h.bf16 %v2683
    %v2697 = vunpack.c.l.b16 %v2661
    %v2698 = vunpack.c.h.b16 %v2661
    %v2699 = vunpack.c.l.b16 %v2662
    %v2700 = vunpack.c.h.b16 %v2662
    %v2701 = vunpack.c.l.b16 %v2663
    %v2702 = vunpack.c.h.b16 %v2663
    %v2703 = vunpack.c.l.b16 %v2664
    %v2704 = vunpack.c.h.b16 %v2664
    %v2705 = vunpack.c.l.b16 %v2665
    %v2706 = vunpack.c.h.b16 %v2665
    %v2707 = vunpack.c.l.b16 %v2666
    %v2708 = vunpack.c.h.b16 %v2666
    %v2709 = vunpack.c.l.b16 %v2667
    %v2710 = vunpack.c.h.b16 %v2667
    %v2711 = vunpack.c.l.b16 %v2668
    %v2712 = vunpack.c.h.b16 %v2668
    %v2713 = vpack.c.b16 %v2699, %v2697
    %v2714 = vpack.c.b16 %v2700, %v2698
    %v2715 = vpack.c.b16 %v2703, %v2701
    %v2716 = vpack.c.b16 %v2704, %v2702
    %v2717 = vpack.c.b16 %v2707, %v2705
    %v2718 = vpack.c.b16 %v2708, %v2706
    %v2719 = vpack.c.b16 %v2711, %v2709
    %v2720 = vpack.c.b16 %v2712, %v2710
    %2729 = vmatpush.bf16.msra.mxu0 0
    %2730 = vmatpush.bf16.msra.mxu0 0
    %2731 = vmatpush.bf16.msra.mxu0 0
    %2732 = vmatpush.bf16.msra.mxu0 0
    %2733 = vmatpush.bf16.msra.mxu0 %v2719
    %2734 = vmatpush.bf16.msra.mxu0 %v2717
    %2735 = vmatpush.bf16.msra.mxu0 %v2715
    %2736 = vmatpush.bf16.msra.mxu0 %v2713
    %2737 = vmatmul.bf16.gmra.mxu0 %v394
    %v2738 = vpop.f32.mrf.mxu0
    %v2739 = vadd.f32 0.0, %v2738
    %v2740 = vpop.f32.mrf.mxu0
    %v2741 = vadd.f32 0.0, %v2740
    %2742 = vdwg.mxu0
    %2743 = vmatpush.bf16.msra.mxu0 0
    %2744 = vmatpush.bf16.msra.mxu0 0
    %2745 = vmatpush.bf16.msra.mxu0 0
    %2746 = vmatpush.bf16.msra.mxu0 0
    %2747 = vmatpush.bf16.msra.mxu0 %v2720
    %2748 = vmatpush.bf16.msra.mxu0 %v2718
    %2749 = vmatpush.bf16.msra.mxu0 %v2716
    %2750 = vmatpush.bf16.msra.mxu0 %v2714
    %2751 = vmatmul.bf16.gmra.mxu0 %v394
    %v2752 = vpop.f32.mrf.mxu0
    %v2753 = vadd.f32 0.0, %v2752
    %v2754 = vpop.f32.mrf.mxu0
    %v2755 = vadd.f32 0.0, %v2754
    %2756 = vdwg.mxu0
    %v2757 = vadd.f32 %v2685, %v2739
    %v2758 = vadd.f32 %v2686, %v2753
    %v2759 = vadd.f32 %v2687, %v2741
    %v2760 = vadd.f32 %v2688, %v2755
    %v2761 = vxor.u32 %v2757, 2147483648
    %v2762 = vxor.u32 %v2759, 2147483648
    %v2763 = vmul.f32 %v2761, 1.442695
    %v2764 = vpow.pop %v2763
    %v2765 = vmul.f32 %v2762, 1.442695
    %v2766 = vpow.pop %v2765
    %v2767 = vadd.f32 %v2764, 1.0
    %v2768 = vadd.f32 %v2766, 1.0
    %v2769 = vrcp.pop %v2767
    %v2770 = vmul.f32 %v2767, %v2769
    %v2771 = vsub.f32 1.0, %v2770
    %v2772 = vmul.f32 %v2769, %v2771
    %v2773 = vadd.f32 %v2769, %v2772
    %vm2774 = vweird.f32 %v2767
    %vm2775 = vweird.f32 %v2769
    %vm2776 = vmor %vm2774, %vm2775
    %v2777 = vsel %vm2776, %v2769, %v2773
    %v2778 = vand.u32 2147483647, %v2767
    %vm2779 = vcmp.eq.f32.partialorder %v2778, 8.507059e+37
    %v2780 = vand.u32 %v2767, 2147483648
    %v2781 = vor.u32 1.1754944e-38, %v2780
    %v2782 = vsel %vm2779, %v2781, %v2777
    %v2783 = vmul.f32 1.0, %v2782
    %v2784 = vrcp.pop %v2768
    %v2785 = vmul.f32 %v2768, %v2784
    %v2786 = vsub.f32 1.0, %v2785
    %v2787 = vmul.f32 %v2784, %v2786
    %v2788 = vadd.f32 %v2784, %v2787
    %vm2789 = vweird.f32 %v2768
    %vm2790 = vweird.f32 %v2784
    %vm2791 = vmor %vm2789, %vm2790
    %v2792 = vsel %vm2791, %v2784, %v2788
    %v2793 = vand.u32 2147483647, %v2768
    %vm2794 = vcmp.eq.f32.partialorder %v2793, 8.507059e+37
    %v2795 = vand.u32 %v2768, 2147483648
    %v2796 = vor.u32 1.1754944e-38, %v2795
    %v2797 = vsel %vm2794, %v2796, %v2792
    %v2798 = vmul.f32 1.0, %v2797
    %v2799 = vtanh.pop %v2757
    %v2800 = vtanh.pop %v2759
    %v2801 = vmul.f32 %v2783, 0.0
    %v2802 = vmul.f32 %v2798, 0.0
    %2805 = vrot.lane.b32.xlu0 %v2799, 32
    %v2806 = vpop.permute.xlu0 %2805
    %2807 = vrot.lane.b32.xlu0 %v2800, 32
    %v2808 = vpop.permute.xlu0 %2807
    %v2811 = vmul.f32 %v2783, %v2806
    %v2812 = vmul.f32 %v2798, %v2808
    %2815 = vrot.lane.b32.xlu0 %v2811, 32
    %v2816 = vpop.permute.xlu0 %2815
    %2817 = vrot.lane.b32.xlu0 %v2812, 32
    %v2818 = vpop.permute.xlu0 %2817
    %v2821 = vadd.f32 %v2801, %v2816
    %v2822 = vadd.f32 %v2802, %v2818
    %v2823 = vtanh.pop %v2821
    %v2824 = vtanh.pop %v2822
    %2827 = vrot.lane.b32.xlu0 %v2823, 32
    %v2828 = vpop.permute.xlu0 %2827
    %2829 = vrot.lane.b32.xlu0 %v2824, 32
    %v2830 = vpop.permute.xlu0 %2829
    %v2833 = vmul.f32 %v2783, %v2828
    %v2834 = vmul.f32 %v2798, %v2830
    %v2835 = vxor.u32 %v2758, 2147483648
    %v2836 = vxor.u32 %v2760, 2147483648
    %v2837 = vmul.f32 %v2835, 1.442695
    %v2838 = vpow.pop %v2837
    %v2839 = vmul.f32 %v2836, 1.442695
    %v2840 = vpow.pop %v2839
    %v2841 = vadd.f32 %v2838, 1.0
    %v2842 = vadd.f32 %v2840, 1.0
    %v2843 = vrcp.pop %v2841
    %v2844 = vmul.f32 %v2841, %v2843
    %v2845 = vsub.f32 1.0, %v2844
    %v2846 = vmul.f32 %v2843, %v2845
    %v2847 = vadd.f32 %v2843, %v2846
    %vm2848 = vweird.f32 %v2841
    %vm2849 = vweird.f32 %v2843
    %vm2850 = vmor %vm2848, %vm2849
    %v2851 = vsel %vm2850, %v2843, %v2847
    %v2852 = vand.u32 2147483647, %v2841
    %vm2853 = vcmp.eq.f32.partialorder %v2852, 8.507059e+37
    %v2854 = vand.u32 %v2841, 2147483648
    %v2855 = vor.u32 1.1754944e-38, %v2854
    %v2856 = vsel %vm2853, %v2855, %v2851
    %v2857 = vmul.f32 1.0, %v2856
    %v2858 = vrcp.pop %v2842
    %v2859 = vmul.f32 %v2842, %v2858
    %v2860 = vsub.f32 1.0, %v2859
    %v2861 = vmul.f32 %v2858, %v2860
    %v2862 = vadd.f32 %v2858, %v2861
    %vm2863 = vweird.f32 %v2842
    %vm2864 = vweird.f32 %v2858
    %vm2865 = vmor %vm2863, %vm2864
    %v2866 = vsel %vm2865, %v2858, %v2862
    %v2867 = vand.u32 2147483647, %v2842
    %vm2868 = vcmp.eq.f32.partialorder %v2867, 8.507059e+37
    %v2869 = vand.u32 %v2842, 2147483648
    %v2870 = vor.u32 1.1754944e-38, %v2869
    %v2871 = vsel %vm2868, %v2870, %v2866
    %v2872 = vmul.f32 1.0, %v2871
    %v2873 = vtanh.pop %v2758
    %v2874 = vtanh.pop %v2760
    %v2875 = vmul.f32 %v2857, 0.0
    %v2876 = vmul.f32 %v2872, 0.0
    %2879 = vrot.lane.b32.xlu0 %v2873, 32
    %v2880 = vpop.permute.xlu0 %2879
    %2881 = vrot.lane.b32.xlu0 %v2874, 32
    %v2882 = vpop.permute.xlu0 %2881
    %v2885 = vmul.f32 %v2857, %v2880
    %v2886 = vmul.f32 %v2872, %v2882
    %2889 = vrot.lane.b32.xlu0 %v2885, 32
    %v2890 = vpop.permute.xlu0 %2889
    %2891 = vrot.lane.b32.xlu0 %v2886, 32
    %v2892 = vpop.permute.xlu0 %2891
    %v2895 = vadd.f32 %v2875, %v2890
    %v2896 = vadd.f32 %v2876, %v2892
    %v2897 = vtanh.pop %v2895
    %v2898 = vtanh.pop %v2896
    %2901 = vrot.lane.b32.xlu0 %v2897, 32
    %v2902 = vpop.permute.xlu0 %2901
    %2903 = vrot.lane.b32.xlu0 %v2898, 32
    %v2904 = vpop.permute.xlu0 %2903
    %v2907 = vmul.f32 %v2857, %v2902
    %v2908 = vmul.f32 %v2872, %v2904
    %2911 = vrot.lane.b32.xlu0 %v2833, 64
    %v2912 = vpop.permute.xlu0 %2911
    %2913 = vrot.lane.b32.xlu0 %v2834, 64
    %v2914 = vpop.permute.xlu0 %2913
    %2919 = vrot.lane.b32.xlu0 %v2907, 96
    %v2920 = vpop.permute.xlu0 %2919
    %2921 = vrot.lane.b32.xlu0 %v2908, 96
    %v2922 = vpop.permute.xlu0 %2921
    %v2925 = vsel %vm592, %v2912, %v2920
    %v2926 = vsel %vm592, %v2914, %v2922
    %2929 = vrot.lane.b32.xlu0 %v2821, 96
    %v2930 = vpop.permute.xlu0 %2929
    %2931 = vrot.lane.b32.xlu0 %v2822, 96
    %v2932 = vpop.permute.xlu0 %2931
    %v2935 = vsel %vm592, %v2930, %v2895
    %v2936 = vsel %vm592, %v2932, %v2896
    %v2937 = vsel %vm612, %v2925, 0.0
    %v2938 = vsel %vm613, %v2926, 0.0
    %v2939 = vsel %vm612, %v2935, 0.0
    %v2940 = vsel %vm613, %v2936, 0.0
    %v2941 = vadd.f32 %v2937, 0.0
    %v2942 = vadd.f32 %v2938, 0.0
    %v2943 = vld [vmem:[%s624] sm:$0xff]
    %v2944 = vld [vmem:[%s624 + $0x8] sm:$0xff]
    %v2945 = vld [vmem:[%s627] sm:$0xff]
    %v2946 = vld [vmem:[%s627 + $0x8] sm:$0xff]
    %v2949 = vunpack.c.l.b16 %v2943
    %v2950 = vunpack.c.l.b16 %v2944
    %v2951 = vpack.c.b16 %v2950, %v2949
    %v2955 = vunpack.c.h.b16 %v2945
    %v2956 = vunpack.c.h.b16 %v2946
    %v2957 = vpack.c.b16 %v2956, %v2955
    %v2959 = vunpack.c.l.bf16 %v2951
    %v2960 = vunpack.c.l.bf16 %v2957
    %v2961 = vunpack.c.h.bf16 %v2951
    %v2962 = vunpack.c.h.bf16 %v2957
    %v2963 = vpack.c.bf16 %v2938, %v2937
    %v2965 = vsel %vm392, %v2963, 0
    %2967 = vmatpush.bf16.msra.mxu0 0
    %2968 = vmatpush.bf16.msra.mxu0 0
    %2969 = vmatpush.bf16.msra.mxu0 0
    %2970 = vmatpush.bf16.msra.mxu0 0
    %2971 = vmatpush.bf16.msra.mxu0 %v2719
    %2972 = vmatpush.bf16.msra.mxu0 %v2717
    %2973 = vmatpush.bf16.msra.mxu0 %v2715
    %2974 = vmatpush.bf16.msra.mxu0 %v2713
    %2975 = vmatmul.bf16.gmra.mxu0 %v2965
    %v2976 = vpop.f32.mrf.mxu0
    %v2977 = vadd.f32 0.0, %v2976
    %v2978 = vpop.f32.mrf.mxu0
    %v2979 = vadd.f32 0.0, %v2978
    %2980 = vdwg.mxu0
    %2981 = vmatpush.bf16.msra.mxu0 0
    %2982 = vmatpush.bf16.msra.mxu0 0
    %2983 = vmatpush.bf16.msra.mxu0 0
    %2984 = vmatpush.bf16.msra.mxu0 0
    %2985 = vmatpush.bf16.msra.mxu0 %v2720
    %2986 = vmatpush.bf16.msra.mxu0 %v2718
    %2987 = vmatpush.bf16.msra.mxu0 %v2716
    %2988 = vmatpush.bf16.msra.mxu0 %v2714
    %2989 = vmatmul.bf16.gmra.mxu0 %v2965
    %v2990 = vpop.f32.mrf.mxu0
    %v2991 = vadd.f32 0.0, %v2990
    %v2992 = vpop.f32.mrf.mxu0
    %v2993 = vadd.f32 0.0, %v2992
    %2994 = vdwg.mxu0
    %v2995 = vadd.f32 %v2959, %v2977
    %v2996 = vadd.f32 %v2960, %v2991
    %v2997 = vadd.f32 %v2961, %v2979
    %v2998 = vadd.f32 %v2962, %v2993
    %v2999 = vxor.u32 %v2995, 2147483648
    %v3000 = vxor.u32 %v2997, 2147483648
    %v3001 = vmul.f32 %v2999, 1.442695
    %v3002 = vpow.pop %v3001
    %v3003 = vmul.f32 %v3000, 1.442695
    %v3004 = vpow.pop %v3003
    %v3005 = vadd.f32 %v3002, 1.0
    %v3006 = vadd.f32 %v3004, 1.0
    %v3007 = vrcp.pop %v3005
    %v3008 = vmul.f32 %v3005, %v3007
    %v3009 = vsub.f32 1.0, %v3008
    %v3010 = vmul.f32 %v3007, %v3009
    %v3011 = vadd.f32 %v3007, %v3010
    %vm3012 = vweird.f32 %v3005
    %vm3013 = vweird.f32 %v3007
    %vm3014 = vmor %vm3012, %vm3013
    %v3015 = vsel %vm3014, %v3007, %v3011
    %v3016 = vand.u32 2147483647, %v3005
    %vm3017 = vcmp.eq.f32.partialorder %v3016, 8.507059e+37
    %v3018 = vand.u32 %v3005, 2147483648
    %v3019 = vor.u32 1.1754944e-38, %v3018
    %v3020 = vsel %vm3017, %v3019, %v3015
    %v3021 = vmul.f32 1.0, %v3020
    %v3022 = vrcp.pop %v3006
    %v3023 = vmul.f32 %v3006, %v3022
    %v3024 = vsub.f32 1.0, %v3023
    %v3025 = vmul.f32 %v3022, %v3024
    %v3026 = vadd.f32 %v3022, %v3025
    %vm3027 = vweird.f32 %v3006
    %vm3028 = vweird.f32 %v3022
    %vm3029 = vmor %vm3027, %vm3028
    %v3030 = vsel %vm3029, %v3022, %v3026
    %v3031 = vand.u32 2147483647, %v3006
    %vm3032 = vcmp.eq.f32.partialorder %v3031, 8.507059e+37
    %v3033 = vand.u32 %v3006, 2147483648
    %v3034 = vor.u32 1.1754944e-38, %v3033
    %v3035 = vsel %vm3032, %v3034, %v3030
    %v3036 = vmul.f32 1.0, %v3035
    %v3037 = vtanh.pop %v2995
    %v3038 = vtanh.pop %v2997
    %3041 = vrot.lane.b32.xlu0 %v2939, 32
    %v3042 = vpop.permute.xlu0 %3041
    %3043 = vrot.lane.b32.xlu0 %v2940, 32
    %v3044 = vpop.permute.xlu0 %3043
    %v3047 = vmul.f32 %v3021, %v3042
    %v3048 = vmul.f32 %v3036, %v3044
    %3051 = vrot.lane.b32.xlu0 %v3037, 32
    %v3052 = vpop.permute.xlu0 %3051
    %3053 = vrot.lane.b32.xlu0 %v3038, 32
    %v3054 = vpop.permute.xlu0 %3053
    %v3057 = vmul.f32 %v3021, %v3052
    %v3058 = vmul.f32 %v3036, %v3054
    %3061 = vrot.lane.b32.xlu0 %v3057, 32
    %v3062 = vpop.permute.xlu0 %3061
    %3063 = vrot.lane.b32.xlu0 %v3058, 32
    %v3064 = vpop.permute.xlu0 %3063
    %v3067 = vadd.f32 %v3047, %v3062
    %v3068 = vadd.f32 %v3048, %v3064
    %v3069 = vtanh.pop %v3067
    %v3070 = vtanh.pop %v3068
    %3073 = vrot.lane.b32.xlu0 %v3069, 32
    %v3074 = vpop.permute.xlu0 %3073
    %3075 = vrot.lane.b32.xlu0 %v3070, 32
    %v3076 = vpop.permute.xlu0 %3075
    %v3079 = vmul.f32 %v3021, %v3074
    %v3080 = vmul.f32 %v3036, %v3076
    %v3081 = vxor.u32 %v2996, 2147483648
    %v3082 = vxor.u32 %v2998, 2147483648
    %v3083 = vmul.f32 %v3081, 1.442695
    %v3084 = vpow.pop %v3083
    %v3085 = vmul.f32 %v3082, 1.442695
    %v3086 = vpow.pop %v3085
    %v3087 = vadd.f32 %v3084, 1.0
    %v3088 = vadd.f32 %v3086, 1.0
    %v3089 = vrcp.pop %v3087
    %v3090 = vmul.f32 %v3087, %v3089
    %v3091 = vsub.f32 1.0, %v3090
    %v3092 = vmul.f32 %v3089, %v3091
    %v3093 = vadd.f32 %v3089, %v3092
    %vm3094 = vweird.f32 %v3087
    %vm3095 = vweird.f32 %v3089
    %vm3096 = vmor %vm3094, %vm3095
    %v3097 = vsel %vm3096, %v3089, %v3093
    %v3098 = vand.u32 2147483647, %v3087
    %vm3099 = vcmp.eq.f32.partialorder %v3098, 8.507059e+37
    %v3100 = vand.u32 %v3087, 2147483648
    %v3101 = vor.u32 1.1754944e-38, %v3100
    %v3102 = vsel %vm3099, %v3101, %v3097
    %v3103 = vmul.f32 1.0, %v3102
    %v3104 = vrcp.pop %v3088
    %v3105 = vmul.f32 %v3088, %v3104
    %v3106 = vsub.f32 1.0, %v3105
    %v3107 = vmul.f32 %v3104, %v3106
    %v3108 = vadd.f32 %v3104, %v3107
    %vm3109 = vweird.f32 %v3088
    %vm3110 = vweird.f32 %v3104
    %vm3111 = vmor %vm3109, %vm3110
    %v3112 = vsel %vm3111, %v3104, %v3108
    %v3113 = vand.u32 2147483647, %v3088
    %vm3114 = vcmp.eq.f32.partialorder %v3113, 8.507059e+37
    %v3115 = vand.u32 %v3088, 2147483648
    %v3116 = vor.u32 1.1754944e-38, %v3115
    %v3117 = vsel %vm3114, %v3116, %v3112
    %v3118 = vmul.f32 1.0, %v3117
    %v3119 = vtanh.pop %v2996
    %v3120 = vtanh.pop %v2998
    %v3121 = vmul.f32 %v3103, %v2939
    %v3122 = vmul.f32 %v3118, %v2940
    %3125 = vrot.lane.b32.xlu0 %v3119, 32
    %v3126 = vpop.permute.xlu0 %3125
    %3127 = vrot.lane.b32.xlu0 %v3120, 32
    %v3128 = vpop.permute.xlu0 %3127
    %v3131 = vmul.f32 %v3103, %v3126
    %v3132 = vmul.f32 %v3118, %v3128
    %3135 = vrot.lane.b32.xlu0 %v3131, 32
    %v3136 = vpop.permute.xlu0 %3135
    %3137 = vrot.lane.b32.xlu0 %v3132, 32
    %v3138 = vpop.permute.xlu0 %3137
    %v3141 = vadd.f32 %v3121, %v3136
    %v3142 = vadd.f32 %v3122, %v3138
    %v3143 = vtanh.pop %v3141
    %v3144 = vtanh.pop %v3142
    %3147 = vrot.lane.b32.xlu0 %v3143, 32
    %v3148 = vpop.permute.xlu0 %3147
    %3149 = vrot.lane.b32.xlu0 %v3144, 32
    %v3150 = vpop.permute.xlu0 %3149
    %v3153 = vmul.f32 %v3103, %v3148
    %v3154 = vmul.f32 %v3118, %v3150
    %3157 = vrot.lane.b32.xlu0 %v3079, 64
    %v3158 = vpop.permute.xlu0 %3157
    %3159 = vrot.lane.b32.xlu0 %v3080, 64
    %v3160 = vpop.permute.xlu0 %3159
    %3165 = vrot.lane.b32.xlu0 %v3153, 96
    %v3166 = vpop.permute.xlu0 %3165
    %3167 = vrot.lane.b32.xlu0 %v3154, 96
    %v3168 = vpop.permute.xlu0 %3167
    %v3171 = vsel %vm592, %v3158, %v3166
    %v3172 = vsel %vm592, %v3160, %v3168
    %3175 = vrot.lane.b32.xlu0 %v3067, 96
    %v3176 = vpop.permute.xlu0 %3175
    %3177 = vrot.lane.b32.xlu0 %v3068, 96
    %v3178 = vpop.permute.xlu0 %3177
    %v3181 = vsel %vm592, %v3176, %v3141
    %v3182 = vsel %vm592, %v3178, %v3142
    %v3183 = vsel %vm867, %v3171, 0.0
    %v3184 = vsel %vm868, %v3172, 0.0
    %v3185 = vsel %vm867, %v3181, %v2939
    %v3186 = vsel %vm868, %v3182, %v2940
    %v3187 = vadd.f32 %v2941, %v3183
    %v3188 = vadd.f32 %v2942, %v3184
    %v3189 = vmax.f32 %v2937, %v3183
    %v3190 = vmax.f32 %v2938, %v3184
    %v3191 = vld [vmem:[%s879] sm:$0xff]
    %v3192 = vld [vmem:[%s879 + $0x8] sm:$0xff]
    %v3193 = vld [vmem:[%s882] sm:$0xff]
    %v3194 = vld [vmem:[%s882 + $0x8] sm:$0xff]
    %v3197 = vunpack.c.l.b16 %v3191
    %v3198 = vunpack.c.l.b16 %v3192
    %v3199 = vpack.c.b16 %v3198, %v3197
    %v3203 = vunpack.c.h.b16 %v3193
    %v3204 = vunpack.c.h.b16 %v3194
    %v3205 = vpack.c.b16 %v3204, %v3203
    %v3207 = vunpack.c.l.bf16 %v3199
    %v3208 = vunpack.c.l.bf16 %v3205
    %v3209 = vunpack.c.h.bf16 %v3199
    %v3210 = vunpack.c.h.bf16 %v3205
    %v3211 = vpack.c.bf16 %v3184, %v3183
    %v3213 = vsel %vm392, %v3211, 0
    %3215 = vmatpush.bf16.msra.mxu0 0
    %3216 = vmatpush.bf16.msra.mxu0 0
    %3217 = vmatpush.bf16.msra.mxu0 0
    %3218 = vmatpush.bf16.msra.mxu0 0
    %3219 = vmatpush.bf16.msra.mxu0 %v2719
    %3220 = vmatpush.bf16.msra.mxu0 %v2717
    %3221 = vmatpush.bf16.msra.mxu0 %v2715
    %3222 = vmatpush.bf16.msra.mxu0 %v2713
    %3223 = vmatmul.bf16.gmra.mxu0 %v3213
    %v3224 = vpop.f32.mrf.mxu0
    %v3225 = vadd.f32 0.0, %v3224
    %v3226 = vpop.f32.mrf.mxu0
    %v3227 = vadd.f32 0.0, %v3226
    %3228 = vdwg.mxu0
    %3229 = vmatpush.bf16.msra.mxu0 0
    %3230 = vmatpush.bf16.msra.mxu0 0
    %3231 = vmatpush.bf16.msra.mxu0 0
    %3232 = vmatpush.bf16.msra.mxu0 0
    %3233 = vmatpush.bf16.msra.mxu0 %v2720
    %3234 = vmatpush.bf16.msra.mxu0 %v2718
    %3235 = vmatpush.bf16.msra.mxu0 %v2716
    %3236 = vmatpush.bf16.msra.mxu0 %v2714
    %3237 = vmatmul.bf16.gmra.mxu0 %v3213
    %v3238 = vpop.f32.mrf.mxu0
    %v3239 = vadd.f32 0.0, %v3238
    %v3240 = vpop.f32.mrf.mxu0
    %v3241 = vadd.f32 0.0, %v3240
    %3242 = vdwg.mxu0
    %v3243 = vadd.f32 %v3207, %v3225
    %v3244 = vadd.f32 %v3208, %v3239
    %v3245 = vadd.f32 %v3209, %v3227
    %v3246 = vadd.f32 %v3210, %v3241
    %v3247 = vxor.u32 %v3243, 2147483648
    %v3248 = vxor.u32 %v3245, 2147483648
    %v3249 = vmul.f32 %v3247, 1.442695
    %v3250 = vpow.pop %v3249
    %v3251 = vmul.f32 %v3248, 1.442695
    %v3252 = vpow.pop %v3251
    %v3253 = vadd.f32 %v3250, 1.0
    %v3254 = vadd.f32 %v3252, 1.0
    %v3255 = vrcp.pop %v3253
    %v3256 = vmul.f32 %v3253, %v3255
    %v3257 = vsub.f32 1.0, %v3256
    %v3258 = vmul.f32 %v3255, %v3257
    %v3259 = vadd.f32 %v3255, %v3258
    %vm3260 = vweird.f32 %v3253
    %vm3261 = vweird.f32 %v3255
    %vm3262 = vmor %vm3260, %vm3261
    %v3263 = vsel %vm3262, %v3255, %v3259
    %v3264 = vand.u32 2147483647, %v3253
    %vm3265 = vcmp.eq.f32.partialorder %v3264, 8.507059e+37
    %v3266 = vand.u32 %v3253, 2147483648
    %v3267 = vor.u32 1.1754944e-38, %v3266
    %v3268 = vsel %vm3265, %v3267, %v3263
    %v3269 = vmul.f32 1.0, %v3268
    %v3270 = vrcp.pop %v3254
    %v3271 = vmul.f32 %v3254, %v3270
    %v3272 = vsub.f32 1.0, %v3271
    %v3273 = vmul.f32 %v3270, %v3272
    %v3274 = vadd.f32 %v3270, %v3273
    %vm3275 = vweird.f32 %v3254
    %vm3276 = vweird.f32 %v3270
    %vm3277 = vmor %vm3275, %vm3276
    %v3278 = vsel %vm3277, %v3270, %v3274
    %v3279 = vand.u32 2147483647, %v3254
    %vm3280 = vcmp.eq.f32.partialorder %v3279, 8.507059e+37
    %v3281 = vand.u32 %v3254, 2147483648
    %v3282 = vor.u32 1.1754944e-38, %v3281
    %v3283 = vsel %vm3280, %v3282, %v3278
    %v3284 = vmul.f32 1.0, %v3283
    %v3285 = vtanh.pop %v3243
    %v3286 = vtanh.pop %v3245
    %3289 = vrot.lane.b32.xlu0 %v3185, 32
    %v3290 = vpop.permute.xlu0 %3289
    %3291 = vrot.lane.b32.xlu0 %v3186, 32
    %v3292 = vpop.permute.xlu0 %3291
    %v3295 = vmul.f32 %v3269, %v3290
    %v3296 = vmul.f32 %v3284, %v3292
    %3299 = vrot.lane.b32.xlu0 %v3285, 32
    %v3300 = vpop.permute.xlu0 %3299
    %3301 = vrot.lane.b32.xlu0 %v3286, 32
    %v3302 = vpop.permute.xlu0 %3301
    %v3305 = vmul.f32 %v3269, %v3300
    %v3306 = vmul.f32 %v3284, %v3302
    %3309 = vrot.lane.b32.xlu0 %v3305, 32
    %v3310 = vpop.permute.xlu0 %3309
    %3311 = vrot.lane.b32.xlu0 %v3306, 32
    %v3312 = vpop.permute.xlu0 %3311
    %v3315 = vadd.f32 %v3295, %v3310
    %v3316 = vadd.f32 %v3296, %v3312
    %v3317 = vtanh.pop %v3315
    %v3318 = vtanh.pop %v3316
    %3321 = vrot.lane.b32.xlu0 %v3317, 32
    %v3322 = vpop.permute.xlu0 %3321
    %3323 = vrot.lane.b32.xlu0 %v3318, 32
    %v3324 = vpop.permute.xlu0 %3323
    %v3327 = vmul.f32 %v3269, %v3322
    %v3328 = vmul.f32 %v3284, %v3324
    %v3329 = vxor.u32 %v3244, 2147483648
    %v3330 = vxor.u32 %v3246, 2147483648
    %v3331 = vmul.f32 %v3329, 1.442695
    %v3332 = vpow.pop %v3331
    %v3333 = vmul.f32 %v3330, 1.442695
    %v3334 = vpow.pop %v3333
    %v3335 = vadd.f32 %v3332, 1.0
    %v3336 = vadd.f32 %v3334, 1.0
    %v3337 = vrcp.pop %v3335
    %v3338 = vmul.f32 %v3335, %v3337
    %v3339 = vsub.f32 1.0, %v3338
    %v3340 = vmul.f32 %v3337, %v3339
    %v3341 = vadd.f32 %v3337, %v3340
    %vm3342 = vweird.f32 %v3335
    %vm3343 = vweird.f32 %v3337
    %vm3344 = vmor %vm3342, %vm3343
    %v3345 = vsel %vm3344, %v3337, %v3341
    %v3346 = vand.u32 2147483647, %v3335
    %vm3347 = vcmp.eq.f32.partialorder %v3346, 8.507059e+37
    %v3348 = vand.u32 %v3335, 2147483648
    %v3349 = vor.u32 1.1754944e-38, %v3348
    %v3350 = vsel %vm3347, %v3349, %v3345
    %v3351 = vmul.f32 1.0, %v3350
    %v3352 = vrcp.pop %v3336
    %v3353 = vmul.f32 %v3336, %v3352
    %v3354 = vsub.f32 1.0, %v3353
    %v3355 = vmul.f32 %v3352, %v3354
    %v3356 = vadd.f32 %v3352, %v3355
    %vm3357 = vweird.f32 %v3336
    %vm3358 = vweird.f32 %v3352
    %vm3359 = vmor %vm3357, %vm3358
    %v3360 = vsel %vm3359, %v3352, %v3356
    %v3361 = vand.u32 2147483647, %v3336
    %vm3362 = vcmp.eq.f32.partialorder %v3361, 8.507059e+37
    %v3363 = vand.u32 %v3336, 2147483648
    %v3364 = vor.u32 1.1754944e-38, %v3363
    %v3365 = vsel %vm3362, %v3364, %v3360
    %v3366 = vmul.f32 1.0, %v3365
    %v3367 = vtanh.pop %v3244
    %v3368 = vtanh.pop %v3246
    %v3369 = vmul.f32 %v3351, %v3185
    %v3370 = vmul.f32 %v3366, %v3186
    %3373 = vrot.lane.b32.xlu0 %v3367, 32
    %v3374 = vpop.permute.xlu0 %3373
    %3375 = vrot.lane.b32.xlu0 %v3368, 32
    %v3376 = vpop.permute.xlu0 %3375
    %v3379 = vmul.f32 %v3351, %v3374
    %v3380 = vmul.f32 %v3366, %v3376
    %3383 = vrot.lane.b32.xlu0 %v3379, 32
    %v3384 = vpop.permute.xlu0 %3383
    %3385 = vrot.lane.b32.xlu0 %v3380, 32
    %v3386 = vpop.permute.xlu0 %3385
    %v3389 = vadd.f32 %v3369, %v3384
    %v3390 = vadd.f32 %v3370, %v3386
    %v3391 = vtanh.pop %v3389
    %v3392 = vtanh.pop %v3390
    %3395 = vrot.lane.b32.xlu0 %v3391, 32
    %v3396 = vpop.permute.xlu0 %3395
    %3397 = vrot.lane.b32.xlu0 %v3392, 32
    %v3398 = vpop.permute.xlu0 %3397
    %v3401 = vmul.f32 %v3351, %v3396
    %v3402 = vmul.f32 %v3366, %v3398
    %3405 = vrot.lane.b32.xlu0 %v3327, 64
    %v3406 = vpop.permute.xlu0 %3405
    %3407 = vrot.lane.b32.xlu0 %v3328, 64
    %v3408 = vpop.permute.xlu0 %3407
    %3413 = vrot.lane.b32.xlu0 %v3401, 96
    %v3414 = vpop.permute.xlu0 %3413
    %3415 = vrot.lane.b32.xlu0 %v3402, 96
    %v3416 = vpop.permute.xlu0 %3415
    %v3419 = vsel %vm592, %v3406, %v3414
    %v3420 = vsel %vm592, %v3408, %v3416
    %3423 = vrot.lane.b32.xlu0 %v3315, 96
    %v3424 = vpop.permute.xlu0 %3423
    %3425 = vrot.lane.b32.xlu0 %v3316, 96
    %v3426 = vpop.permute.xlu0 %3425
    %v3429 = vsel %vm592, %v3424, %v3389
    %v3430 = vsel %vm592, %v3426, %v3390
    %v3431 = vsel %vm1122, %v3419, 0.0
    %v3432 = vsel %vm1123, %v3420, 0.0
    %v3433 = vsel %vm1122, %v3429, %v3185
    %v3434 = vsel %vm1123, %v3430, %v3186
    %v3435 = vadd.f32 %v3187, %v3431
    %v3436 = vadd.f32 %v3188, %v3432
    %v3437 = vmax.f32 %v3189, %v3431
    %v3438 = vmax.f32 %v3190, %v3432
    %v3439 = vld [vmem:[%s1134] sm:$0xff]
    %v3440 = vld [vmem:[%s1134 + $0x8] sm:$0xff]
    %v3441 = vld [vmem:[%s1137] sm:$0xff]
    %v3442 = vld [vmem:[%s1137 + $0x8] sm:$0xff]
    %v3445 = vunpack.c.l.b16 %v3439
    %v3446 = vunpack.c.l.b16 %v3440
    %v3447 = vpack.c.b16 %v3446, %v3445
    %v3451 = vunpack.c.h.b16 %v3441
    %v3452 = vunpack.c.h.b16 %v3442
    %v3453 = vpack.c.b16 %v3452, %v3451
    %v3455 = vunpack.c.l.bf16 %v3447
    %v3456 = vunpack.c.l.bf16 %v3453
    %v3457 = vunpack.c.h.bf16 %v3447
    %v3458 = vunpack.c.h.bf16 %v3453
    %v3459 = vpack.c.bf16 %v3432, %v3431
    %v3461 = vsel %vm392, %v3459, 0
    %3463 = vmatpush.bf16.msra.mxu0 0
    %3464 = vmatpush.bf16.msra.mxu0 0
    %3465 = vmatpush.bf16.msra.mxu0 0
    %3466 = vmatpush.bf16.msra.mxu0 0
    %3467 = vmatpush.bf16.msra.mxu0 %v2719
    %3468 = vmatpush.bf16.msra.mxu0 %v2717
    %3469 = vmatpush.bf16.msra.mxu0 %v2715
    %3470 = vmatpush.bf16.msra.mxu0 %v2713
    %3471 = vmatmul.bf16.gmra.mxu0 %v3461
    %v3472 = vpop.f32.mrf.mxu0
    %v3473 = vadd.f32 0.0, %v3472
    %v3474 = vpop.f32.mrf.mxu0
    %v3475 = vadd.f32 0.0, %v3474
    %3476 = vdwg.mxu0
    %3477 = vmatpush.bf16.msra.mxu0 0
    %3478 = vmatpush.bf16.msra.mxu0 0
    %3479 = vmatpush.bf16.msra.mxu0 0
    %3480 = vmatpush.bf16.msra.mxu0 0
    %3481 = vmatpush.bf16.msra.mxu0 %v2720
    %3482 = vmatpush.bf16.msra.mxu0 %v2718
    %3483 = vmatpush.bf16.msra.mxu0 %v2716
    %3484 = vmatpush.bf16.msra.mxu0 %v2714
    %3485 = vmatmul.bf16.gmra.mxu0 %v3461
    %v3486 = vpop.f32.mrf.mxu0
    %v3487 = vadd.f32 0.0, %v3486
    %v3488 = vpop.f32.mrf.mxu0
    %v3489 = vadd.f32 0.0, %v3488
    %3490 = vdwg.mxu0
    %v3491 = vadd.f32 %v3455, %v3473
    %v3492 = vadd.f32 %v3456, %v3487
    %v3493 = vadd.f32 %v3457, %v3475
    %v3494 = vadd.f32 %v3458, %v3489
    %v3495 = vxor.u32 %v3491, 2147483648
    %v3496 = vxor.u32 %v3493, 2147483648
    %v3497 = vmul.f32 %v3495, 1.442695
    %v3498 = vpow.pop %v3497
    %v3499 = vmul.f32 %v3496, 1.442695
    %v3500 = vpow.pop %v3499
    %v3501 = vadd.f32 %v3498, 1.0
    %v3502 = vadd.f32 %v3500, 1.0
    %v3503 = vrcp.pop %v3501
    %v3504 = vmul.f32 %v3501, %v3503
    %v3505 = vsub.f32 1.0, %v3504
    %v3506 = vmul.f32 %v3503, %v3505
    %v3507 = vadd.f32 %v3503, %v3506
    %vm3508 = vweird.f32 %v3501
    %vm3509 = vweird.f32 %v3503
    %vm3510 = vmor %vm3508, %vm3509
    %v3511 = vsel %vm3510, %v3503, %v3507
    %v3512 = vand.u32 2147483647, %v3501
    %vm3513 = vcmp.eq.f32.partialorder %v3512, 8.507059e+37
    %v3514 = vand.u32 %v3501, 2147483648
    %v3515 = vor.u32 1.1754944e-38, %v3514
    %v3516 = vsel %vm3513, %v3515, %v3511
    %v3517 = vmul.f32 1.0, %v3516
    %v3518 = vrcp.pop %v3502
    %v3519 = vmul.f32 %v3502, %v3518
    %v3520 = vsub.f32 1.0, %v3519
    %v3521 = vmul.f32 %v3518, %v3520
    %v3522 = vadd.f32 %v3518, %v3521
    %vm3523 = vweird.f32 %v3502
    %vm3524 = vweird.f32 %v3518
    %vm3525 = vmor %vm3523, %vm3524
    %v3526 = vsel %vm3525, %v3518, %v3522
    %v3527 = vand.u32 2147483647, %v3502
    %vm3528 = vcmp.eq.f32.partialorder %v3527, 8.507059e+37
    %v3529 = vand.u32 %v3502, 2147483648
    %v3530 = vor.u32 1.1754944e-38, %v3529
    %v3531 = vsel %vm3528, %v3530, %v3526
    %v3532 = vmul.f32 1.0, %v3531
    %v3533 = vtanh.pop %v3491
    %v3534 = vtanh.pop %v3493
    %3537 = vrot.lane.b32.xlu0 %v3433, 32
    %v3538 = vpop.permute.xlu0 %3537
    %3539 = vrot.lane.b32.xlu0 %v3434, 32
    %v3540 = vpop.permute.xlu0 %3539
    %v3543 = vmul.f32 %v3517, %v3538
    %v3544 = vmul.f32 %v3532, %v3540
    %3547 = vrot.lane.b32.xlu0 %v3533, 32
    %v3548 = vpop.permute.xlu0 %3547
    %3549 = vrot.lane.b32.xlu0 %v3534, 32
    %v3550 = vpop.permute.xlu0 %3549
    %v3553 = vmul.f32 %v3517, %v3548
    %v3554 = vmul.f32 %v3532, %v3550
    %3557 = vrot.lane.b32.xlu0 %v3553, 32
    %v3558 = vpop.permute.xlu0 %3557
    %3559 = vrot.lane.b32.xlu0 %v3554, 32
    %v3560 = vpop.permute.xlu0 %3559
    %v3563 = vadd.f32 %v3543, %v3558
    %v3564 = vadd.f32 %v3544, %v3560
    %v3565 = vtanh.pop %v3563
    %v3566 = vtanh.pop %v3564
    %3569 = vrot.lane.b32.xlu0 %v3565, 32
    %v3570 = vpop.permute.xlu0 %3569
    %3571 = vrot.lane.b32.xlu0 %v3566, 32
    %v3572 = vpop.permute.xlu0 %3571
    %v3575 = vmul.f32 %v3517, %v3570
    %v3576 = vmul.f32 %v3532, %v3572
    %v3577 = vxor.u32 %v3492, 2147483648
    %v3578 = vxor.u32 %v3494, 2147483648
    %v3579 = vmul.f32 %v3577, 1.442695
    %v3580 = vpow.pop %v3579
    %v3581 = vmul.f32 %v3578, 1.442695
    %v3582 = vpow.pop %v3581
    %v3583 = vadd.f32 %v3580, 1.0
    %v3584 = vadd.f32 %v3582, 1.0
    %v3585 = vrcp.pop %v3583
    %v3586 = vmul.f32 %v3583, %v3585
    %v3587 = vsub.f32 1.0, %v3586
    %v3588 = vmul.f32 %v3585, %v3587
    %v3589 = vadd.f32 %v3585, %v3588
    %vm3590 = vweird.f32 %v3583
    %vm3591 = vweird.f32 %v3585
    %vm3592 = vmor %vm3590, %vm3591
    %v3593 = vsel %vm3592, %v3585, %v3589
    %v3594 = vand.u32 2147483647, %v3583
    %vm3595 = vcmp.eq.f32.partialorder %v3594, 8.507059e+37
    %v3596 = vand.u32 %v3583, 2147483648
    %v3597 = vor.u32 1.1754944e-38, %v3596
    %v3598 = vsel %vm3595, %v3597, %v3593
    %v3599 = vmul.f32 1.0, %v3598
    %v3600 = vrcp.pop %v3584
    %v3601 = vmul.f32 %v3584, %v3600
    %v3602 = vsub.f32 1.0, %v3601
    %v3603 = vmul.f32 %v3600, %v3602
    %v3604 = vadd.f32 %v3600, %v3603
    %vm3605 = vweird.f32 %v3584
    %vm3606 = vweird.f32 %v3600
    %vm3607 = vmor %vm3605, %vm3606
    %v3608 = vsel %vm3607, %v3600, %v3604
    %v3609 = vand.u32 2147483647, %v3584
    %vm3610 = vcmp.eq.f32.partialorder %v3609, 8.507059e+37
    %v3611 = vand.u32 %v3584, 2147483648
    %v3612 = vor.u32 1.1754944e-38, %v3611
    %v3613 = vsel %vm3610, %v3612, %v3608
    %v3614 = vmul.f32 1.0, %v3613
    %v3615 = vtanh.pop %v3492
    %v3616 = vtanh.pop %v3494
    %v3617 = vmul.f32 %v3599, %v3433
    %v3618 = vmul.f32 %v3614, %v3434
    %3621 = vrot.lane.b32.xlu0 %v3615, 32
    %v3622 = vpop.permute.xlu0 %3621
    %3623 = vrot.lane.b32.xlu0 %v3616, 32
    %v3624 = vpop.permute.xlu0 %3623
    %v3627 = vmul.f32 %v3599, %v3622
    %v3628 = vmul.f32 %v3614, %v3624
    %3631 = vrot.lane.b32.xlu0 %v3627, 32
    %v3632 = vpop.permute.xlu0 %3631
    %3633 = vrot.lane.b32.xlu0 %v3628, 32
    %v3634 = vpop.permute.xlu0 %3633
    %v3637 = vadd.f32 %v3617, %v3632
    %v3638 = vadd.f32 %v3618, %v3634
    %v3639 = vtanh.pop %v3637
    %v3640 = vtanh.pop %v3638
    %3643 = vrot.lane.b32.xlu0 %v3639, 32
    %v3644 = vpop.permute.xlu0 %3643
    %3645 = vrot.lane.b32.xlu0 %v3640, 32
    %v3646 = vpop.permute.xlu0 %3645
    %v3649 = vmul.f32 %v3599, %v3644
    %v3650 = vmul.f32 %v3614, %v3646
    %3653 = vrot.lane.b32.xlu0 %v3575, 64
    %v3654 = vpop.permute.xlu0 %3653
    %3655 = vrot.lane.b32.xlu0 %v3576, 64
    %v3656 = vpop.permute.xlu0 %3655
    %3661 = vrot.lane.b32.xlu0 %v3649, 96
    %v3662 = vpop.permute.xlu0 %3661
    %3663 = vrot.lane.b32.xlu0 %v3650, 96
    %v3664 = vpop.permute.xlu0 %3663
    %v3667 = vsel %vm592, %v3654, %v3662
    %v3668 = vsel %vm592, %v3656, %v3664
    %3671 = vrot.lane.b32.xlu0 %v3563, 96
    %v3672 = vpop.permute.xlu0 %3671
    %3673 = vrot.lane.b32.xlu0 %v3564, 96
    %v3674 = vpop.permute.xlu0 %3673
    %v3677 = vsel %vm592, %v3672, %v3637
    %v3678 = vsel %vm592, %v3674, %v3638
    %v3679 = vsel %vm1377, %v3667, 0.0
    %v3680 = vsel %vm1378, %v3668, 0.0
    %v3681 = vsel %vm1377, %v3677, %v3433
    %v3682 = vsel %vm1378, %v3678, %v3434
    %v3683 = vadd.f32 %v3435, %v3679
    %v3684 = vadd.f32 %v3436, %v3680
    %v3685 = vmax.f32 %v3437, %v3679
    %v3686 = vmax.f32 %v3438, %v3680
    %v3687 = vunpack.c.l.b16 %v3441
    %v3688 = vunpack.c.l.b16 %v3442
    %v3689 = vpack.c.b16 %v3688, %v3687
    %v3691 = vunpack.c.h.b16 %v3439
    %v3692 = vunpack.c.h.b16 %v3440
    %v3693 = vpack.c.b16 %v3692, %v3691
    %v3695 = vunpack.c.l.bf16 %v3689
    %v3696 = vunpack.c.l.bf16 %v3693
    %v3697 = vunpack.c.h.bf16 %v3689
    %v3698 = vunpack.c.h.bf16 %v3693
    %v3699 = vpack.c.bf16 %v3680, %v3679
    %v3701 = vsel %vm392, %v3699, 0
    %3703 = vmatpush.bf16.msra.mxu0 0
    %3704 = vmatpush.bf16.msra.mxu0 0
    %3705 = vmatpush.bf16.msra.mxu0 0
    %3706 = vmatpush.bf16.msra.mxu0 0
    %3707 = vmatpush.bf16.msra.mxu0 %v2719
    %3708 = vmatpush.bf16.msra.mxu0 %v2717
    %3709 = vmatpush.bf16.msra.mxu0 %v2715
    %3710 = vmatpush.bf16.msra.mxu0 %v2713
    %3711 = vmatmul.bf16.gmra.mxu0 %v3701
    %v3712 = vpop.f32.mrf.mxu0
    %v3713 = vadd.f32 0.0, %v3712
    %v3714 = vpop.f32.mrf.mxu0
    %v3715 = vadd.f32 0.0, %v3714
    %3716 = vdwg.mxu0
    %3717 = vmatpush.bf16.msra.mxu0 0
    %3718 = vmatpush.bf16.msra.mxu0 0
    %3719 = vmatpush.bf16.msra.mxu0 0
    %3720 = vmatpush.bf16.msra.mxu0 0
    %3721 = vmatpush.bf16.msra.mxu0 %v2720
    %3722 = vmatpush.bf16.msra.mxu0 %v2718
    %3723 = vmatpush.bf16.msra.mxu0 %v2716
    %3724 = vmatpush.bf16.msra.mxu0 %v2714
    %3725 = vmatmul.bf16.gmra.mxu0 %v3701
    %v3726 = vpop.f32.mrf.mxu0
    %v3727 = vadd.f32 0.0, %v3726
    %v3728 = vpop.f32.mrf.mxu0
    %v3729 = vadd.f32 0.0, %v3728
    %3730 = vdwg.mxu0
    %v3731 = vadd.f32 %v3695, %v3713
    %v3732 = vadd.f32 %v3696, %v3727
    %v3733 = vadd.f32 %v3697, %v3715
    %v3734 = vadd.f32 %v3698, %v3729
    %v3735 = vxor.u32 %v3731, 2147483648
    %v3736 = vxor.u32 %v3733, 2147483648
    %v3737 = vmul.f32 %v3735, 1.442695
    %v3738 = vpow.pop %v3737
    %v3739 = vmul.f32 %v3736, 1.442695
    %v3740 = vpow.pop %v3739
    %v3741 = vadd.f32 %v3738, 1.0
    %v3742 = vadd.f32 %v3740, 1.0
    %v3743 = vrcp.pop %v3741
    %v3744 = vmul.f32 %v3741, %v3743
    %v3745 = vsub.f32 1.0, %v3744
    %v3746 = vmul.f32 %v3743, %v3745
    %v3747 = vadd.f32 %v3743, %v3746
    %vm3748 = vweird.f32 %v3741
    %vm3749 = vweird.f32 %v3743
    %vm3750 = vmor %vm3748, %vm3749
    %v3751 = vsel %vm3750, %v3743, %v3747
    %v3752 = vand.u32 2147483647, %v3741
    %vm3753 = vcmp.eq.f32.partialorder %v3752, 8.507059e+37
    %v3754 = vand.u32 %v3741, 2147483648
    %v3755 = vor.u32 1.1754944e-38, %v3754
    %v3756 = vsel %vm3753, %v3755, %v3751
    %v3757 = vmul.f32 1.0, %v3756
    %v3758 = vrcp.pop %v3742
    %v3759 = vmul.f32 %v3742, %v3758
    %v3760 = vsub.f32 1.0, %v3759
    %v3761 = vmul.f32 %v3758, %v3760
    %v3762 = vadd.f32 %v3758, %v3761
    %vm3763 = vweird.f32 %v3742
    %vm3764 = vweird.f32 %v3758
    %vm3765 = vmor %vm3763, %vm3764
    %v3766 = vsel %vm3765, %v3758, %v3762
    %v3767 = vand.u32 2147483647, %v3742
    %vm3768 = vcmp.eq.f32.partialorder %v3767, 8.507059e+37
    %v3769 = vand.u32 %v3742, 2147483648
    %v3770 = vor.u32 1.1754944e-38, %v3769
    %v3771 = vsel %vm3768, %v3770, %v3766
    %v3772 = vmul.f32 1.0, %v3771
    %v3773 = vtanh.pop %v3731
    %v3774 = vtanh.pop %v3733
    %3777 = vrot.lane.b32.xlu0 %v3681, 32
    %v3778 = vpop.permute.xlu0 %3777
    %3779 = vrot.lane.b32.xlu0 %v3682, 32
    %v3780 = vpop.permute.xlu0 %3779
    %v3783 = vmul.f32 %v3757, %v3778
    %v3784 = vmul.f32 %v3772, %v3780
    %3787 = vrot.lane.b32.xlu0 %v3773, 32
    %v3788 = vpop.permute.xlu0 %3787
    %3789 = vrot.lane.b32.xlu0 %v3774, 32
    %v3790 = vpop.permute.xlu0 %3789
    %v3793 = vmul.f32 %v3757, %v3788
    %v3794 = vmul.f32 %v3772, %v3790
    %3797 = vrot.lane.b32.xlu0 %v3793, 32
    %v3798 = vpop.permute.xlu0 %3797
    %3799 = vrot.lane.b32.xlu0 %v3794, 32
    %v3800 = vpop.permute.xlu0 %3799
    %v3803 = vadd.f32 %v3783, %v3798
    %v3804 = vadd.f32 %v3784, %v3800
    %v3805 = vtanh.pop %v3803
    %v3806 = vtanh.pop %v3804
    %3809 = vrot.lane.b32.xlu0 %v3805, 32
    %v3810 = vpop.permute.xlu0 %3809
    %3811 = vrot.lane.b32.xlu0 %v3806, 32
    %v3812 = vpop.permute.xlu0 %3811
    %v3815 = vmul.f32 %v3757, %v3810
    %v3816 = vmul.f32 %v3772, %v3812
    %v3817 = vxor.u32 %v3732, 2147483648
    %v3818 = vxor.u32 %v3734, 2147483648
    %v3819 = vmul.f32 %v3817, 1.442695
    %v3820 = vpow.pop %v3819
    %v3821 = vmul.f32 %v3818, 1.442695
    %v3822 = vpow.pop %v3821
    %v3823 = vadd.f32 %v3820, 1.0
    %v3824 = vadd.f32 %v3822, 1.0
    %v3825 = vrcp.pop %v3823
    %v3826 = vmul.f32 %v3823, %v3825
    %v3827 = vsub.f32 1.0, %v3826
    %v3828 = vmul.f32 %v3825, %v3827
    %v3829 = vadd.f32 %v3825, %v3828
    %vm3830 = vweird.f32 %v3823
    %vm3831 = vweird.f32 %v3825
    %vm3832 = vmor %vm3830, %vm3831
    %v3833 = vsel %vm3832, %v3825, %v3829
    %v3834 = vand.u32 2147483647, %v3823
    %vm3835 = vcmp.eq.f32.partialorder %v3834, 8.507059e+37
    %v3836 = vand.u32 %v3823, 2147483648
    %v3837 = vor.u32 1.1754944e-38, %v3836
    %v3838 = vsel %vm3835, %v3837, %v3833
    %v3839 = vmul.f32 1.0, %v3838
    %v3840 = vrcp.pop %v3824
    %v3841 = vmul.f32 %v3824, %v3840
    %v3842 = vsub.f32 1.0, %v3841
    %v3843 = vmul.f32 %v3840, %v3842
    %v3844 = vadd.f32 %v3840, %v3843
    %vm3845 = vweird.f32 %v3824
    %vm3846 = vweird.f32 %v3840
    %vm3847 = vmor %vm3845, %vm3846
    %v3848 = vsel %vm3847, %v3840, %v3844
    %v3849 = vand.u32 2147483647, %v3824
    %vm3850 = vcmp.eq.f32.partialorder %v3849, 8.507059e+37
    %v3851 = vand.u32 %v3824, 2147483648
    %v3852 = vor.u32 1.1754944e-38, %v3851
    %v3853 = vsel %vm3850, %v3852, %v3848
    %v3854 = vmul.f32 1.0, %v3853
    %v3855 = vtanh.pop %v3732
    %v3856 = vtanh.pop %v3734
    %v3857 = vmul.f32 %v3839, %v3681
    %v3858 = vmul.f32 %v3854, %v3682
    %3861 = vrot.lane.b32.xlu0 %v3855, 32
    %v3862 = vpop.permute.xlu0 %3861
    %3863 = vrot.lane.b32.xlu0 %v3856, 32
    %v3864 = vpop.permute.xlu0 %3863
    %v3867 = vmul.f32 %v3839, %v3862
    %v3868 = vmul.f32 %v3854, %v3864
    %3871 = vrot.lane.b32.xlu0 %v3867, 32
    %v3872 = vpop.permute.xlu0 %3871
    %3873 = vrot.lane.b32.xlu0 %v3868, 32
    %v3874 = vpop.permute.xlu0 %3873
    %v3877 = vadd.f32 %v3857, %v3872
    %v3878 = vadd.f32 %v3858, %v3874
    %v3879 = vtanh.pop %v3877
    %v3880 = vtanh.pop %v3878
    %3883 = vrot.lane.b32.xlu0 %v3879, 32
    %v3884 = vpop.permute.xlu0 %3883
    %3885 = vrot.lane.b32.xlu0 %v3880, 32
    %v3886 = vpop.permute.xlu0 %3885
    %v3889 = vmul.f32 %v3839, %v3884
    %v3890 = vmul.f32 %v3854, %v3886
    %3893 = vrot.lane.b32.xlu0 %v3815, 64
    %v3894 = vpop.permute.xlu0 %3893
    %3895 = vrot.lane.b32.xlu0 %v3816, 64
    %v3896 = vpop.permute.xlu0 %3895
    %3901 = vrot.lane.b32.xlu0 %v3889, 96
    %v3902 = vpop.permute.xlu0 %3901
    %3903 = vrot.lane.b32.xlu0 %v3890, 96
    %v3904 = vpop.permute.xlu0 %3903
    %v3907 = vsel %vm592, %v3894, %v3902
    %v3908 = vsel %vm592, %v3896, %v3904
    %3911 = vrot.lane.b32.xlu0 %v3803, 96
    %v3912 = vpop.permute.xlu0 %3911
    %3913 = vrot.lane.b32.xlu0 %v3804, 96
    %v3914 = vpop.permute.xlu0 %3913
    %v3917 = vsel %vm592, %v3912, %v3877
    %v3918 = vsel %vm592, %v3914, %v3878
    %v3919 = vsel %vm1630, %v3907, 0.0
    %v3920 = vsel %vm1631, %v3908, 0.0
    %v3921 = vsel %vm1630, %v3917, %v3681
    %v3922 = vsel %vm1631, %v3918, %v3682
    %v3923 = vadd.f32 %v3683, %v3919
    %v3924 = vadd.f32 %v3684, %v3920
    %v3925 = vmax.f32 %v3685, %v3919
    %v3926 = vmax.f32 %v3686, %v3920
    %v3927 = vunpack.c.l.b16 %v3193
    %v3928 = vunpack.c.l.b16 %v3194
    %v3929 = vpack.c.b16 %v3928, %v3927
    %v3931 = vunpack.c.h.b16 %v3191
    %v3932 = vunpack.c.h.b16 %v3192
    %v3933 = vpack.c.b16 %v3932, %v3931
    %v3935 = vunpack.c.l.bf16 %v3929
    %v3936 = vunpack.c.l.bf16 %v3933
    %v3937 = vunpack.c.h.bf16 %v3929
    %v3938 = vunpack.c.h.bf16 %v3933
    %v3939 = vpack.c.bf16 %v3920, %v3919
    %v3941 = vsel %vm392, %v3939, 0
    %3943 = vmatpush.bf16.msra.mxu0 0
    %3944 = vmatpush.bf16.msra.mxu0 0
    %3945 = vmatpush.bf16.msra.mxu0 0
    %3946 = vmatpush.bf16.msra.mxu0 0
    %3947 = vmatpush.bf16.msra.mxu0 %v2719
    %3948 = vmatpush.bf16.msra.mxu0 %v2717
    %3949 = vmatpush.bf16.msra.mxu0 %v2715
    %3950 = vmatpush.bf16.msra.mxu0 %v2713
    %3951 = vmatmul.bf16.gmra.mxu0 %v3941
    %v3952 = vpop.f32.mrf.mxu0
    %v3953 = vadd.f32 0.0, %v3952
    %v3954 = vpop.f32.mrf.mxu0
    %v3955 = vadd.f32 0.0, %v3954
    %3956 = vdwg.mxu0
    %3957 = vmatpush.bf16.msra.mxu0 0
    %3958 = vmatpush.bf16.msra.mxu0 0
    %3959 = vmatpush.bf16.msra.mxu0 0
    %3960 = vmatpush.bf16.msra.mxu0 0
    %3961 = vmatpush.bf16.msra.mxu0 %v2720
    %3962 = vmatpush.bf16.msra.mxu0 %v2718
    %3963 = vmatpush.bf16.msra.mxu0 %v2716
    %3964 = vmatpush.bf16.msra.mxu0 %v2714
    %3965 = vmatmul.bf16.gmra.mxu0 %v3941
    %v3966 = vpop.f32.mrf.mxu0
    %v3967 = vadd.f32 0.0, %v3966
    %v3968 = vpop.f32.mrf.mxu0
    %v3969 = vadd.f32 0.0, %v3968
    %3970 = vdwg.mxu0
    %v3971 = vadd.f32 %v3935, %v3953
    %v3972 = vadd.f32 %v3936, %v3967
    %v3973 = vadd.f32 %v3937, %v3955
    %v3974 = vadd.f32 %v3938, %v3969
    %v3975 = vxor.u32 %v3971, 2147483648
    %v3976 = vxor.u32 %v3973, 2147483648
    %v3977 = vmul.f32 %v3975, 1.442695
    %v3978 = vpow.pop %v3977
    %v3979 = vmul.f32 %v3976, 1.442695
    %v3980 = vpow.pop %v3979
    %v3981 = vadd.f32 %v3978, 1.0
    %v3982 = vadd.f32 %v3980, 1.0
    %v3983 = vrcp.pop %v3981
    %v3984 = vmul.f32 %v3981, %v3983
    %v3985 = vsub.f32 1.0, %v3984
    %v3986 = vmul.f32 %v3983, %v3985
    %v3987 = vadd.f32 %v3983, %v3986
    %vm3988 = vweird.f32 %v3981
    %vm3989 = vweird.f32 %v3983
    %vm3990 = vmor %vm3988, %vm3989
    %v3991 = vsel %vm3990, %v3983, %v3987
    %v3992 = vand.u32 2147483647, %v3981
    %vm3993 = vcmp.eq.f32.partialorder %v3992, 8.507059e+37
    %v3994 = vand.u32 %v3981, 2147483648
    %v3995 = vor.u32 1.1754944e-38, %v3994
    %v3996 = vsel %vm3993, %v3995, %v3991
    %v3997 = vmul.f32 1.0, %v3996
    %v3998 = vrcp.pop %v3982
    %v3999 = vmul.f32 %v3982, %v3998
    %v4000 = vsub.f32 1.0, %v3999
    %v4001 = vmul.f32 %v3998, %v4000
    %v4002 = vadd.f32 %v3998, %v4001
    %vm4003 = vweird.f32 %v3982
    %vm4004 = vweird.f32 %v3998
    %vm4005 = vmor %vm4003, %vm4004
    %v4006 = vsel %vm4005, %v3998, %v4002
    %v4007 = vand.u32 2147483647, %v3982
    %vm4008 = vcmp.eq.f32.partialorder %v4007, 8.507059e+37
    %v4009 = vand.u32 %v3982, 2147483648
    %v4010 = vor.u32 1.1754944e-38, %v4009
    %v4011 = vsel %vm4008, %v4010, %v4006
    %v4012 = vmul.f32 1.0, %v4011
    %v4013 = vtanh.pop %v3971
    %v4014 = vtanh.pop %v3973
    %4017 = vrot.lane.b32.xlu0 %v3921, 32
    %v4018 = vpop.permute.xlu0 %4017
    %4019 = vrot.lane.b32.xlu0 %v3922, 32
    %v4020 = vpop.permute.xlu0 %4019
    %v4023 = vmul.f32 %v3997, %v4018
    %v4024 = vmul.f32 %v4012, %v4020
    %4027 = vrot.lane.b32.xlu0 %v4013, 32
    %v4028 = vpop.permute.xlu0 %4027
    %4029 = vrot.lane.b32.xlu0 %v4014, 32
    %v4030 = vpop.permute.xlu0 %4029
    %v4033 = vmul.f32 %v3997, %v4028
    %v4034 = vmul.f32 %v4012, %v4030
    %4037 = vrot.lane.b32.xlu0 %v4033, 32
    %v4038 = vpop.permute.xlu0 %4037
    %4039 = vrot.lane.b32.xlu0 %v4034, 32
    %v4040 = vpop.permute.xlu0 %4039
    %v4043 = vadd.f32 %v4023, %v4038
    %v4044 = vadd.f32 %v4024, %v4040
    %v4045 = vtanh.pop %v4043
    %v4046 = vtanh.pop %v4044
    %4049 = vrot.lane.b32.xlu0 %v4045, 32
    %v4050 = vpop.permute.xlu0 %4049
    %4051 = vrot.lane.b32.xlu0 %v4046, 32
    %v4052 = vpop.permute.xlu0 %4051
    %v4055 = vmul.f32 %v3997, %v4050
    %v4056 = vmul.f32 %v4012, %v4052
    %v4057 = vxor.u32 %v3972, 2147483648
    %v4058 = vxor.u32 %v3974, 2147483648
    %v4059 = vmul.f32 %v4057, 1.442695
    %v4060 = vpow.pop %v4059
    %v4061 = vmul.f32 %v4058, 1.442695
    %v4062 = vpow.pop %v4061
    %v4063 = vadd.f32 %v4060, 1.0
    %v4064 = vadd.f32 %v4062, 1.0
    %v4065 = vrcp.pop %v4063
    %v4066 = vmul.f32 %v4063, %v4065
    %v4067 = vsub.f32 1.0, %v4066
    %v4068 = vmul.f32 %v4065, %v4067
    %v4069 = vadd.f32 %v4065, %v4068
    %vm4070 = vweird.f32 %v4063
    %vm4071 = vweird.f32 %v4065
    %vm4072 = vmor %vm4070, %vm4071
    %v4073 = vsel %vm4072, %v4065, %v4069
    %v4074 = vand.u32 2147483647, %v4063
    %vm4075 = vcmp.eq.f32.partialorder %v4074, 8.507059e+37
    %v4076 = vand.u32 %v4063, 2147483648
    %v4077 = vor.u32 1.1754944e-38, %v4076
    %v4078 = vsel %vm4075, %v4077, %v4073
    %v4079 = vmul.f32 1.0, %v4078
    %v4080 = vrcp.pop %v4064
    %v4081 = vmul.f32 %v4064, %v4080
    %v4082 = vsub.f32 1.0, %v4081
    %v4083 = vmul.f32 %v4080, %v4082
    %v4084 = vadd.f32 %v4080, %v4083
    %vm4085 = vweird.f32 %v4064
    %vm4086 = vweird.f32 %v4080
    %vm4087 = vmor %vm4085, %vm4086
    %v4088 = vsel %vm4087, %v4080, %v4084
    %v4089 = vand.u32 2147483647, %v4064
    %vm4090 = vcmp.eq.f32.partialorder %v4089, 8.507059e+37
    %v4091 = vand.u32 %v4064, 2147483648
    %v4092 = vor.u32 1.1754944e-38, %v4091
    %v4093 = vsel %vm4090, %v4092, %v4088
    %v4094 = vmul.f32 1.0, %v4093
    %v4095 = vtanh.pop %v3972
    %v4096 = vtanh.pop %v3974
    %v4097 = vmul.f32 %v4079, %v3921
    %v4098 = vmul.f32 %v4094, %v3922
    %4101 = vrot.lane.b32.xlu0 %v4095, 32
    %v4102 = vpop.permute.xlu0 %4101
    %4103 = vrot.lane.b32.xlu0 %v4096, 32
    %v4104 = vpop.permute.xlu0 %4103
    %v4107 = vmul.f32 %v4079, %v4102
    %v4108 = vmul.f32 %v4094, %v4104
    %4111 = vrot.lane.b32.xlu0 %v4107, 32
    %v4112 = vpop.permute.xlu0 %4111
    %4113 = vrot.lane.b32.xlu0 %v4108, 32
    %v4114 = vpop.permute.xlu0 %4113
    %v4117 = vadd.f32 %v4097, %v4112
    %v4118 = vadd.f32 %v4098, %v4114
    %v4119 = vtanh.pop %v4117
    %v4120 = vtanh.pop %v4118
    %4123 = vrot.lane.b32.xlu0 %v4119, 32
    %v4124 = vpop.permute.xlu0 %4123
    %4125 = vrot.lane.b32.xlu0 %v4120, 32
    %v4126 = vpop.permute.xlu0 %4125
    %v4129 = vmul.f32 %v4079, %v4124
    %v4130 = vmul.f32 %v4094, %v4126
    %4133 = vrot.lane.b32.xlu0 %v4055, 64
    %v4134 = vpop.permute.xlu0 %4133
    %4135 = vrot.lane.b32.xlu0 %v4056, 64
    %v4136 = vpop.permute.xlu0 %4135
    %4141 = vrot.lane.b32.xlu0 %v4129, 96
    %v4142 = vpop.permute.xlu0 %4141
    %4143 = vrot.lane.b32.xlu0 %v4130, 96
    %v4144 = vpop.permute.xlu0 %4143
    %v4147 = vsel %vm592, %v4134, %v4142
    %v4148 = vsel %vm592, %v4136, %v4144
    %4151 = vrot.lane.b32.xlu0 %v4043, 96
    %v4152 = vpop.permute.xlu0 %4151
    %4153 = vrot.lane.b32.xlu0 %v4044, 96
    %v4154 = vpop.permute.xlu0 %4153
    %v4157 = vsel %vm592, %v4152, %v4117
    %v4158 = vsel %vm592, %v4154, %v4118
    %v4159 = vsel %vm1881, %v4147, 0.0
    %v4160 = vsel %vm1882, %v4148, 0.0
    %v4161 = vsel %vm1881, %v4157, %v3921
    %v4162 = vsel %vm1882, %v4158, %v3922
    %v4163 = vadd.f32 %v3923, %v4159
    %v4164 = vadd.f32 %v3924, %v4160
    %v4165 = vmax.f32 %v3925, %v4159
    %v4166 = vmax.f32 %v3926, %v4160
    %v4167 = vunpack.c.l.b16 %v2945
    %v4168 = vunpack.c.l.b16 %v2946
    %v4169 = vpack.c.b16 %v4168, %v4167
    %v4171 = vunpack.c.h.b16 %v2943
    %v4172 = vunpack.c.h.b16 %v2944
    %v4173 = vpack.c.b16 %v4172, %v4171
    %v4175 = vunpack.c.l.bf16 %v4169
    %v4176 = vunpack.c.l.bf16 %v4173
    %v4177 = vunpack.c.h.bf16 %v4169
    %v4178 = vunpack.c.h.bf16 %v4173
    %v4179 = vpack.c.bf16 %v4160, %v4159
    %v4181 = vsel %vm392, %v4179, 0
    %4183 = vmatpush.bf16.msra.mxu0 0
    %4184 = vmatpush.bf16.msra.mxu0 0
    %4185 = vmatpush.bf16.msra.mxu0 0
    %4186 = vmatpush.bf16.msra.mxu0 0
    %4187 = vmatpush.bf16.msra.mxu0 %v2719
    %4188 = vmatpush.bf16.msra.mxu0 %v2717
    %4189 = vmatpush.bf16.msra.mxu0 %v2715
    %4190 = vmatpush.bf16.msra.mxu0 %v2713
    %4191 = vmatmul.bf16.gmra.mxu0 %v4181
    %v4192 = vpop.f32.mrf.mxu0
    %v4193 = vadd.f32 0.0, %v4192
    %v4194 = vpop.f32.mrf.mxu0
    %v4195 = vadd.f32 0.0, %v4194
    %4196 = vdwg.mxu0
    %4197 = vmatpush.bf16.msra.mxu0 0
    %4198 = vmatpush.bf16.msra.mxu0 0
    %4199 = vmatpush.bf16.msra.mxu0 0
    %4200 = vmatpush.bf16.msra.mxu0 0
    %4201 = vmatpush.bf16.msra.mxu0 %v2720
    %4202 = vmatpush.bf16.msra.mxu0 %v2718
    %4203 = vmatpush.bf16.msra.mxu0 %v2716
    %4204 = vmatpush.bf16.msra.mxu0 %v2714
    %4205 = vmatmul.bf16.gmra.mxu0 %v4181
    %v4206 = vpop.f32.mrf.mxu0
    %v4207 = vadd.f32 0.0, %v4206
    %v4208 = vpop.f32.mrf.mxu0
    %v4209 = vadd.f32 0.0, %v4208
    %4210 = vdwg.mxu0
    %v4211 = vadd.f32 %v4175, %v4193
    %v4212 = vadd.f32 %v4176, %v4207
    %v4213 = vadd.f32 %v4177, %v4195
    %v4214 = vadd.f32 %v4178, %v4209
    %v4215 = vxor.u32 %v4211, 2147483648
    %v4216 = vxor.u32 %v4213, 2147483648
    %v4217 = vmul.f32 %v4215, 1.442695
    %v4218 = vpow.pop %v4217
    %v4219 = vmul.f32 %v4216, 1.442695
    %v4220 = vpow.pop %v4219
    %v4221 = vadd.f32 %v4218, 1.0
    %v4222 = vadd.f32 %v4220, 1.0
    %v4223 = vrcp.pop %v4221
    %v4224 = vmul.f32 %v4221, %v4223
    %v4225 = vsub.f32 1.0, %v4224
    %v4226 = vmul.f32 %v4223, %v4225
    %v4227 = vadd.f32 %v4223, %v4226
    %vm4228 = vweird.f32 %v4221
    %vm4229 = vweird.f32 %v4223
    %vm4230 = vmor %vm4228, %vm4229
    %v4231 = vsel %vm4230, %v4223, %v4227
    %v4232 = vand.u32 2147483647, %v4221
    %vm4233 = vcmp.eq.f32.partialorder %v4232, 8.507059e+37
    %v4234 = vand.u32 %v4221, 2147483648
    %v4235 = vor.u32 1.1754944e-38, %v4234
    %v4236 = vsel %vm4233, %v4235, %v4231
    %v4237 = vmul.f32 1.0, %v4236
    %v4238 = vrcp.pop %v4222
    %v4239 = vmul.f32 %v4222, %v4238
    %v4240 = vsub.f32 1.0, %v4239
    %v4241 = vmul.f32 %v4238, %v4240
    %v4242 = vadd.f32 %v4238, %v4241
    %vm4243 = vweird.f32 %v4222
    %vm4244 = vweird.f32 %v4238
    %vm4245 = vmor %vm4243, %vm4244
    %v4246 = vsel %vm4245, %v4238, %v4242
    %v4247 = vand.u32 2147483647, %v4222
    %vm4248 = vcmp.eq.f32.partialorder %v4247, 8.507059e+37
    %v4249 = vand.u32 %v4222, 2147483648
    %v4250 = vor.u32 1.1754944e-38, %v4249
    %v4251 = vsel %vm4248, %v4250, %v4246
    %v4252 = vmul.f32 1.0, %v4251
    %v4253 = vtanh.pop %v4211
    %v4254 = vtanh.pop %v4213
    %4257 = vrot.lane.b32.xlu0 %v4161, 32
    %v4258 = vpop.permute.xlu0 %4257
    %4259 = vrot.lane.b32.xlu0 %v4162, 32
    %v4260 = vpop.permute.xlu0 %4259
    %v4263 = vmul.f32 %v4237, %v4258
    %v4264 = vmul.f32 %v4252, %v4260
    %4267 = vrot.lane.b32.xlu0 %v4253, 32
    %v4268 = vpop.permute.xlu0 %4267
    %4269 = vrot.lane.b32.xlu0 %v4254, 32
    %v4270 = vpop.permute.xlu0 %4269
    %v4273 = vmul.f32 %v4237, %v4268
    %v4274 = vmul.f32 %v4252, %v4270
    %4277 = vrot.lane.b32.xlu0 %v4273, 32
    %v4278 = vpop.permute.xlu0 %4277
    %4279 = vrot.lane.b32.xlu0 %v4274, 32
    %v4280 = vpop.permute.xlu0 %4279
    %v4283 = vadd.f32 %v4263, %v4278
    %v4284 = vadd.f32 %v4264, %v4280
    %v4285 = vtanh.pop %v4283
    %v4286 = vtanh.pop %v4284
    %4289 = vrot.lane.b32.xlu0 %v4285, 32
    %v4290 = vpop.permute.xlu0 %4289
    %4291 = vrot.lane.b32.xlu0 %v4286, 32
    %v4292 = vpop.permute.xlu0 %4291
    %v4295 = vmul.f32 %v4237, %v4290
    %v4296 = vmul.f32 %v4252, %v4292
    %v4297 = vxor.u32 %v4212, 2147483648
    %v4298 = vxor.u32 %v4214, 2147483648
    %v4299 = vmul.f32 %v4297, 1.442695
    %v4300 = vpow.pop %v4299
    %v4301 = vmul.f32 %v4298, 1.442695
    %v4302 = vpow.pop %v4301
    %v4303 = vadd.f32 %v4300, 1.0
    %v4304 = vadd.f32 %v4302, 1.0
    %v4305 = vrcp.pop %v4303
    %v4306 = vmul.f32 %v4303, %v4305
    %v4307 = vsub.f32 1.0, %v4306
    %v4308 = vmul.f32 %v4305, %v4307
    %v4309 = vadd.f32 %v4305, %v4308
    %vm4310 = vweird.f32 %v4303
    %vm4311 = vweird.f32 %v4305
    %vm4312 = vmor %vm4310, %vm4311
    %v4313 = vsel %vm4312, %v4305, %v4309
    %v4314 = vand.u32 2147483647, %v4303
    %vm4315 = vcmp.eq.f32.partialorder %v4314, 8.507059e+37
    %v4316 = vand.u32 %v4303, 2147483648
    %v4317 = vor.u32 1.1754944e-38, %v4316
    %v4318 = vsel %vm4315, %v4317, %v4313
    %v4319 = vmul.f32 1.0, %v4318
    %v4320 = vrcp.pop %v4304
    %v4321 = vmul.f32 %v4304, %v4320
    %v4322 = vsub.f32 1.0, %v4321
    %v4323 = vmul.f32 %v4320, %v4322
    %v4324 = vadd.f32 %v4320, %v4323
    %vm4325 = vweird.f32 %v4304
    %vm4326 = vweird.f32 %v4320
    %vm4327 = vmor %vm4325, %vm4326
    %v4328 = vsel %vm4327, %v4320, %v4324
    %v4329 = vand.u32 2147483647, %v4304
    %vm4330 = vcmp.eq.f32.partialorder %v4329, 8.507059e+37
    %v4331 = vand.u32 %v4304, 2147483648
    %v4332 = vor.u32 1.1754944e-38, %v4331
    %v4333 = vsel %vm4330, %v4332, %v4328
    %v4334 = vmul.f32 1.0, %v4333
    %v4335 = vtanh.pop %v4212
    %v4336 = vtanh.pop %v4214
    %v4337 = vmul.f32 %v4319, %v4161
    %v4338 = vmul.f32 %v4334, %v4162
    %4341 = vrot.lane.b32.xlu0 %v4335, 32
    %v4342 = vpop.permute.xlu0 %4341
    %4343 = vrot.lane.b32.xlu0 %v4336, 32
    %v4344 = vpop.permute.xlu0 %4343
    %v4347 = vmul.f32 %v4319, %v4342
    %v4348 = vmul.f32 %v4334, %v4344
    %4351 = vrot.lane.b32.xlu0 %v4347, 32
    %v4352 = vpop.permute.xlu0 %4351
    %4353 = vrot.lane.b32.xlu0 %v4348, 32
    %v4354 = vpop.permute.xlu0 %4353
    %v4357 = vadd.f32 %v4337, %v4352
    %v4358 = vadd.f32 %v4338, %v4354
    %v4359 = vtanh.pop %v4357
    %v4360 = vtanh.pop %v4358
    %4363 = vrot.lane.b32.xlu0 %v4359, 32
    %v4364 = vpop.permute.xlu0 %4363
    %4365 = vrot.lane.b32.xlu0 %v4360, 32
    %v4366 = vpop.permute.xlu0 %4365
    %v4369 = vmul.f32 %v4319, %v4364
    %v4370 = vmul.f32 %v4334, %v4366
    %4373 = vrot.lane.b32.xlu0 %v4295, 64
    %v4374 = vpop.permute.xlu0 %4373
    %4375 = vrot.lane.b32.xlu0 %v4296, 64
    %v4376 = vpop.permute.xlu0 %4375
    %4381 = vrot.lane.b32.xlu0 %v4369, 96
    %v4382 = vpop.permute.xlu0 %4381
    %4383 = vrot.lane.b32.xlu0 %v4370, 96
    %v4384 = vpop.permute.xlu0 %4383
    %v4387 = vsel %vm592, %v4374, %v4382
    %v4388 = vsel %vm592, %v4376, %v4384
    %4391 = vrot.lane.b32.xlu0 %v4283, 96
    %v4392 = vpop.permute.xlu0 %4391
    %4393 = vrot.lane.b32.xlu0 %v4284, 96
    %v4394 = vpop.permute.xlu0 %4393
    %v4397 = vsel %vm592, %v4392, %v4357
    %v4398 = vsel %vm592, %v4394, %v4358
    %v4399 = vsel %vm2132, %v4387, 0.0
    %v4400 = vsel %vm2133, %v4388, 0.0
    %v4401 = vsel %vm2132, %v4397, %v4161
    %v4402 = vsel %vm2133, %v4398, %v4162
    %v4403 = vadd.f32 %v4163, %v4399
    %v4404 = vadd.f32 %v4164, %v4400
    %v4405 = vmax.f32 %v4165, %v4399
    %v4406 = vmax.f32 %v4166, %v4400
    %v4407 = vunpack.c.l.b16 %v2671
    %v4408 = vunpack.c.l.b16 %v2672
    %v4409 = vpack.c.b16 %v4408, %v4407
    %v4411 = vunpack.c.h.b16 %v2669
    %v4412 = vunpack.c.h.b16 %v2670
    %v4413 = vpack.c.b16 %v4412, %v4411
    %v4415 = vunpack.c.l.bf16 %v4409
    %v4416 = vunpack.c.l.bf16 %v4413
    %v4417 = vunpack.c.h.bf16 %v4409
    %v4418 = vunpack.c.h.bf16 %v4413
    %v4419 = vpack.c.bf16 %v4400, %v4399
    %v4421 = vsel %vm392, %v4419, 0
    %4423 = vmatpush.bf16.msra.mxu0 0
    %4424 = vmatpush.bf16.msra.mxu0 0
    %4425 = vmatpush.bf16.msra.mxu0 0
    %4426 = vmatpush.bf16.msra.mxu0 0
    %4427 = vmatpush.bf16.msra.mxu0 %v2719
    %4428 = vmatpush.bf16.msra.mxu0 %v2717
    %4429 = vmatpush.bf16.msra.mxu0 %v2715
    %4430 = vmatpush.bf16.msra.mxu0 %v2713
    %4431 = vmatmul.bf16.gmra.mxu0 %v4421
    %v4432 = vpop.f32.mrf.mxu0
    %v4433 = vadd.f32 0.0, %v4432
    %v4434 = vpop.f32.mrf.mxu0
    %v4435 = vadd.f32 0.0, %v4434
    %4436 = vdwg.mxu0
    %4437 = vmatpush.bf16.msra.mxu0 0
    %4438 = vmatpush.bf16.msra.mxu0 0
    %4439 = vmatpush.bf16.msra.mxu0 0
    %4440 = vmatpush.bf16.msra.mxu0 0
    %4441 = vmatpush.bf16.msra.mxu0 %v2720
    %4442 = vmatpush.bf16.msra.mxu0 %v2718
    %4443 = vmatpush.bf16.msra.mxu0 %v2716
    %4444 = vmatpush.bf16.msra.mxu0 %v2714
    %4445 = vmatmul.bf16.gmra.mxu0 %v4421
    %v4446 = vpop.f32.mrf.mxu0
    %v4447 = vadd.f32 0.0, %v4446
    %v4448 = vpop.f32.mrf.mxu0
    %v4449 = vadd.f32 0.0, %v4448
    %4450 = vdwg.mxu0
    %v4451 = vadd.f32 %v4415, %v4433
    %v4452 = vadd.f32 %v4416, %v4447
    %v4453 = vadd.f32 %v4417, %v4435
    %v4454 = vadd.f32 %v4418, %v4449
    %v4455 = vxor.u32 %v4451, 2147483648
    %v4456 = vxor.u32 %v4453, 2147483648
    %v4457 = vmul.f32 %v4455, 1.442695
    %v4458 = vpow.pop %v4457
    %v4459 = vmul.f32 %v4456, 1.442695
    %v4460 = vpow.pop %v4459
    %v4461 = vadd.f32 %v4458, 1.0
    %v4462 = vadd.f32 %v4460, 1.0
    %v4463 = vrcp.pop %v4461
    %v4464 = vmul.f32 %v4461, %v4463
    %v4465 = vsub.f32 1.0, %v4464
    %v4466 = vmul.f32 %v4463, %v4465
    %v4467 = vadd.f32 %v4463, %v4466
    %vm4468 = vweird.f32 %v4461
    %vm4469 = vweird.f32 %v4463
    %vm4470 = vmor %vm4468, %vm4469
    %v4471 = vsel %vm4470, %v4463, %v4467
    %v4472 = vand.u32 2147483647, %v4461
    %vm4473 = vcmp.eq.f32.partialorder %v4472, 8.507059e+37
    %v4474 = vand.u32 %v4461, 2147483648
    %v4475 = vor.u32 1.1754944e-38, %v4474
    %v4476 = vsel %vm4473, %v4475, %v4471
    %v4477 = vmul.f32 1.0, %v4476
    %v4478 = vrcp.pop %v4462
    %v4479 = vmul.f32 %v4462, %v4478
    %v4480 = vsub.f32 1.0, %v4479
    %v4481 = vmul.f32 %v4478, %v4480
    %v4482 = vadd.f32 %v4478, %v4481
    %vm4483 = vweird.f32 %v4462
    %vm4484 = vweird.f32 %v4478
    %vm4485 = vmor %vm4483, %vm4484
    %v4486 = vsel %vm4485, %v4478, %v4482
    %v4487 = vand.u32 2147483647, %v4462
    %vm4488 = vcmp.eq.f32.partialorder %v4487, 8.507059e+37
    %v4489 = vand.u32 %v4462, 2147483648
    %v4490 = vor.u32 1.1754944e-38, %v4489
    %v4491 = vsel %vm4488, %v4490, %v4486
    %v4492 = vmul.f32 1.0, %v4491
    %v4493 = vtanh.pop %v4451
    %v4494 = vtanh.pop %v4453
    %4497 = vrot.lane.b32.xlu0 %v4401, 32
    %v4498 = vpop.permute.xlu0 %4497
    %4499 = vrot.lane.b32.xlu0 %v4402, 32
    %v4500 = vpop.permute.xlu0 %4499
    %v4503 = vmul.f32 %v4477, %v4498
    %v4504 = vmul.f32 %v4492, %v4500
    %4507 = vrot.lane.b32.xlu0 %v4493, 32
    %v4508 = vpop.permute.xlu0 %4507
    %4509 = vrot.lane.b32.xlu0 %v4494, 32
    %v4510 = vpop.permute.xlu0 %4509
    %v4513 = vmul.f32 %v4477, %v4508
    %v4514 = vmul.f32 %v4492, %v4510
    %4517 = vrot.lane.b32.xlu0 %v4513, 32
    %v4518 = vpop.permute.xlu0 %4517
    %4519 = vrot.lane.b32.xlu0 %v4514, 32
    %v4520 = vpop.permute.xlu0 %4519
    %v4523 = vadd.f32 %v4503, %v4518
    %v4524 = vadd.f32 %v4504, %v4520
    %v4525 = vtanh.pop %v4523
    %v4526 = vtanh.pop %v4524
    %4529 = vrot.lane.b32.xlu0 %v4525, 32
    %v4530 = vpop.permute.xlu0 %4529
    %4531 = vrot.lane.b32.xlu0 %v4526, 32
    %v4532 = vpop.permute.xlu0 %4531
    %v4535 = vmul.f32 %v4477, %v4530
    %v4536 = vmul.f32 %v4492, %v4532
    %v4537 = vxor.u32 %v4452, 2147483648
    %v4538 = vxor.u32 %v4454, 2147483648
    %v4539 = vmul.f32 %v4537, 1.442695
    %v4540 = vpow.pop %v4539
    %v4541 = vmul.f32 %v4538, 1.442695
    %v4542 = vpow.pop %v4541
    %v4543 = vadd.f32 %v4540, 1.0
    %v4544 = vadd.f32 %v4542, 1.0
    %v4545 = vrcp.pop %v4543
    %v4546 = vmul.f32 %v4543, %v4545
    %v4547 = vsub.f32 1.0, %v4546
    %v4548 = vmul.f32 %v4545, %v4547
    %v4549 = vadd.f32 %v4545, %v4548
    %vm4550 = vweird.f32 %v4543
    %vm4551 = vweird.f32 %v4545
    %vm4552 = vmor %vm4550, %vm4551
    %v4553 = vsel %vm4552, %v4545, %v4549
    %v4554 = vand.u32 2147483647, %v4543
    %vm4555 = vcmp.eq.f32.partialorder %v4554, 8.507059e+37
    %v4556 = vand.u32 %v4543, 2147483648
    %v4557 = vor.u32 1.1754944e-38, %v4556
    %v4558 = vsel %vm4555, %v4557, %v4553
    %v4559 = vmul.f32 1.0, %v4558
    %v4560 = vrcp.pop %v4544
    %v4561 = vmul.f32 %v4544, %v4560
    %v4562 = vsub.f32 1.0, %v4561
    %v4563 = vmul.f32 %v4560, %v4562
    %v4564 = vadd.f32 %v4560, %v4563
    %vm4565 = vweird.f32 %v4544
    %vm4566 = vweird.f32 %v4560
    %vm4567 = vmor %vm4565, %vm4566
    %v4568 = vsel %vm4567, %v4560, %v4564
    %v4569 = vand.u32 2147483647, %v4544
    %vm4570 = vcmp.eq.f32.partialorder %v4569, 8.507059e+37
    %v4571 = vand.u32 %v4544, 2147483648
    %v4572 = vor.u32 1.1754944e-38, %v4571
    %v4573 = vsel %vm4570, %v4572, %v4568
    %v4574 = vmul.f32 1.0, %v4573
    %v4575 = vtanh.pop %v4452
    %v4576 = vtanh.pop %v4454
    %v4577 = vmul.f32 %v4559, %v4401
    %v4578 = vmul.f32 %v4574, %v4402
    %4581 = vrot.lane.b32.xlu0 %v4575, 32
    %v4582 = vpop.permute.xlu0 %4581
    %4583 = vrot.lane.b32.xlu0 %v4576, 32
    %v4584 = vpop.permute.xlu0 %4583
    %v4587 = vmul.f32 %v4559, %v4582
    %v4588 = vmul.f32 %v4574, %v4584
    %4591 = vrot.lane.b32.xlu0 %v4587, 32
    %v4592 = vpop.permute.xlu0 %4591
    %4593 = vrot.lane.b32.xlu0 %v4588, 32
    %v4594 = vpop.permute.xlu0 %4593
    %v4597 = vadd.f32 %v4577, %v4592
    %v4598 = vadd.f32 %v4578, %v4594
    %v4599 = vtanh.pop %v4597
    %v4600 = vtanh.pop %v4598
    %4603 = vrot.lane.b32.xlu0 %v4599, 32
    %v4604 = vpop.permute.xlu0 %4603
    %4605 = vrot.lane.b32.xlu0 %v4600, 32
    %v4606 = vpop.permute.xlu0 %4605
    %v4609 = vmul.f32 %v4559, %v4604
    %v4610 = vmul.f32 %v4574, %v4606
    %4613 = vrot.lane.b32.xlu0 %v4535, 64
    %v4614 = vpop.permute.xlu0 %4613
    %4615 = vrot.lane.b32.xlu0 %v4536, 64
    %v4616 = vpop.permute.xlu0 %4615
    %4621 = vrot.lane.b32.xlu0 %v4609, 96
    %v4622 = vpop.permute.xlu0 %4621
    %4623 = vrot.lane.b32.xlu0 %v4610, 96
    %v4624 = vpop.permute.xlu0 %4623
    %v4627 = vsel %vm592, %v4614, %v4622
    %v4628 = vsel %vm592, %v4616, %v4624
    %v4629 = vsel %vm2373, %v4627, 0.0
    %v4630 = vsel %vm2374, %v4628, 0.0
    %v4631 = vadd.f32 %v4403, %v4629
    %v4632 = vadd.f32 %v4404, %v4630
    %v4633 = vmax.f32 %v4405, %v4629
    %v4634 = vmax.f32 %v4406, %v4630
    %v4635 = vmul.f32 %v4631, 0.125
    %v4636 = vmul.f32 %v4632, 0.125
    %4639 = vrot.lane.b32.xlu0 %v4633, 64
    %v4640 = vpop.permute.xlu0 %4639
    %4641 = vrot.lane.b32.xlu0 %v4634, 64
    %v4642 = vpop.permute.xlu0 %4641
    %v4645 = vsel %vm392, %v4635, %v4640
    %v4646 = vsel %vm392, %v4636, %v4642
    %v4647 = vpack.c.bf16 %v4646, %v4645
    %v4648 = vld [vmem:[%s8] sm:$0xf]
    %v4649 = vld [vmem:[%s8 + $0x4] sm:$0xf]
    %v4650 = vld [vmem:[%s8 + $0x8] sm:$0xf]
    %v4651 = vld [vmem:[%s8 + $0xc] sm:$0xf]
    %v4652 = vld [vmem:[%s8 + $0x10] sm:$0xf]
    %v4653 = vld [vmem:[%s8 + $0x14] sm:$0xf]
    %v4654 = vld [vmem:[%s8 + $0x18] sm:$0xf]
    %v4655 = vld [vmem:[%s8 + $0x1c] sm:$0xf]
    %v4656 = vld [vmem:[%s8 + $0x20] sm:$0xf]
    %v4657 = vld [vmem:[%s8 + $0x24] sm:$0xf]
    %v4658 = vld [vmem:[%s8 + $0x28] sm:$0xf]
    %v4659 = vld [vmem:[%s8 + $0x2c] sm:$0xf]
    %v4660 = vld [vmem:[%s8 + $0x30] sm:$0xf]
    %v4661 = vld [vmem:[%s8 + $0x34] sm:$0xf]
    %v4662 = vld [vmem:[%s8 + $0x38] sm:$0xf]
    %v4663 = vld [vmem:[%s8 + $0x3c] sm:$0xf]
    %v4664 = vld [vmem:[%s9] sm:$0x1]
    %v4666 = vperm.slane %v4664, 0
    %v4684 = vunpack.c.l.b16 %v4648
    %v4685 = vunpack.c.l.b16 %v4649
    %v4686 = vunpack.c.l.b16 %v4650
    %v4687 = vunpack.c.l.b16 %v4651
    %v4688 = vunpack.c.l.b16 %v4652
    %v4689 = vunpack.c.l.b16 %v4653
    %v4690 = vunpack.c.l.b16 %v4654
    %v4691 = vunpack.c.l.b16 %v4655
    %v4692 = vunpack.c.l.b16 %v4656
    %v4693 = vunpack.c.l.b16 %v4657
    %v4694 = vunpack.c.l.b16 %v4658
    %v4695 = vunpack.c.l.b16 %v4659
    %v4696 = vunpack.c.l.b16 %v4660
    %v4697 = vunpack.c.l.b16 %v4661
    %v4698 = vunpack.c.l.b16 %v4662
    %v4699 = vunpack.c.l.b16 %v4663
    %v4700 = vpack.c.b16 %v4685, %v4684
    %v4701 = vpack.c.b16 %v4687, %v4686
    %v4702 = vpack.c.b16 %v4689, %v4688
    %v4703 = vpack.c.b16 %v4691, %v4690
    %v4704 = vpack.c.b16 %v4693, %v4692
    %v4705 = vpack.c.b16 %v4695, %v4694
    %v4706 = vpack.c.b16 %v4697, %v4696
    %v4707 = vpack.c.b16 %v4699, %v4698
    %4716 = vmatpush.bf16.msra.mxu0 %v4707
    %4717 = vmatpush.bf16.msra.mxu0 %v4706
    %4718 = vmatpush.bf16.msra.mxu0 %v4705
    %4719 = vmatpush.bf16.msra.mxu0 %v4704
    %4720 = vmatpush.bf16.msra.mxu0 %v4703
    %4721 = vmatpush.bf16.msra.mxu0 %v4702
    %4722 = vmatpush.bf16.msra.mxu0 %v4701
    %4723 = vmatpush.bf16.msra.mxu0 %v4700
    %4724 = vmatmul.bf16.gmra.mxu0 %v4647
    %v4725 = vpop.f32.mrf.mxu0
    %v4726 = vadd.f32 %v4666, %v4725
    %v4727 = vpop.f32.mrf.mxu0
    %v4728 = vadd.f32 %v4666, %v4727
    %4729 = vdwg.mxu0
    %v4730 = vmax.f32 %v4726, 0.0
    %v4731 = vmax.f32 %v4728, 0.0
    %v4732 = vpack.c.bf16 %v4731, %v4730
    %v4733 = vld [vmem:[%s10] sm:$0xf]
    %v4734 = vld [vmem:[%s10 + $0x4] sm:$0xf]
    %v4735 = vld [vmem:[%s10 + $0x8] sm:$0xf]
    %v4736 = vld [vmem:[%s10 + $0xc] sm:$0xf]
    %v4737 = vld [vmem:[%s11] sm:$0x1]
    %v4739 = vperm.slane %v4737, 0
    %v4745 = vunpack.c.l.b16 %v4733
    %v4746 = vunpack.c.l.b16 %v4734
    %v4747 = vunpack.c.l.b16 %v4735
    %v4748 = vunpack.c.l.b16 %v4736
    %v4749 = vpack.c.b16 %v4746, %v4745
    %v4750 = vpack.c.b16 %v4748, %v4747
    %v4754 = vsel %vm592, %v4732, 0
    %4756 = vmatpush.bf16.msra.mxu0 0
    %4757 = vmatpush.bf16.msra.mxu0 0
    %4758 = vmatpush.bf16.msra.mxu0 0
    %4759 = vmatpush.bf16.msra.mxu0 0
    %4760 = vmatpush.bf16.msra.mxu0 0
    %4761 = vmatpush.bf16.msra.mxu0 0
    %4762 = vmatpush.bf16.msra.mxu0 %v4750
    %4763 = vmatpush.bf16.msra.mxu0 %v4749
    %4764 = vmatmul.bf16.gmra.mxu0 %v4754
    %v4765 = vpop.f32.mrf.mxu0
    %v4766 = vadd.f32 %v4739, %v4765
    %v4767 = vpop.f32.mrf.mxu0
    %v4768 = vadd.f32 %v4739, %v4767
    %4769 = vdwg.mxu0
    %vm4770 = vcmask 56320
    %4771 = vst.msk [vmem:[%s12] sm:$0xff] %vm4770, %v4766
    %4772 = vst.msk [vmem:[%s12 + $0x8] sm:$0xff] %vm4770, %v4768
    // Predicated region
    $region62: #{tpu_custom_call.1} parent=1 // pred_check
      _
    $region63: #{tpu_custom_call.1} parent=1 // pred_check_branch
      %4774 = sbr.rel (0) target = $region65
    $region64: #{tpu_custom_call.1} parent=1 // pred_region
      _
    $region65: #{tpu_custom_call.1} parent=1 // pred_fallthru
      _
    // Predicated region
    $region66: #{tpu_custom_call.1} parent=1 // pred_check
      _
    $region67: #{tpu_custom_call.1} parent=1 // pred_check_branch
      %4776 = sbr.rel (0) target = $region69
    $region68: #{tpu_custom_call.1} parent=1 // pred_region
      _
    $region69: #{tpu_custom_call.1} parent=1 // pred_fallthru
      _
    %4777 = vsyncpa [#allocation5], 1
    %4778 = vsyncpa [#allocation7], 1

</llo_original>
